<compile_context>
chip_gen: v7x
topology: tpu7x:2x2x1
jax: 0.10.0
libtpu: 0.0.40
codegen_flags: <defaults>
</compile_context>

<pallas_src>
import functools

import jax
import jax.numpy as jnp
from jax.experimental import pallas as pl
from jax.experimental.pallas import tpu as pltpu

_LANE = 128
_BN_EPS = 1e-5


def _round_up(x, m):
    return (x + m - 1) // m * m


# -----------------------------------------------------------------------------
# Single Pallas pass: whole-image conv as k large MXU matmuls per batch element
# plus streaming per-n BatchNorm partial statistics.
# -----------------------------------------------------------------------------
def _conv_bn_kernel(x_ref, w_ref, acc_ref, stats_ref, *scratch,
                    k, pad, hout, wout, cin):
    # x_ref:     (H, W, Cin)         bf16 unpadded image of batch element n
    # w_ref:     (k, k*Cin, Coutp)   bf16 resident weight (kh-major, kw*Cin folded)
    # acc_ref:   (hout*wout, Coutp)  f32 un-normalized conv output (flattened)
    # stats_ref: (2, Coutp)          f32 per-n [sum, sum-of-squares]
    # scratch:   optional (Hp, Wp, Cin) bf16 zero-padded image (transpose-conv only)
    if pad:
        xpad_ref = scratch[0]
        xpad_ref[...] = jnp.zeros_like(xpad_ref)
        h_in, w_in = x_ref.shape[0], x_ref.shape[1]
        xpad_ref[pad:pad + h_in, pad:pad + w_in, :] = x_ref[...]
        src = xpad_ref
    else:
        src = x_ref

    m = hout * wout
    acc = None
    for kh in range(k):  # static unroll over height taps
        # Fold the k width taps into the contraction: K = k*Cin, M = hout*wout.
        taps = [src[pl.ds(kh, hout), pl.ds(kw, wout), :] for kw in range(k)]
        slab3 = taps[0] if k == 1 else jnp.concatenate(taps, axis=2)
        slab = slab3.reshape(m, k * cin)                          # (M, k*Cin) bf16
        part = jnp.dot(slab, w_ref[kh], preferred_element_type=jnp.float32)
        acc = part if acc is None else acc + part

    acc_ref[...] = acc
    s1 = jnp.sum(acc, axis=0, keepdims=True)
    s2 = jnp.sum(acc * acc, axis=0, keepdims=True)
    stats_ref[...] = jnp.concatenate([s1, s2], axis=0)            # one (2, Coutp) store


def _conv_bn_stats_pass(x_nhwc_bf16, w_flat, *, k, pad, hout, wout):
    N, H, W, cin = x_nhwc_bf16.shape
    kk, kcin, coutp = w_flat.shape
    hp, wp = H + 2 * pad, W + 2 * pad
    m = hout * wout

    scratch = []
    if pad:
        scratch.append(pltpu.VMEM((hp, wp, cin), jnp.bfloat16))

    flops = 2 * N * m * k * k * cin * coutp
    bytes_accessed = (x_nhwc_bf16.size * 2 + w_flat.size * 2
                      + N * m * coutp * 4 + N * 2 * coutp * 4)

    kernel = functools.partial(_conv_bn_kernel, k=k, pad=pad,
                               hout=hout, wout=wout, cin=cin)
    acc, stats = pl.pallas_call(
        kernel,
        out_shape=(
            jax.ShapeDtypeStruct((N, m, coutp), jnp.float32),
            jax.ShapeDtypeStruct((N, 2, coutp), jnp.float32),
        ),
        grid=(N,),
        in_specs=[
            # whole (unpadded) image per step -> a single DMA per batch element
            pl.BlockSpec((None, H, W, cin), lambda n: (n, 0, 0, 0)),
            # full weight, constant index map -> fetched once, stays resident
            # TODO(synk): pipeline_mode=pl.Buffered(1) would halve its VMEM
            # footprint (helpful on v7x); left at the default double buffer
            # since the whole call fits comfortably in the 48 MiB budget.
            pl.BlockSpec((kk, kcin, coutp), lambda n: (0, 0, 0)),
        ],
        out_specs=(
            pl.BlockSpec((None, m, coutp), lambda n: (n, 0, 0)),
            pl.BlockSpec((None, 2, coutp), lambda n: (n, 0, 0)),
        ),
        scratch_shapes=scratch,
        compiler_params=pltpu.CompilerParams(
            dimension_semantics=("parallel",),   # batch axis -> v7x dual-TC
            vmem_limit_bytes=48 * 1024 * 1024,   # <= v7x 64 MiB physical; fine on v5e/v6e
        ),
        cost_estimate=pl.CostEstimate(
            flops=int(flops), transcendentals=0,
            bytes_accessed=int(bytes_accessed)),
    )(x_nhwc_bf16, w_flat)
    return acc, stats


# -----------------------------------------------------------------------------
# Fused forward: Conv2d / ConvTranspose2d (stride=1, pad=0, no bias) + BatchNorm2d
# -----------------------------------------------------------------------------
@functools.partial(jax.jit, static_argnames=("k", "pad", "cout"))
def _conv_bn_fused(x_nchw, w_flat_bf16, gamma_p, beta_p, *, k, pad, cout):
    N, Cin, H, W = x_nchw.shape
    coutp = gamma_p.shape[-1]
    hout = H + 2 * pad - k + 1
    wout = W + 2 * pad - k + 1

    # NCHW -> NHWC + bf16 cast.  The conv-transpose spatial zero-padding is done
    # inside the kernel (VMEM scratch), so no inflated tensor is materialized in HBM.
    # TODO(synk): fold the NCHW<->NHWC boundary transposes into the kernel's index maps.
    x_nhwc = jnp.transpose(x_nchw, (0, 2, 3, 1)).astype(jnp.bfloat16)

    acc, stats = _conv_bn_stats_pass(x_nhwc, w_flat_bf16, k=k, pad=pad,
                                     hout=hout, wout=wout)

    # Finalize BatchNorm batch statistics (biased variance, training-mode forward).
    # O(Cout) work in plain JAX.
    count = N * hout * wout
    total = jnp.sum(stats, axis=0)                 # (2, Coutp)
    mean = total[0] / count
    var = total[1] / count - mean * mean
    inv = jax.lax.rsqrt(var + _BN_EPS)
    scale = (gamma_p * inv).astype(jnp.float32)
    shift = (beta_p - mean * gamma_p * inv).astype(jnp.float32)

    # Memory-bound normalize + channel-unpad + NHWC->NCHW epilogue: left to XLA,
    # which fuses it with the transpose (cheaper than a second pallas_call here).
    y = acc.reshape(N, hout, wout, coutp) * scale + shift
    y = y[..., :cout].astype(x_nchw.dtype)
    return jnp.transpose(y, (0, 3, 1, 2))


# -----------------------------------------------------------------------------
# Regressor_Controller equivalent (deterministic synthetic parameters)
# -----------------------------------------------------------------------------
class RegressorControllerPallas:
    def __init__(self, num_stages=1, reg_info_set=((14, 28, 128, 64),), key=None):
        if num_stages != len(reg_info_set):
            raise ValueError(
                f"Number of regressors and info sets mismatch: "
                f"{num_stages} vs {reg_info_set}")
        self.num_stages = num_stages
        self.stages = {}
        key = jax.random.PRNGKey(0) if key is None else key
        for i, (gs, hs, gc, hc) in enumerate(reg_info_set):
            if hs < gs or (hc != gc and hs == gs):
                mode, k = "conv", gs - hs + 1
                wshape = (hc, gc, k, k)          # Conv2d weight [Cout, Cin, k, k]
            elif hs == gs and hc == gc:
                mode, k, wshape = "identity", 0, None
            else:
                mode, k = "conv_transpose", hs - gs + 1
                wshape = (gc, hc, k, k)          # ConvTranspose2d weight [Cin, Cout, k, k]
            params = {"mode": mode, "k": k, "cout": hc}
            if wshape is not None:
                key, kw_, kg_, kb_ = jax.random.split(key, 4)
                w = 0.05 * jax.random.normal(kw_, wshape, jnp.float32)
                # keep weights bf16-representable so the bf16 MXU path is lossless
                w = w.astype(jnp.bfloat16).astype(jnp.float32)
                gamma = 1.0 + 0.1 * jax.random.normal(kg_, (hc,), jnp.float32)
                beta = 0.1 * jax.random.normal(kb_, (hc,), jnp.float32)
                params.update(weight=w, gamma=gamma, beta=beta)

                # Precompute the MXU-ready layout once: [k, k*Cin, Cout_pad] bf16
                # (kh-major; kw folded into the contraction; spatially flipped for
                # the transposed-conv case), plus lane-padded gamma/beta.
                coutp = _round_up(hc, _LANE)
                if mode == "conv":
                    wkk = jnp.transpose(w, (2, 3, 1, 0))                    # [kh,kw,Cin,Cout]
                else:  # conv-transpose == correlation with spatially flipped kernel
                    wkk = jnp.transpose(w[:, :, ::-1, ::-1], (2, 3, 0, 1))  # [kh,kw,Cin,Cout]
                cin = wkk.shape[2]
                wkk = jnp.pad(wkk, ((0, 0), (0, 0), (0, 0), (0, coutp - hc)))
                params["w_flat"] = wkk.reshape(k, k * cin, coutp).astype(jnp.bfloat16)
                params["gamma_p"] = jnp.pad(gamma, (0, coutp - hc))
                params["beta_p"] = jnp.pad(beta, (0, coutp - hc))
                params["pad"] = k - 1 if mode == "conv_transpose" else 0
            self.stages["stage" + str(i + 1)] = params

    def __call__(self, x, stage):
        p = self.stages["stage" + str(stage)]
        if p["mode"] == "identity":
            return x
        return _conv_bn_fused(x, p["w_flat"], p["gamma_p"], p["beta_p"],
                              k=p["k"], pad=p["pad"], cout=p["cout"])


# -----------------------------------------------------------------------------
# Pure-JAX references (training-mode BatchNorm, biased variance)
# -----------------------------------------------------------------------------
def _ref_bn(out, gamma, beta, eps=_BN_EPS):
    mean = out.mean(axis=(0, 2, 3), keepdims=True)
    var = ((out - mean) ** 2).mean(axis=(0, 2, 3), keepdims=True)
    return ((out - mean) * jax.lax.rsqrt(var + eps)
            * gamma.reshape(1, -1, 1, 1) + beta.reshape(1, -1, 1, 1))


def _reference_conv_transpose_bn(x, weight, gamma, beta, eps=_BN_EPS):
    # direct scatter definition of ConvTranspose2d(stride=1, padding=0, bias=False)
    N, Cin, H, W = x.shape
    _, Cout, k, _ = weight.shape
    out = jnp.zeros((N, Cout, H + k - 1, W + k - 1), jnp.float32)
    for a in range(H):
        for b in range(W):
            contrib = jnp.einsum("ni,iokl->nokl", x[:, :, a, b], weight,
                                 precision=jax.lax.Precision.HIGHEST)
            out = out.at[:, :, a:a + k, b:b + k].add(contrib)
    return _ref_bn(out, gamma, beta, eps)


def _reference_conv_bn(x, weight, gamma, beta, eps=_BN_EPS):
    out = jax.lax.conv_general_dilated(
        x, weight, window_strides=(1, 1), padding="VALID",
        dimension_numbers=("NCHW", "OIHW", "NCHW"),
        precision=jax.lax.Precision.HIGHEST)
    return _ref_bn(out, gamma, beta, eps)


if __name__ == "__main__":
    # Three small stages exercising every Regressor branch:
    #   stage1: guided 8x8/16ch  -> hint 12x12/8ch   (ConvTranspose2d k=5 + BN)
    #   stage2: guided 12x12/8ch -> hint 8x8/16ch    (Conv2d k=5 + BN)
    #   stage3: guided 10x10/4ch -> hint 10x10/4ch   (Identity)
    reg_info_set = [(8, 12, 16, 8), (12, 8, 8, 16), (10, 10, 4, 4)]
    ctrl = RegressorControllerPallas(num_stages=3, reg_info_set=reg_info_set)

    key = jax.random.PRNGKey(0)
    k1, k2, k3 = jax.random.split(key, 3)

    def bf16_repr(a):  # bf16-representable inputs -> tight check against f32 reference
        return a.astype(jnp.bfloat16).astype(jnp.float32)

    x1 = bf16_repr(jax.random.normal(k1, (2, 16, 8, 8), jnp.float32))     # NCHW
    x2 = bf16_repr(jax.random.normal(k2, (2, 8, 12, 12), jnp.float32))
    x3 = jax.random.normal(k3, (2, 4, 10, 10), jnp.float32)

    out1 = jax.block_until_ready(ctrl(x1, 1))
    out2 = jax.block_until_ready(ctrl(x2, 2))
    out3 = jax.block_until_ready(ctrl(x3, 3))

    assert out1.shape == (2, 8, 12, 12), out1.shape
    assert out2.shape == (2, 16, 8, 8), out2.shape
    assert out3.shape == (2, 4, 10, 10), out3.shape

    p1 = ctrl.stages["stage1"]
    ref1 = jax.block_until_ready(
        _reference_conv_transpose_bn(x1, p1["weight"], p1["gamma"], p1["beta"]))
    err1 = float(jnp.max(jnp.abs(out1 - ref1)))
    assert jnp.allclose(out1, ref1, atol=2e-3, rtol=2e-3), err1

    p2 = ctrl.stages["stage2"]
    ref2 = jax.block_until_ready(
        _reference_conv_bn(x2, p2["weight"], p2["gamma"], p2["beta"]))
    err2 = float(jnp.max(jnp.abs(out2 - ref2)))
    assert jnp.allclose(out2, ref2, atol=2e-3, rtol=2e-3), err2

    assert jnp.array_equal(out3, x3)

    # TODO(synk): `to_device` has no Pallas equivalent (device placement is handled by JAX).
    print("KERNEL_OK")
</pallas_src>

<mosaic_0001>
module attributes {stable_mosaic.version = 11 : i64} {
  func.func @_conv_bn_kernel(%arg0: i32, %arg1: memref<1x8x8x16xbf16, #tpu.memory_space<vmem>>, %arg2: memref<5x80x128xbf16, #tpu.memory_space<vmem>>, %arg3: memref<1x144x128xf32, #tpu.memory_space<vmem>>, %arg4: memref<1x2x128xf32, #tpu.memory_space<vmem>>, %arg5: memref<16x16x16xbf16, #tpu.memory_space<vmem>>) attributes {dimension_semantics = [#tpu.dimension_semantics<parallel>], iteration_bounds = array<i64: 2>, scalar_prefetch = 0 : i64, scratch_operands = 1 : i64, tpu.core_type = #tpu.core_type<tc>, window_params = [{transform_indices = @transform_0, window_bounds = array<i64: 1, 8, 8, 16>}, {pipeline_mode = #tpu.pipeline_mode<synchronous>, transform_indices = @transform_1, window_bounds = array<i64: 5, 80, 128>}, {transform_indices = @transform_2, window_bounds = array<i64: 1, 144, 128>}, {transform_indices = @transform_3, window_bounds = array<i64: 1, 2, 128>}]} {
    %cst = arith.constant 0.000000e+00 : bf16
    %0 = vector.broadcast %cst : bf16 to vector<16x16x16xbf16>
    %c0 = arith.constant 0 : index
    %c0_0 = arith.constant 0 : index
    %c0_1 = arith.constant 0 : index
    %1 = vector.load %arg5[%c0, %c0_0, %c0_1] : memref<16x16x16xbf16, #tpu.memory_space<vmem>>, vector<16x16x16xbf16>
    tpu.vector_store %arg5[%c0, %c0_0, %c0_1], %0 {strides = array<i32>} : memref<16x16x16xbf16, #tpu.memory_space<vmem>>, vector<16x16x16xbf16>,
    %c0_2 = arith.constant 0 : index
    %c0_3 = arith.constant 0 : index
    %c0_4 = arith.constant 0 : index
    %c0_5 = arith.constant 0 : index
    %2 = vector.load %arg1[%c0_2, %c0_3, %c0_4, %c0_5] : memref<1x8x8x16xbf16, #tpu.memory_space<vmem>>, vector<1x8x8x16xbf16>
    %3 = vector.shape_cast %2 : vector<1x8x8x16xbf16> to vector<8x8x16xbf16>
    %c4 = arith.constant 4 : index
    %c4_6 = arith.constant 4 : index
    %c0_7 = arith.constant 0 : index
    %4 = vector.load %arg5[%c4, %c4_6, %c0_7] : memref<16x16x16xbf16, #tpu.memory_space<vmem>>, vector<8x8x16xbf16>
    tpu.vector_store %arg5[%c4, %c4_6, %c0_7], %3 {strides = array<i32>} : memref<16x16x16xbf16, #tpu.memory_space<vmem>>, vector<8x8x16xbf16>,
    %c0_8 = arith.constant 0 : index
    %c0_9 = arith.constant 0 : index
    %c0_10 = arith.constant 0 : index
    %5 = vector.load %arg5[%c0_8, %c0_9, %c0_10] : memref<16x16x16xbf16, #tpu.memory_space<vmem>>, vector<12x12x16xbf16>
    %c0_11 = arith.constant 0 : index
    %c1 = arith.constant 1 : index
    %c0_12 = arith.constant 0 : index
    %6 = vector.load %arg5[%c0_11, %c1, %c0_12] : memref<16x16x16xbf16, #tpu.memory_space<vmem>>, vector<12x12x16xbf16>
    %c0_13 = arith.constant 0 : index
    %c2 = arith.constant 2 : index
    %c0_14 = arith.constant 0 : index
    %7 = vector.load %arg5[%c0_13, %c2, %c0_14] : memref<16x16x16xbf16, #tpu.memory_space<vmem>>, vector<12x12x16xbf16>
    %c0_15 = arith.constant 0 : index
    %c3 = arith.constant 3 : index
    %c0_16 = arith.constant 0 : index
    %8 = vector.load %arg5[%c0_15, %c3, %c0_16] : memref<16x16x16xbf16, #tpu.memory_space<vmem>>, vector<12x12x16xbf16>
    %c0_17 = arith.constant 0 : index
    %c4_18 = arith.constant 4 : index
    %c0_19 = arith.constant 0 : index
    %9 = vector.load %arg5[%c0_17, %c4_18, %c0_19] : memref<16x16x16xbf16, #tpu.memory_space<vmem>>, vector<12x12x16xbf16>
    %10 = tpu.concatenate %5, %6, %7, %8, %9 in 2 : vector<12x12x16xbf16>, vector<12x12x16xbf16>, vector<12x12x16xbf16>, vector<12x12x16xbf16>, vector<12x12x16xbf16> -> vector<12x12x80xbf16>
    %11 = vector.shape_cast %10 : vector<12x12x80xbf16> to vector<144x80xbf16>
    %c0_20 = arith.constant 0 : index
    %c0_21 = arith.constant 0 : index
    %c0_22 = arith.constant 0 : index
    %12 = vector.load %arg2[%c0_20, %c0_21, %c0_22] : memref<5x80x128xbf16, #tpu.memory_space<vmem>>, vector<1x80x128xbf16>
    %13 = vector.shape_cast %12 : vector<1x80x128xbf16> to vector<80x128xbf16>
    %cst_23 = arith.constant dense<0.000000e+00> : vector<144x128xf32>
    %14 = tpu.matmul %11, %13, %cst_23 {dimension_numbers = #tpu.dot_dimension_numbers<[1], [0], [0], [1], [0, 0, 1, 1], [], []>} : vector<144x80xbf16>, vector<80x128xbf16>, vector<144x128xf32> -> vector<144x128xf32>
    %c1_24 = arith.constant 1 : index
    %c0_25 = arith.constant 0 : index
    %c0_26 = arith.constant 0 : index
    %15 = vector.load %arg5[%c1_24, %c0_25, %c0_26] : memref<16x16x16xbf16, #tpu.memory_space<vmem>>, vector<12x12x16xbf16>
    %c1_27 = arith.constant 1 : index
    %c1_28 = arith.constant 1 : index
    %c0_29 = arith.constant 0 : index
    %16 = vector.load %arg5[%c1_27, %c1_28, %c0_29] : memref<16x16x16xbf16, #tpu.memory_space<vmem>>, vector<12x12x16xbf16>
    %c1_30 = arith.constant 1 : index
    %c2_31 = arith.constant 2 : index
    %c0_32 = arith.constant 0 : index
    %17 = vector.load %arg5[%c1_30, %c2_31, %c0_32] : memref<16x16x16xbf16, #tpu.memory_space<vmem>>, vector<12x12x16xbf16>
    %c1_33 = arith.constant 1 : index
    %c3_34 = arith.constant 3 : index
    %c0_35 = arith.constant 0 : index
    %18 = vector.load %arg5[%c1_33, %c3_34, %c0_35] : memref<16x16x16xbf16, #tpu.memory_space<vmem>>, vector<12x12x16xbf16>
    %c1_36 = arith.constant 1 : index
    %c4_37 = arith.constant 4 : index
    %c0_38 = arith.constant 0 : index
    %19 = vector.load %arg5[%c1_36, %c4_37, %c0_38] : memref<16x16x16xbf16, #tpu.memory_space<vmem>>, vector<12x12x16xbf16>
    %20 = tpu.concatenate %15, %16, %17, %18, %19 in 2 : vector<12x12x16xbf16>, vector<12x12x16xbf16>, vector<12x12x16xbf16>, vector<12x12x16xbf16>, vector<12x12x16xbf16> -> vector<12x12x80xbf16>
    %21 = vector.shape_cast %20 : vector<12x12x80xbf16> to vector<144x80xbf16>
    %c1_39 = arith.constant 1 : index
    %c0_40 = arith.constant 0 : index
    %c0_41 = arith.constant 0 : index
    %22 = vector.load %arg2[%c1_39, %c0_40, %c0_41] : memref<5x80x128xbf16, #tpu.memory_space<vmem>>, vector<1x80x128xbf16>
    %23 = vector.shape_cast %22 : vector<1x80x128xbf16> to vector<80x128xbf16>
    %cst_42 = arith.constant dense<0.000000e+00> : vector<144x128xf32>
    %24 = tpu.matmul %21, %23, %cst_42 {dimension_numbers = #tpu.dot_dimension_numbers<[1], [0], [0], [1], [0, 0, 1, 1], [], []>} : vector<144x80xbf16>, vector<80x128xbf16>, vector<144x128xf32> -> vector<144x128xf32>
    %25 = arith.addf %14, %24 : vector<144x128xf32>
    %c2_43 = arith.constant 2 : index
    %c0_44 = arith.constant 0 : index
    %c0_45 = arith.constant 0 : index
    %26 = vector.load %arg5[%c2_43, %c0_44, %c0_45] : memref<16x16x16xbf16, #tpu.memory_space<vmem>>, vector<12x12x16xbf16>
    %c2_46 = arith.constant 2 : index
    %c1_47 = arith.constant 1 : index
    %c0_48 = arith.constant 0 : index
    %27 = vector.load %arg5[%c2_46, %c1_47, %c0_48] : memref<16x16x16xbf16, #tpu.memory_space<vmem>>, vector<12x12x16xbf16>
    %c2_49 = arith.constant 2 : index
    %c2_50 = arith.constant 2 : index
    %c0_51 = arith.constant 0 : index
    %28 = vector.load %arg5[%c2_49, %c2_50, %c0_51] : memref<16x16x16xbf16, #tpu.memory_space<vmem>>, vector<12x12x16xbf16>
    %c2_52 = arith.constant 2 : index
    %c3_53 = arith.constant 3 : index
    %c0_54 = arith.constant 0 : index
    %29 = vector.load %arg5[%c2_52, %c3_53, %c0_54] : memref<16x16x16xbf16, #tpu.memory_space<vmem>>, vector<12x12x16xbf16>
    %c2_55 = arith.constant 2 : index
    %c4_56 = arith.constant 4 : index
    %c0_57 = arith.constant 0 : index
    %30 = vector.load %arg5[%c2_55, %c4_56, %c0_57] : memref<16x16x16xbf16, #tpu.memory_space<vmem>>, vector<12x12x16xbf16>
    %31 = tpu.concatenate %26, %27, %28, %29, %30 in 2 : vector<12x12x16xbf16>, vector<12x12x16xbf16>, vector<12x12x16xbf16>, vector<12x12x16xbf16>, vector<12x12x16xbf16> -> vector<12x12x80xbf16>
    %32 = vector.shape_cast %31 : vector<12x12x80xbf16> to vector<144x80xbf16>
    %c2_58 = arith.constant 2 : index
    %c0_59 = arith.constant 0 : index
    %c0_60 = arith.constant 0 : index
    %33 = vector.load %arg2[%c2_58, %c0_59, %c0_60] : memref<5x80x128xbf16, #tpu.memory_space<vmem>>, vector<1x80x128xbf16>
    %34 = vector.shape_cast %33 : vector<1x80x128xbf16> to vector<80x128xbf16>
    %cst_61 = arith.constant dense<0.000000e+00> : vector<144x128xf32>
    %35 = tpu.matmul %32, %34, %cst_61 {dimension_numbers = #tpu.dot_dimension_numbers<[1], [0], [0], [1], [0, 0, 1, 1], [], []>} : vector<144x80xbf16>, vector<80x128xbf16>, vector<144x128xf32> -> vector<144x128xf32>
    %36 = arith.addf %25, %35 : vector<144x128xf32>
    %c3_62 = arith.constant 3 : index
    %c0_63 = arith.constant 0 : index
    %c0_64 = arith.constant 0 : index
    %37 = vector.load %arg5[%c3_62, %c0_63, %c0_64] : memref<16x16x16xbf16, #tpu.memory_space<vmem>>, vector<12x12x16xbf16>
    %c3_65 = arith.constant 3 : index
    %c1_66 = arith.constant 1 : index
    %c0_67 = arith.constant 0 : index
    %38 = vector.load %arg5[%c3_65, %c1_66, %c0_67] : memref<16x16x16xbf16, #tpu.memory_space<vmem>>, vector<12x12x16xbf16>
    %c3_68 = arith.constant 3 : index
    %c2_69 = arith.constant 2 : index
    %c0_70 = arith.constant 0 : index
    %39 = vector.load %arg5[%c3_68, %c2_69, %c0_70] : memref<16x16x16xbf16, #tpu.memory_space<vmem>>, vector<12x12x16xbf16>
    %c3_71 = arith.constant 3 : index
    %c3_72 = arith.constant 3 : index
    %c0_73 = arith.constant 0 : index
    %40 = vector.load %arg5[%c3_71, %c3_72, %c0_73] : memref<16x16x16xbf16, #tpu.memory_space<vmem>>, vector<12x12x16xbf16>
    %c3_74 = arith.constant 3 : index
    %c4_75 = arith.constant 4 : index
    %c0_76 = arith.constant 0 : index
    %41 = vector.load %arg5[%c3_74, %c4_75, %c0_76] : memref<16x16x16xbf16, #tpu.memory_space<vmem>>, vector<12x12x16xbf16>
    %42 = tpu.concatenate %37, %38, %39, %40, %41 in 2 : vector<12x12x16xbf16>, vector<12x12x16xbf16>, vector<12x12x16xbf16>, vector<12x12x16xbf16>, vector<12x12x16xbf16> -> vector<12x12x80xbf16>
    %43 = vector.shape_cast %42 : vector<12x12x80xbf16> to vector<144x80xbf16>
    %c3_77 = arith.constant 3 : index
    %c0_78 = arith.constant 0 : index
    %c0_79 = arith.constant 0 : index
    %44 = vector.load %arg2[%c3_77, %c0_78, %c0_79] : memref<5x80x128xbf16, #tpu.memory_space<vmem>>, vector<1x80x128xbf16>
    %45 = vector.shape_cast %44 : vector<1x80x128xbf16> to vector<80x128xbf16>
    %cst_80 = arith.constant dense<0.000000e+00> : vector<144x128xf32>
    %46 = tpu.matmul %43, %45, %cst_80 {dimension_numbers = #tpu.dot_dimension_numbers<[1], [0], [0], [1], [0, 0, 1, 1], [], []>} : vector<144x80xbf16>, vector<80x128xbf16>, vector<144x128xf32> -> vector<144x128xf32>
    %47 = arith.addf %36, %46 : vector<144x128xf32>
    %c4_81 = arith.constant 4 : index
    %c0_82 = arith.constant 0 : index
    %c0_83 = arith.constant 0 : index
    %48 = vector.load %arg5[%c4_81, %c0_82, %c0_83] : memref<16x16x16xbf16, #tpu.memory_space<vmem>>, vector<12x12x16xbf16>
    %c4_84 = arith.constant 4 : index
    %c1_85 = arith.constant 1 : index
    %c0_86 = arith.constant 0 : index
    %49 = vector.load %arg5[%c4_84, %c1_85, %c0_86] : memref<16x16x16xbf16, #tpu.memory_space<vmem>>, vector<12x12x16xbf16>
    %c4_87 = arith.constant 4 : index
    %c2_88 = arith.constant 2 : index
    %c0_89 = arith.constant 0 : index
    %50 = vector.load %arg5[%c4_87, %c2_88, %c0_89] : memref<16x16x16xbf16, #tpu.memory_space<vmem>>, vector<12x12x16xbf16>
    %c4_90 = arith.constant 4 : index
    %c3_91 = arith.constant 3 : index
    %c0_92 = arith.constant 0 : index
    %51 = vector.load %arg5[%c4_90, %c3_91, %c0_92] : memref<16x16x16xbf16, #tpu.memory_space<vmem>>, vector<12x12x16xbf16>
    %c4_93 = arith.constant 4 : index
    %c4_94 = arith.constant 4 : index
    %c0_95 = arith.constant 0 : index
    %52 = vector.load %arg5[%c4_93, %c4_94, %c0_95] : memref<16x16x16xbf16, #tpu.memory_space<vmem>>, vector<12x12x16xbf16>
    %53 = tpu.concatenate %48, %49, %50, %51, %52 in 2 : vector<12x12x16xbf16>, vector<12x12x16xbf16>, vector<12x12x16xbf16>, vector<12x12x16xbf16>, vector<12x12x16xbf16> -> vector<12x12x80xbf16>
    %54 = vector.shape_cast %53 : vector<12x12x80xbf16> to vector<144x80xbf16>
    %c4_96 = arith.constant 4 : index
    %c0_97 = arith.constant 0 : index
    %c0_98 = arith.constant 0 : index
    %55 = vector.load %arg2[%c4_96, %c0_97, %c0_98] : memref<5x80x128xbf16, #tpu.memory_space<vmem>>, vector<1x80x128xbf16>
    %56 = vector.shape_cast %55 : vector<1x80x128xbf16> to vector<80x128xbf16>
    %cst_99 = arith.constant dense<0.000000e+00> : vector<144x128xf32>
    %57 = tpu.matmul %54, %56, %cst_99 {dimension_numbers = #tpu.dot_dimension_numbers<[1], [0], [0], [1], [0, 0, 1, 1], [], []>} : vector<144x80xbf16>, vector<80x128xbf16>, vector<144x128xf32> -> vector<144x128xf32>
    %58 = arith.addf %47, %57 : vector<144x128xf32>
    %c0_100 = arith.constant 0 : index
    %c0_101 = arith.constant 0 : index
    %c0_102 = arith.constant 0 : index
    %59 = vector.load %arg3[%c0_100, %c0_101, %c0_102] : memref<1x144x128xf32, #tpu.memory_space<vmem>>, vector<1x144x128xf32>
    %60 = vector.shape_cast %59 : vector<1x144x128xf32> to vector<144x128xf32>
    %61 = vector.shape_cast %58 : vector<144x128xf32> to vector<1x144x128xf32>
    tpu.vector_store %arg3[%c0_100, %c0_101, %c0_102], %61 {strides = array<i32>} : memref<1x144x128xf32, #tpu.memory_space<vmem>>, vector<1x144x128xf32>,
    %cst_103 = arith.constant dense<0.000000e+00> : vector<128xf32>
    %62 = vector.multi_reduction <add>, %58, %cst_103 [0] : vector<144x128xf32> to vector<128xf32>
    %63 = vector.shape_cast %62 : vector<128xf32> to vector<1x128xf32>
    %64 = arith.mulf %58, %58 : vector<144x128xf32>
    %cst_104 = arith.constant dense<0.000000e+00> : vector<128xf32>
    %65 = vector.multi_reduction <add>, %64, %cst_104 [0] : vector<144x128xf32> to vector<128xf32>
    %66 = vector.shape_cast %65 : vector<128xf32> to vector<1x128xf32>
    %67 = tpu.concatenate %63, %66 in 0 : vector<1x128xf32>, vector<1x128xf32> -> vector<2x128xf32>
    %c0_105 = arith.constant 0 : index
    %c0_106 = arith.constant 0 : index
    %c0_107 = arith.constant 0 : index
    %68 = vector.load %arg4[%c0_105, %c0_106, %c0_107] : memref<1x2x128xf32, #tpu.memory_space<vmem>>, vector<1x2x128xf32>
    %69 = vector.shape_cast %68 : vector<1x2x128xf32> to vector<2x128xf32>
    %70 = vector.shape_cast %67 : vector<2x128xf32> to vector<1x2x128xf32>
    tpu.vector_store %arg4[%c0_105, %c0_106, %c0_107], %70 {strides = array<i32>} : memref<1x2x128xf32, #tpu.memory_space<vmem>>, vector<1x2x128xf32>,
    return
  }
  func.func @transform_0(%arg0: i32) -> (i32, i32, i32, i32) {
    %c0_i32 = arith.constant 0 : i32
    %c0_i32_0 = arith.constant 0 : i32
    %c0_i32_1 = arith.constant 0 : i32
    %c0_i32_2 = arith.constant 0 : i32
    return %arg0, %c0_i32, %c0_i32_0, %c0_i32_1 : i32, i32, i32, i32
  }
  func.func @transform_1(%arg0: i32) -> (i32, i32, i32) {
    %c0_i32 = arith.constant 0 : i32
    %c0_i32_0 = arith.constant 0 : i32
    %c0_i32_1 = arith.constant 0 : i32
    %c0_i32_2 = arith.constant 0 : i32
    return %c0_i32, %c0_i32_0, %c0_i32_1 : i32, i32, i32
  }
  func.func @transform_2(%arg0: i32) -> (i32, i32, i32) {
    %c0_i32 = arith.constant 0 : i32
    %c0_i32_0 = arith.constant 0 : i32
    %c0_i32_1 = arith.constant 0 : i32
    return %arg0, %c0_i32, %c0_i32_0 : i32, i32, i32
  }
  func.func @transform_3(%arg0: i32) -> (i32, i32, i32) {
    %c0_i32 = arith.constant 0 : i32
    %c0_i32_0 = arith.constant 0 : i32
    %c0_i32_1 = arith.constant 0 : i32
    return %arg0, %c0_i32, %c0_i32_0 : i32, i32, i32
  }
}

</mosaic_0001>

<llo_original>
// kernel: _conv_bn_fused.1
$region0: #{_conv_bn_fused.1}
  #allocation0 [shape = 'u32[]', space=smem, size = 0x4, offset = 0x4, fixed_abs, tag = 'smem constant byte address 0x4 - core index']
  #allocation1 [shape = 'u32[144,128]{1,0:T(1,128)}', space=vmem, size = 0x12000, scoped, tag = 'internal scratch']
  #allocation2 [shape = 'bf16[16,16,16]{2,1,0:T(16,128)(2,1)}', space=vmem, size = 0x10000, scoped, tag = 'scratch operand']
  %s0 = inlined_call_operand.vmem [shape: bf16[2,8,8,16], index: 0, kind: input, shape index: {}]
  %s1 = inlined_call_operand.hbm [shape: bf16[5,80,128], index: 1, kind: input, shape index: {}]
  %s2 = inlined_call_operand.vmem [shape: f32[2,144,128], index: 2, kind: output, shape index: {0}]
  %s3 = inlined_call_operand.vmem [shape: f32[2,2,128], index: 3, kind: output, shape index: {1}]
  %4 = xla_tuple %s2, %s3
  %s5 = sld [smem:[#allocation0]]
  $region53: #{_conv_bn_fused.1} parent=0
    _
  %s7 = ssub.s32 1, %s5
  %s8 = scalar_select 0, %s7, %s5
  $region1: #{_conv_bn_fused.1} parent=0
    #allocation3 [shape = 'u8[102400]{0}', space=vmem, size = 0x19000, scoped, tag = 'input window, operand 1, single buffered']
    #allocation4 [shape = 's32[2]{0}', space=sflag, size = 0x8, scoped, tag = 'scoped memory for _conv_bn_fused.1']
    %9 = vsyncpa [#allocation4], 0
    loop: start=0, step=1, limit=4
    $region2: #{_conv_bn_fused.1} parent=1 // loop_pre_header
      _
    $region3: #{_conv_bn_fused.1} parent=1 // loop_header
      %s11 = sphi 0, %s15
      %p12 = scmp.ge.s32.totalorder %s11, 4
      %s21 = sphi 0, %s23
      %s24 = sphi 0, %s21
      %s25 = sphi 0, %s24
      %s41 = sphi 0, %s25
      %s45 = sphi 0, %s45
      %s47 = sphi 0, %s45
      %s48 = sphi 0, %s47
      %s62 = sphi 0, %s48
      %s68 = sphi 0, %s70
      %s71 = sphi 0, %s68
      %s72 = sphi 0, %s71
      %s88 = sphi 0, %s72
      %s94 = sphi 0, %s96
      %s97 = sphi 0, %s94
      %s98 = sphi 0, %s97
      %s114 = sphi 0, %s98
    $region4: #{_conv_bn_fused.1} parent=1 // loop_header_branch
      %14 = sbr.rel (%p12) target = $region8
    $region5: #{_conv_bn_fused.1} parent=1 // loop_body
      %s16 = ssub.s32 %s11, 1
      %s17 = ssub.s32 %s11, 2
      %s18 = sadd.s32 %s11, 1
      %s19 = ssub.s32 %s11, %s18
      %p20 = scmp.eq.s32.totalorder %s19, 0
      %s22 = sadd.s32 %s21, 1
      %s23 = scalar_select %p20, %s21, %s22
      %p26 = pneg %p20
      %p27 = scmp.eq.s32.totalorder %s11, 1
      %p28 = por %p26, %p27
      %p29 = scmp.ne.s32.totalorder %s21, %s24
      %p30 = scmp.eq.s32.totalorder %s11, 0
      %p31 = por %p29, %p30
      %p32 = scmp.ne.s32.totalorder %s21, %s24
      %p33 = scmp.eq.s32.totalorder %s16, 1
      %p34 = por %p32, %p33
      %p35 = scmp.ne.s32.totalorder %s24, %s25
      %p36 = scmp.eq.s32.totalorder %s16, 0
      %p37 = por %p35, %p36
      %p38 = scmp.ne.s32.totalorder %s24, %s25
      %p39 = scmp.eq.s32.totalorder %s17, 1
      %p40 = por %p38, %p39
      %p42 = scmp.ne.s32.totalorder %s25, %s41
      %p43 = scmp.eq.s32.totalorder %s17, 0
      %p44 = por %p42, %p43
      %s46 = sadd.s32 %s45, 1
      %p49 = scmp.eq.s32.totalorder %s11, 1
      %p50 = scmp.ne.s32.totalorder %s45, %s47
      %p51 = scmp.eq.s32.totalorder %s11, 0
      %p52 = por %p50, %p51
      %p53 = scmp.ne.s32.totalorder %s45, %s47
      %p54 = scmp.eq.s32.totalorder %s16, 1
      %p55 = por %p53, %p54
      %p56 = scmp.ne.s32.totalorder %s47, %s48
      %p57 = scmp.eq.s32.totalorder %s16, 0
      %p58 = por %p56, %p57
      %p59 = scmp.ne.s32.totalorder %s47, %s48
      %p60 = scmp.eq.s32.totalorder %s17, 1
      %p61 = por %p59, %p60
      %p63 = scmp.ne.s32.totalorder %s48, %s62
      %p64 = scmp.eq.s32.totalorder %s17, 0
      %p65 = por %p63, %p64
      %s66 = ssub.s32 %s11, %s18
      %p67 = scmp.eq.s32.totalorder %s66, 0
      %s69 = sadd.s32 %s68, 1
      %s70 = scalar_select %p67, %s68, %s69
      %p73 = pneg %p67
      %p74 = scmp.eq.s32.totalorder %s11, 1
      %p75 = por %p73, %p74
      %p76 = scmp.ne.s32.totalorder %s68, %s71
      %p77 = scmp.eq.s32.totalorder %s11, 0
      %p78 = por %p76, %p77
      %p79 = scmp.ne.s32.totalorder %s68, %s71
      %p80 = scmp.eq.s32.totalorder %s16, 1
      %p81 = por %p79, %p80
      %p82 = scmp.ne.s32.totalorder %s71, %s72
      %p83 = scmp.eq.s32.totalorder %s16, 0
      %p84 = por %p82, %p83
      %p85 = scmp.ne.s32.totalorder %s71, %s72
      %p86 = scmp.eq.s32.totalorder %s17, 1
      %p87 = por %p85, %p86
      %p89 = scmp.ne.s32.totalorder %s72, %s88
      %p90 = scmp.eq.s32.totalorder %s17, 0
      %p91 = por %p89, %p90
      %s92 = ssub.s32 %s11, %s18
      %p93 = scmp.eq.s32.totalorder %s92, 0
      %s95 = sadd.s32 %s94, 1
      %s96 = scalar_select %p93, %s94, %s95
      %p99 = pneg %p93
      %p100 = scmp.eq.s32.totalorder %s11, 1
      %p101 = por %p99, %p100
      %p102 = scmp.ne.s32.totalorder %s94, %s97
      %p103 = scmp.eq.s32.totalorder %s11, 0
      %p104 = por %p102, %p103
      %p105 = scmp.ne.s32.totalorder %s94, %s97
      %p106 = scmp.eq.s32.totalorder %s16, 1
      %p107 = por %p105, %p106
      %p108 = scmp.ne.s32.totalorder %s97, %s98
      %p109 = scmp.eq.s32.totalorder %s16, 0
      %p110 = por %p108, %p109
      %p111 = scmp.ne.s32.totalorder %s97, %s98
      %p112 = scmp.eq.s32.totalorder %s17, 1
      %p113 = por %p111, %p112
      %p115 = scmp.ne.s32.totalorder %s98, %s114
      %p116 = scmp.eq.s32.totalorder %s17, 0
      %p117 = por %p115, %p116
      %p118 = scmp.le.s32.totalorder 1, %s11
      %p119 = scmp.lt.s32.totalorder %s11, 3
      %p120 = pnand %p118, %p119
      %p121 = pneg %p120
      // Predicated region
      $region9: #{_conv_bn_fused.1} parent=5 // pred_check
        _
      $region10: #{_conv_bn_fused.1} parent=5 // pred_check_branch
        %123 = sbr.rel (%p120) target = $region12
      $region11: #{_conv_bn_fused.1} parent=5 // pred_region
        %s124 = ssub.s32 %s11, 1
        // Predicated region
        $region13: #{_conv_bn_fused.1} parent=11 // pred_check
          %p125 = pneg %p58
        $region14: #{_conv_bn_fused.1} parent=11 // pred_check_branch
          %127 = sbr.rel (%p125) target = $region16
        $region15: #{_conv_bn_fused.1} parent=11 // pred_region
          %s129 = ssub.s32 3200, 3200
          %130 = vsyncadd [#allocation4], %s129
          %s131 = sshll.u32 [#allocation3], 4
          %s132 = int_to_ptr.vmem [resolvable:$true] %s131
          %137 = dma.hbm_to_vmem [thread:$0]  %s1, 3200, %s132, [#allocation4], 64, 64, 4
        $region16: #{_conv_bn_fused.1} parent=11 // pred_fallthru
          _
      $region12: #{_conv_bn_fused.1} parent=5 // pred_fallthru
        _
      %p138 = scmp.lt.s32.totalorder %s11, 2
      // Predicated region
      $region17: #{_conv_bn_fused.1} parent=5 // pred_check
        %p139 = pneg %p138
      $region18: #{_conv_bn_fused.1} parent=5 // pred_check_branch
        %141 = sbr.rel (%p139) target = $region20
      $region19: #{_conv_bn_fused.1} parent=5 // pred_region
        // Predicated region
        $region21: #{_conv_bn_fused.1} parent=19 // pred_check
          %p142 = pneg %p31
        $region22: #{_conv_bn_fused.1} parent=19 // pred_check_branch
          %144 = sbr.rel (%p142) target = $region24
        $region23: #{_conv_bn_fused.1} parent=19 // pred_region
          %p145 = scmp.lt.s32.totalorder %s11, 1
          %s146 = scalar_select %p145, %s11, 1
          %s147 = smul.addr %s146, 8
          %s148 = smul.addr %s147, 4
          %s149 = scalar_lea.vmem %s0, %s148
        $region24: #{_conv_bn_fused.1} parent=19 // pred_fallthru
          _
      $region20: #{_conv_bn_fused.1} parent=5 // pred_fallthru
        _
      %p150 = scmp.le.s32.totalorder 1, %s11
      %p151 = scmp.lt.s32.totalorder %s11, 3
      %p152 = pnand %p150, %p151
      %p153 = pneg %p152
      // Predicated region
      $region25: #{_conv_bn_fused.1} parent=5 // pred_check
        _
      $region26: #{_conv_bn_fused.1} parent=5 // pred_check_branch
        %155 = sbr.rel (%p152) target = $region28
      $region27: #{_conv_bn_fused.1} parent=5 // pred_region
        %s156 = ssub.s32 %s11, 1
        // Predicated region
        $region29: #{_conv_bn_fused.1} parent=27 // pred_check
          %p157 = pneg %p58
        $region30: #{_conv_bn_fused.1} parent=27 // pred_check_branch
          %159 = sbr.rel (%p157) target = $region32
        $region31: #{_conv_bn_fused.1} parent=27 // pred_region
          %160 = dma.done [#allocation4], 3200
        $region32: #{_conv_bn_fused.1} parent=27 // pred_fallthru
          _
        %p161 = scmp.lt.s32.totalorder %s16, 1
        %s162 = scalar_select %p161, %s16, 1
        %s163 = smul.addr %s162, 8
        %s164 = smul.addr %s163, 4
        %s165 = scalar_lea.vmem %s0, %s164
        %p166 = pneg %p37
        %p167 = pneg %p34
        %p168 = pneg %p58
        %p169 = pneg %p55
        %p170 = pneg %p84
        %p171 = pneg %p81
        %p172 = scmp.lt.s32.totalorder %s16, 1
        %s173 = scalar_select %p172, %s16, 1
        %s174 = smul.addr %s173, 18
        %s175 = smul.addr %s174, 8
        %s176 = scalar_lea.vmem %s2, %s175
        %p177 = pneg %p110
        %p178 = pneg %p107
        %p179 = scmp.lt.s32.totalorder %s16, 1
        %s180 = scalar_select %p179, %s16, 1
        %s181 = smul.addr %s180, 2
        %s182 = scalar_lea.vmem %s3, %s181
        %p183 = scmp.lt.s32.totalorder %s16, 1
        %s184 = scalar_select %p183, %s16, 1
        %s185 = smul.addr %s184, 8
        %s186 = smul.addr %s185, 4
        %s187 = scalar_lea.vmem %s0, %s186
        %p188 = scmp.lt.s32.totalorder %s16, 1
        %s189 = scalar_select %p188, %s16, 1
        %s190 = smul.addr %s189, 18
        %s191 = smul.addr %s190, 8
        %s192 = scalar_lea.vmem %s2, %s191
        %p193 = scmp.lt.s32.totalorder %s16, 1
        %s194 = scalar_select %p193, %s16, 1
        %s195 = smul.addr %s194, 2
        %s196 = scalar_lea.vmem %s3, %s195
        %vm198 = vcmask 130048
        %199 = vst.msk [vmem:[#allocation2] sm:$0xff] %vm198, 0
        %200 = vst.msk [vmem:[#allocation2 + $0x8] sm:$0xff] %vm198, 0
        %201 = vst.msk [vmem:[#allocation2 + $0x10] sm:$0xff] %vm198, 0
        %202 = vst.msk [vmem:[#allocation2 + $0x18] sm:$0xff] %vm198, 0
        %203 = vst.msk [vmem:[#allocation2 + $0x20] sm:$0xff] %vm198, 0
        %204 = vst.msk [vmem:[#allocation2 + $0x28] sm:$0xff] %vm198, 0
        %205 = vst.msk [vmem:[#allocation2 + $0x30] sm:$0xff] %vm198, 0
        %206 = vst.msk [vmem:[#allocation2 + $0x38] sm:$0xff] %vm198, 0
        %207 = vst.msk [vmem:[#allocation2 + $0x40] sm:$0xff] %vm198, 0
        %208 = vst.msk [vmem:[#allocation2 + $0x48] sm:$0xff] %vm198, 0
        %209 = vst.msk [vmem:[#allocation2 + $0x50] sm:$0xff] %vm198, 0
        %210 = vst.msk [vmem:[#allocation2 + $0x58] sm:$0xff] %vm198, 0
        %211 = vst.msk [vmem:[#allocation2 + $0x60] sm:$0xff] %vm198, 0
        %212 = vst.msk [vmem:[#allocation2 + $0x68] sm:$0xff] %vm198, 0
        %213 = vst.msk [vmem:[#allocation2 + $0x70] sm:$0xff] %vm198, 0
        %214 = vst.msk [vmem:[#allocation2 + $0x78] sm:$0xff] %vm198, 0
        %v215 = vld [vmem:[%s187] sm:$0xf]
        %v216 = vld [vmem:[%s187 + $0x4] sm:$0xf]
        %v217 = vld [vmem:[%s187 + $0x8] sm:$0xf]
        %v218 = vld [vmem:[%s187 + $0xc] sm:$0xf]
        %v219 = vld [vmem:[%s187 + $0x10] sm:$0xf]
        %v220 = vld [vmem:[%s187 + $0x14] sm:$0xf]
        %v221 = vld [vmem:[%s187 + $0x18] sm:$0xf]
        %v222 = vld [vmem:[%s187 + $0x1c] sm:$0xf]
        %v231 = vunpack.c.l.b16 %v215
        %v232 = vunpack.c.l.b16 %v216
        %v233 = vunpack.c.l.b16 %v217
        %v234 = vunpack.c.l.b16 %v218
        %v235 = vunpack.c.l.b16 %v219
        %v236 = vunpack.c.l.b16 %v220
        %v237 = vunpack.c.l.b16 %v221
        %v238 = vunpack.c.l.b16 %v222
        %v239 = vpack.c.b16 %v231, %v231
        %v240 = vpack.c.b16 %v232, %v232
        %v241 = vpack.c.b16 %v233, %v233
        %v242 = vpack.c.b16 %v234, %v234
        %v243 = vpack.c.b16 %v235, %v235
        %v244 = vpack.c.b16 %v236, %v236
        %v245 = vpack.c.b16 %v237, %v237
        %v246 = vpack.c.b16 %v238, %v238
        %v247 = vrot.slane %v239, 6
        %v248 = vrot.slane %v240, 6
        %v249 = vrot.slane %v241, 6
        %v250 = vrot.slane %v242, 6
        %v251 = vrot.slane %v243, 6
        %v252 = vrot.slane %v244, 6
        %v253 = vrot.slane %v245, 6
        %v254 = vrot.slane %v246, 6
        %s263 = scalar_lea.vmem [#allocation2], 32
        %vm264 = vcmask 128002
        %265 = vst.msk [vmem:[%s263] sm:$0x3c] %vm264, %v247
        %266 = vst.msk [vmem:[%s263 + $0x8] sm:$0x3c] %vm264, %v248
        %267 = vst.msk [vmem:[%s263 + $0x10] sm:$0x3c] %vm264, %v249
        %268 = vst.msk [vmem:[%s263 + $0x18] sm:$0x3c] %vm264, %v250
        %269 = vst.msk [vmem:[%s263 + $0x20] sm:$0x3c] %vm264, %v251
        %270 = vst.msk [vmem:[%s263 + $0x28] sm:$0x3c] %vm264, %v252
        %271 = vst.msk [vmem:[%s263 + $0x30] sm:$0x3c] %vm264, %v253
        %272 = vst.msk [vmem:[%s263 + $0x38] sm:$0x3c] %vm264, %v254
        %v273 = vld [vmem:[#allocation2] sm:$0x3f]
        %v274 = vld [vmem:[#allocation2 + $0x8] sm:$0x3f]
        %v275 = vld [vmem:[#allocation2 + $0x10] sm:$0x3f]
        %v276 = vld [vmem:[#allocation2 + $0x18] sm:$0x3f]
        %v277 = vld [vmem:[#allocation2 + $0x20] sm:$0x3f]
        %v278 = vld [vmem:[#allocation2 + $0x28] sm:$0x3f]
        %v279 = vld [vmem:[#allocation2 + $0x30] sm:$0x3f]
        %v280 = vld [vmem:[#allocation2 + $0x38] sm:$0x3f]
        %v281 = vld [vmem:[#allocation2 + $0x40] sm:$0x3f]
        %v282 = vld [vmem:[#allocation2 + $0x48] sm:$0x3f]
        %v283 = vld [vmem:[#allocation2 + $0x50] sm:$0x3f]
        %v284 = vld [vmem:[#allocation2 + $0x58] sm:$0x3f]
        %v285 = vld [vmem:[#allocation2] sm:$0x7f]
        %v286 = vld [vmem:[#allocation2 + $0x8] sm:$0x7f]
        %v287 = vld [vmem:[#allocation2 + $0x10] sm:$0x7f]
        %v288 = vld [vmem:[#allocation2 + $0x18] sm:$0x7f]
        %v289 = vld [vmem:[#allocation2 + $0x20] sm:$0x7f]
        %v290 = vld [vmem:[#allocation2 + $0x28] sm:$0x7f]
        %v291 = vld [vmem:[#allocation2 + $0x30] sm:$0x7f]
        %v292 = vld [vmem:[#allocation2 + $0x38] sm:$0x7f]
        %v293 = vld [vmem:[#allocation2 + $0x40] sm:$0x7f]
        %v294 = vld [vmem:[#allocation2 + $0x48] sm:$0x7f]
        %v295 = vld [vmem:[#allocation2 + $0x50] sm:$0x7f]
        %v296 = vld [vmem:[#allocation2 + $0x58] sm:$0x7f]
        %v297 = vld [vmem:[#allocation2] sm:$0x7e]
        %v298 = vld [vmem:[#allocation2 + $0x8] sm:$0x7e]
        %v299 = vld [vmem:[#allocation2 + $0x10] sm:$0x7e]
        %v300 = vld [vmem:[#allocation2 + $0x18] sm:$0x7e]
        %v301 = vld [vmem:[#allocation2 + $0x20] sm:$0x7e]
        %v302 = vld [vmem:[#allocation2 + $0x28] sm:$0x7e]
        %v303 = vld [vmem:[#allocation2 + $0x30] sm:$0x7e]
        %v304 = vld [vmem:[#allocation2 + $0x38] sm:$0x7e]
        %v305 = vld [vmem:[#allocation2 + $0x40] sm:$0x7e]
        %v306 = vld [vmem:[#allocation2 + $0x48] sm:$0x7e]
        %v307 = vld [vmem:[#allocation2 + $0x50] sm:$0x7e]
        %v308 = vld [vmem:[#allocation2 + $0x58] sm:$0x7e]
        %v309 = vld [vmem:[#allocation2] sm:$0xfe]
        %v310 = vld [vmem:[#allocation2 + $0x8] sm:$0xfe]
        %v311 = vld [vmem:[#allocation2 + $0x10] sm:$0xfe]
        %v312 = vld [vmem:[#allocation2 + $0x18] sm:$0xfe]
        %v313 = vld [vmem:[#allocation2 + $0x20] sm:$0xfe]
        %v314 = vld [vmem:[#allocation2 + $0x28] sm:$0xfe]
        %v315 = vld [vmem:[#allocation2 + $0x30] sm:$0xfe]
        %v316 = vld [vmem:[#allocation2 + $0x38] sm:$0xfe]
        %v317 = vld [vmem:[#allocation2 + $0x40] sm:$0xfe]
        %v318 = vld [vmem:[#allocation2 + $0x48] sm:$0xfe]
        %v319 = vld [vmem:[#allocation2 + $0x50] sm:$0xfe]
        %v320 = vld [vmem:[#allocation2 + $0x58] sm:$0xfe]
        %v321 = vld [vmem:[#allocation2] sm:$0xfc]
        %v322 = vld [vmem:[#allocation2 + $0x8] sm:$0xfc]
        %v323 = vld [vmem:[#allocation2 + $0x10] sm:$0xfc]
        %v324 = vld [vmem:[#allocation2 + $0x18] sm:$0xfc]
        %v325 = vld [vmem:[#allocation2 + $0x20] sm:$0xfc]
        %v326 = vld [vmem:[#allocation2 + $0x28] sm:$0xfc]
        %v327 = vld [vmem:[#allocation2 + $0x30] sm:$0xfc]
        %v328 = vld [vmem:[#allocation2 + $0x38] sm:$0xfc]
        %v329 = vld [vmem:[#allocation2 + $0x40] sm:$0xfc]
        %v330 = vld [vmem:[#allocation2 + $0x48] sm:$0xfc]
        %v331 = vld [vmem:[#allocation2 + $0x50] sm:$0xfc]
        %v332 = vld [vmem:[#allocation2 + $0x58] sm:$0xfc]
        %v334 = vshrl.u32 %v285, 16
        %v336 = vshll.u32 %v285, 16
        %v338 = vrot.slane %v336, 1
        %v339 = vor.u32 %v334, %v338
        %v341 = vshrl.u32 %v286, 16
        %v343 = vshll.u32 %v286, 16
        %v345 = vrot.slane %v343, 1
        %v346 = vor.u32 %v341, %v345
        %v348 = vshrl.u32 %v287, 16
        %v350 = vshll.u32 %v287, 16
        %v352 = vrot.slane %v350, 1
        %v353 = vor.u32 %v348, %v352
        %v355 = vshrl.u32 %v288, 16
        %v357 = vshll.u32 %v288, 16
        %v359 = vrot.slane %v357, 1
        %v360 = vor.u32 %v355, %v359
        %v362 = vshrl.u32 %v289, 16
        %v364 = vshll.u32 %v289, 16
        %v366 = vrot.slane %v364, 1
        %v367 = vor.u32 %v362, %v366
        %v369 = vshrl.u32 %v290, 16
        %v371 = vshll.u32 %v290, 16
        %v373 = vrot.slane %v371, 1
        %v374 = vor.u32 %v369, %v373
        %v376 = vshrl.u32 %v291, 16
        %v378 = vshll.u32 %v291, 16
        %v380 = vrot.slane %v378, 1
        %v381 = vor.u32 %v376, %v380
        %v383 = vshrl.u32 %v292, 16
        %v385 = vshll.u32 %v292, 16
        %v387 = vrot.slane %v385, 1
        %v388 = vor.u32 %v383, %v387
        %v390 = vshrl.u32 %v293, 16
        %v392 = vshll.u32 %v293, 16
        %v394 = vrot.slane %v392, 1
        %v395 = vor.u32 %v390, %v394
        %v397 = vshrl.u32 %v294, 16
        %v399 = vshll.u32 %v294, 16
        %v401 = vrot.slane %v399, 1
        %v402 = vor.u32 %v397, %v401
        %v404 = vshrl.u32 %v295, 16
        %v406 = vshll.u32 %v295, 16
        %v408 = vrot.slane %v406, 1
        %v409 = vor.u32 %v404, %v408
        %v411 = vshrl.u32 %v296, 16
        %v413 = vshll.u32 %v296, 16
        %v415 = vrot.slane %v413, 1
        %v416 = vor.u32 %v411, %v415
        %417 = vrot.lane.b32.xlu0 %v339, 16
        %v418 = vpop.permute.xlu0 %417
        %419 = vrot.lane.b32.xlu0 %v346, 16
        %v420 = vpop.permute.xlu0 %419
        %421 = vrot.lane.b32.xlu0 %v353, 16
        %v422 = vpop.permute.xlu0 %421
        %423 = vrot.lane.b32.xlu0 %v360, 16
        %v424 = vpop.permute.xlu0 %423
        %425 = vrot.lane.b32.xlu0 %v367, 16
        %v426 = vpop.permute.xlu0 %425
        %427 = vrot.lane.b32.xlu0 %v374, 16
        %v428 = vpop.permute.xlu0 %427
        %429 = vrot.lane.b32.xlu0 %v381, 16
        %v430 = vpop.permute.xlu0 %429
        %431 = vrot.lane.b32.xlu0 %v388, 16
        %v432 = vpop.permute.xlu0 %431
        %433 = vrot.lane.b32.xlu0 %v395, 16
        %v434 = vpop.permute.xlu0 %433
        %435 = vrot.lane.b32.xlu0 %v402, 16
        %v436 = vpop.permute.xlu0 %435
        %437 = vrot.lane.b32.xlu0 %v409, 16
        %v438 = vpop.permute.xlu0 %437
        %439 = vrot.lane.b32.xlu0 %v416, 16
        %v440 = vpop.permute.xlu0 %439
        %v453 = vrot.slane %v297, 1
        %v454 = vrot.slane %v298, 1
        %v455 = vrot.slane %v299, 1
        %v456 = vrot.slane %v300, 1
        %v457 = vrot.slane %v301, 1
        %v458 = vrot.slane %v302, 1
        %v459 = vrot.slane %v303, 1
        %v460 = vrot.slane %v304, 1
        %v461 = vrot.slane %v305, 1
        %v462 = vrot.slane %v306, 1
        %v463 = vrot.slane %v307, 1
        %v464 = vrot.slane %v308, 1
        %465 = vrot.lane.b32.xlu0 %v453, 32
        %v466 = vpop.permute.xlu0 %465
        %467 = vrot.lane.b32.xlu0 %v454, 32
        %v468 = vpop.permute.xlu0 %467
        %469 = vrot.lane.b32.xlu0 %v455, 32
        %v470 = vpop.permute.xlu0 %469
        %471 = vrot.lane.b32.xlu0 %v456, 32
        %v472 = vpop.permute.xlu0 %471
        %473 = vrot.lane.b32.xlu0 %v457, 32
        %v474 = vpop.permute.xlu0 %473
        %475 = vrot.lane.b32.xlu0 %v458, 32
        %v476 = vpop.permute.xlu0 %475
        %477 = vrot.lane.b32.xlu0 %v459, 32
        %v478 = vpop.permute.xlu0 %477
        %479 = vrot.lane.b32.xlu0 %v460, 32
        %v480 = vpop.permute.xlu0 %479
        %481 = vrot.lane.b32.xlu0 %v461, 32
        %v482 = vpop.permute.xlu0 %481
        %483 = vrot.lane.b32.xlu0 %v462, 32
        %v484 = vpop.permute.xlu0 %483
        %485 = vrot.lane.b32.xlu0 %v463, 32
        %v486 = vpop.permute.xlu0 %485
        %487 = vrot.lane.b32.xlu0 %v464, 32
        %v488 = vpop.permute.xlu0 %487
        %v490 = vshrl.u32 %v309, 16
        %v492 = vrot.slane %v490, 1
        %v493 = vshll.u32 %v309, 16
        %v495 = vrot.slane %v493, 2
        %v496 = vor.u32 %v492, %v495
        %v498 = vshrl.u32 %v310, 16
        %v500 = vrot.slane %v498, 1
        %v501 = vshll.u32 %v310, 16
        %v503 = vrot.slane %v501, 2
        %v504 = vor.u32 %v500, %v503
        %v506 = vshrl.u32 %v311, 16
        %v508 = vrot.slane %v506, 1
        %v509 = vshll.u32 %v311, 16
        %v511 = vrot.slane %v509, 2
        %v512 = vor.u32 %v508, %v511
        %v514 = vshrl.u32 %v312, 16
        %v516 = vrot.slane %v514, 1
        %v517 = vshll.u32 %v312, 16
        %v519 = vrot.slane %v517, 2
        %v520 = vor.u32 %v516, %v519
        %v522 = vshrl.u32 %v313, 16
        %v524 = vrot.slane %v522, 1
        %v525 = vshll.u32 %v313, 16
        %v527 = vrot.slane %v525, 2
        %v528 = vor.u32 %v524, %v527
        %v530 = vshrl.u32 %v314, 16
        %v532 = vrot.slane %v530, 1
        %v533 = vshll.u32 %v314, 16
        %v535 = vrot.slane %v533, 2
        %v536 = vor.u32 %v532, %v535
        %v538 = vshrl.u32 %v315, 16
        %v540 = vrot.slane %v538, 1
        %v541 = vshll.u32 %v315, 16
        %v543 = vrot.slane %v541, 2
        %v544 = vor.u32 %v540, %v543
        %v546 = vshrl.u32 %v316, 16
        %v548 = vrot.slane %v546, 1
        %v549 = vshll.u32 %v316, 16
        %v551 = vrot.slane %v549, 2
        %v552 = vor.u32 %v548, %v551
        %v554 = vshrl.u32 %v317, 16
        %v556 = vrot.slane %v554, 1
        %v557 = vshll.u32 %v317, 16
        %v559 = vrot.slane %v557, 2
        %v560 = vor.u32 %v556, %v559
        %v562 = vshrl.u32 %v318, 16
        %v564 = vrot.slane %v562, 1
        %v565 = vshll.u32 %v318, 16
        %v567 = vrot.slane %v565, 2
        %v568 = vor.u32 %v564, %v567
        %v570 = vshrl.u32 %v319, 16
        %v572 = vrot.slane %v570, 1
        %v573 = vshll.u32 %v319, 16
        %v575 = vrot.slane %v573, 2
        %v576 = vor.u32 %v572, %v575
        %v578 = vshrl.u32 %v320, 16
        %v580 = vrot.slane %v578, 1
        %v581 = vshll.u32 %v320, 16
        %v583 = vrot.slane %v581, 2
        %v584 = vor.u32 %v580, %v583
        %585 = vrot.lane.b32.xlu0 %v496, 48
        %v586 = vpop.permute.xlu0 %585
        %587 = vrot.lane.b32.xlu0 %v504, 48
        %v588 = vpop.permute.xlu0 %587
        %589 = vrot.lane.b32.xlu0 %v512, 48
        %v590 = vpop.permute.xlu0 %589
        %591 = vrot.lane.b32.xlu0 %v520, 48
        %v592 = vpop.permute.xlu0 %591
        %593 = vrot.lane.b32.xlu0 %v528, 48
        %v594 = vpop.permute.xlu0 %593
        %595 = vrot.lane.b32.xlu0 %v536, 48
        %v596 = vpop.permute.xlu0 %595
        %597 = vrot.lane.b32.xlu0 %v544, 48
        %v598 = vpop.permute.xlu0 %597
        %599 = vrot.lane.b32.xlu0 %v552, 48
        %v600 = vpop.permute.xlu0 %599
        %601 = vrot.lane.b32.xlu0 %v560, 48
        %v602 = vpop.permute.xlu0 %601
        %603 = vrot.lane.b32.xlu0 %v568, 48
        %v604 = vpop.permute.xlu0 %603
        %605 = vrot.lane.b32.xlu0 %v576, 48
        %v606 = vpop.permute.xlu0 %605
        %607 = vrot.lane.b32.xlu0 %v584, 48
        %v608 = vpop.permute.xlu0 %607
        %v621 = vrot.slane %v321, 2
        %v622 = vrot.slane %v322, 2
        %v623 = vrot.slane %v323, 2
        %v624 = vrot.slane %v324, 2
        %v625 = vrot.slane %v325, 2
        %v626 = vrot.slane %v326, 2
        %v627 = vrot.slane %v327, 2
        %v628 = vrot.slane %v328, 2
        %v629 = vrot.slane %v329, 2
        %v630 = vrot.slane %v330, 2
        %v631 = vrot.slane %v331, 2
        %v632 = vrot.slane %v332, 2
        %633 = vrot.lane.b32.xlu0 %v621, 64
        %v634 = vpop.permute.xlu0 %633
        %635 = vrot.lane.b32.xlu0 %v622, 64
        %v636 = vpop.permute.xlu0 %635
        %637 = vrot.lane.b32.xlu0 %v623, 64
        %v638 = vpop.permute.xlu0 %637
        %639 = vrot.lane.b32.xlu0 %v624, 64
        %v640 = vpop.permute.xlu0 %639
        %641 = vrot.lane.b32.xlu0 %v625, 64
        %v642 = vpop.permute.xlu0 %641
        %643 = vrot.lane.b32.xlu0 %v626, 64
        %v644 = vpop.permute.xlu0 %643
        %645 = vrot.lane.b32.xlu0 %v627, 64
        %v646 = vpop.permute.xlu0 %645
        %647 = vrot.lane.b32.xlu0 %v628, 64
        %v648 = vpop.permute.xlu0 %647
        %649 = vrot.lane.b32.xlu0 %v629, 64
        %v650 = vpop.permute.xlu0 %649
        %651 = vrot.lane.b32.xlu0 %v630, 64
        %v652 = vpop.permute.xlu0 %651
        %653 = vrot.lane.b32.xlu0 %v631, 64
        %v654 = vpop.permute.xlu0 %653
        %655 = vrot.lane.b32.xlu0 %v632, 64
        %v656 = vpop.permute.xlu0 %655
        %v659 = vsel %vm198, %v273, %v418
        %v662 = vsel %vm198, %v274, %v420
        %v665 = vsel %vm198, %v275, %v422
        %v668 = vsel %vm198, %v276, %v424
        %v671 = vsel %vm198, %v277, %v426
        %v674 = vsel %vm198, %v278, %v428
        %v677 = vsel %vm198, %v279, %v430
        %v680 = vsel %vm198, %v280, %v432
        %v683 = vsel %vm198, %v281, %v434
        %v686 = vsel %vm198, %v282, %v436
        %v689 = vsel %vm198, %v283, %v438
        %v692 = vsel %vm198, %v284, %v440
        %vm693 = vcmask 261120
        %v695 = vsel %vm693, %v659, %v466
        %v697 = vsel %vm693, %v662, %v468
        %v699 = vsel %vm693, %v665, %v470
        %v701 = vsel %vm693, %v668, %v472
        %v703 = vsel %vm693, %v671, %v474
        %v705 = vsel %vm693, %v674, %v476
        %v707 = vsel %vm693, %v677, %v478
        %v709 = vsel %vm693, %v680, %v480
        %v711 = vsel %vm693, %v683, %v482
        %v713 = vsel %vm693, %v686, %v484
        %v715 = vsel %vm693, %v689, %v486
        %v717 = vsel %vm693, %v692, %v488
        %vm718 = vcmask 392192
        %v720 = vsel %vm718, %v695, %v586
        %v722 = vsel %vm718, %v697, %v588
        %v724 = vsel %vm718, %v699, %v590
        %v726 = vsel %vm718, %v701, %v592
        %v728 = vsel %vm718, %v703, %v594
        %v730 = vsel %vm718, %v705, %v596
        %v732 = vsel %vm718, %v707, %v598
        %v734 = vsel %vm718, %v709, %v600
        %v736 = vsel %vm718, %v711, %v602
        %v738 = vsel %vm718, %v713, %v604
        %v740 = vsel %vm718, %v715, %v606
        %v742 = vsel %vm718, %v717, %v608
        %vm743 = vcmask 523264
        %v745 = vsel %vm743, %v720, %v634
        %v747 = vsel %vm743, %v722, %v636
        %v749 = vsel %vm743, %v724, %v638
        %v751 = vsel %vm743, %v726, %v640
        %v753 = vsel %vm743, %v728, %v642
        %v755 = vsel %vm743, %v730, %v644
        %v757 = vsel %vm743, %v732, %v646
        %v759 = vsel %vm743, %v734, %v648
        %v761 = vsel %vm743, %v736, %v650
        %v763 = vsel %vm743, %v738, %v652
        %v765 = vsel %vm743, %v740, %v654
        %v767 = vsel %vm743, %v742, %v656
        %v780 = vcombine.high %v745, %v745
        %v782 = vunpack.c.l.s4 1983009808
        %v783 = vunpack.c.0.s8 %v782
        %v784 = vlaneseq
        %v785 = vshrl.u32 %v784, 7
        %v786 = vsub.s32 %v783, %v785
        %v787 = vrot.slane %v745, %v786
        %v789 = vunpack.c.l.s4 1983009808
        %v790 = vunpack.c.0.s8 %v789
        %v791 = vlaneseq
        %v792 = vshrl.u32 %v791, 7
        %v793 = vsub.s32 %v790, %v792
        %v794 = vrot.slane %v780, %v793
        %v795 = vcombine.high %v787, %v787
        %v796 = vcombine.high %v747, %v747
        %v798 = vunpack.c.l.s4 1983009808
        %v799 = vunpack.c.0.s8 %v798
        %v800 = vlaneseq
        %v801 = vshrl.u32 %v800, 7
        %v802 = vsub.s32 %v799, %v801
        %v803 = vrot.slane %v747, %v802
        %v805 = vunpack.c.l.s4 1983009808
        %v806 = vunpack.c.0.s8 %v805
        %v807 = vlaneseq
        %v808 = vshrl.u32 %v807, 7
        %v809 = vsub.s32 %v806, %v808
        %v810 = vrot.slane %v796, %v809
        %v811 = vcombine.high %v803, %v803
        %v812 = vcombine.high %v749, %v749
        %v814 = vunpack.c.l.s4 1983009808
        %v815 = vunpack.c.0.s8 %v814
        %v816 = vlaneseq
        %v817 = vshrl.u32 %v816, 7
        %v818 = vsub.s32 %v815, %v817
        %v819 = vrot.slane %v749, %v818
        %v821 = vunpack.c.l.s4 1983009808
        %v822 = vunpack.c.0.s8 %v821
        %v823 = vlaneseq
        %v824 = vshrl.u32 %v823, 7
        %v825 = vsub.s32 %v822, %v824
        %v826 = vrot.slane %v812, %v825
        %v827 = vcombine.high %v819, %v819
        %v828 = vcombine.high %v751, %v751
        %v830 = vunpack.c.l.s4 1983009808
        %v831 = vunpack.c.0.s8 %v830
        %v832 = vlaneseq
        %v833 = vshrl.u32 %v832, 7
        %v834 = vsub.s32 %v831, %v833
        %v835 = vrot.slane %v751, %v834
        %v837 = vunpack.c.l.s4 1983009808
        %v838 = vunpack.c.0.s8 %v837
        %v839 = vlaneseq
        %v840 = vshrl.u32 %v839, 7
        %v841 = vsub.s32 %v838, %v840
        %v842 = vrot.slane %v828, %v841
        %v843 = vcombine.high %v835, %v835
        %v844 = vcombine.high %v753, %v753
        %v846 = vunpack.c.l.s4 1983009808
        %v847 = vunpack.c.0.s8 %v846
        %v848 = vlaneseq
        %v849 = vshrl.u32 %v848, 7
        %v850 = vsub.s32 %v847, %v849
        %v851 = vrot.slane %v753, %v850
        %v853 = vunpack.c.l.s4 1983009808
        %v854 = vunpack.c.0.s8 %v853
        %v855 = vlaneseq
        %v856 = vshrl.u32 %v855, 7
        %v857 = vsub.s32 %v854, %v856
        %v858 = vrot.slane %v844, %v857
        %v859 = vcombine.high %v851, %v851
        %v860 = vcombine.high %v755, %v755
        %v862 = vunpack.c.l.s4 1983009808
        %v863 = vunpack.c.0.s8 %v862
        %v864 = vlaneseq
        %v865 = vshrl.u32 %v864, 7
        %v866 = vsub.s32 %v863, %v865
        %v867 = vrot.slane %v755, %v866
        %v869 = vunpack.c.l.s4 1983009808
        %v870 = vunpack.c.0.s8 %v869
        %v871 = vlaneseq
        %v872 = vshrl.u32 %v871, 7
        %v873 = vsub.s32 %v870, %v872
        %v874 = vrot.slane %v860, %v873
        %v875 = vcombine.high %v867, %v867
        %v876 = vcombine.high %v757, %v757
        %v878 = vunpack.c.l.s4 1983009808
        %v879 = vunpack.c.0.s8 %v878
        %v880 = vlaneseq
        %v881 = vshrl.u32 %v880, 7
        %v882 = vsub.s32 %v879, %v881
        %v883 = vrot.slane %v757, %v882
        %v885 = vunpack.c.l.s4 1983009808
        %v886 = vunpack.c.0.s8 %v885
        %v887 = vlaneseq
        %v888 = vshrl.u32 %v887, 7
        %v889 = vsub.s32 %v886, %v888
        %v890 = vrot.slane %v876, %v889
        %v891 = vcombine.high %v883, %v883
        %v892 = vcombine.high %v759, %v759
        %v894 = vunpack.c.l.s4 1983009808
        %v895 = vunpack.c.0.s8 %v894
        %v896 = vlaneseq
        %v897 = vshrl.u32 %v896, 7
        %v898 = vsub.s32 %v895, %v897
        %v899 = vrot.slane %v759, %v898
        %v901 = vunpack.c.l.s4 1983009808
        %v902 = vunpack.c.0.s8 %v901
        %v903 = vlaneseq
        %v904 = vshrl.u32 %v903, 7
        %v905 = vsub.s32 %v902, %v904
        %v906 = vrot.slane %v892, %v905
        %v907 = vcombine.high %v899, %v899
        %v908 = vcombine.high %v761, %v761
        %v910 = vunpack.c.l.s4 1983009808
        %v911 = vunpack.c.0.s8 %v910
        %v912 = vlaneseq
        %v913 = vshrl.u32 %v912, 7
        %v914 = vsub.s32 %v911, %v913
        %v915 = vrot.slane %v761, %v914
        %v917 = vunpack.c.l.s4 1983009808
        %v918 = vunpack.c.0.s8 %v917
        %v919 = vlaneseq
        %v920 = vshrl.u32 %v919, 7
        %v921 = vsub.s32 %v918, %v920
        %v922 = vrot.slane %v908, %v921
        %v923 = vcombine.high %v915, %v915
        %v924 = vcombine.high %v763, %v763
        %v926 = vunpack.c.l.s4 1983009808
        %v927 = vunpack.c.0.s8 %v926
        %v928 = vlaneseq
        %v929 = vshrl.u32 %v928, 7
        %v930 = vsub.s32 %v927, %v929
        %v931 = vrot.slane %v763, %v930
        %v933 = vunpack.c.l.s4 1983009808
        %v934 = vunpack.c.0.s8 %v933
        %v935 = vlaneseq
        %v936 = vshrl.u32 %v935, 7
        %v937 = vsub.s32 %v934, %v936
        %v938 = vrot.slane %v924, %v937
        %v939 = vcombine.high %v931, %v931
        %v940 = vcombine.high %v765, %v765
        %v942 = vunpack.c.l.s4 1983009808
        %v943 = vunpack.c.0.s8 %v942
        %v944 = vlaneseq
        %v945 = vshrl.u32 %v944, 7
        %v946 = vsub.s32 %v943, %v945
        %v947 = vrot.slane %v765, %v946
        %v949 = vunpack.c.l.s4 1983009808
        %v950 = vunpack.c.0.s8 %v949
        %v951 = vlaneseq
        %v952 = vshrl.u32 %v951, 7
        %v953 = vsub.s32 %v950, %v952
        %v954 = vrot.slane %v940, %v953
        %v955 = vcombine.high %v947, %v947
        %v956 = vcombine.high %v767, %v767
        %v958 = vunpack.c.l.s4 1983009808
        %v959 = vunpack.c.0.s8 %v958
        %v960 = vlaneseq
        %v961 = vshrl.u32 %v960, 7
        %v962 = vsub.s32 %v959, %v961
        %v963 = vrot.slane %v767, %v962
        %v965 = vunpack.c.l.s4 1983009808
        %v966 = vunpack.c.0.s8 %v965
        %v967 = vlaneseq
        %v968 = vshrl.u32 %v967, 7
        %v969 = vsub.s32 %v966, %v968
        %v970 = vrot.slane %v956, %v969
        %v971 = vcombine.high %v963, %v963
        %v972 = vld [vmem:[#allocation3] sm:$0xf]
        %v973 = vld [vmem:[#allocation3 + $0x4] sm:$0xf]
        %v974 = vld [vmem:[#allocation3 + $0x8] sm:$0xf]
        %v975 = vld [vmem:[#allocation3 + $0xc] sm:$0xf]
        %v976 = vld [vmem:[#allocation3 + $0x10] sm:$0xf]
        %v977 = vld [vmem:[#allocation3 + $0x14] sm:$0xf]
        %v978 = vld [vmem:[#allocation3 + $0x18] sm:$0xf]
        %v979 = vld [vmem:[#allocation3 + $0x1c] sm:$0xf]
        %v980 = vld [vmem:[#allocation3 + $0x20] sm:$0xf]
        %v981 = vld [vmem:[#allocation3 + $0x24] sm:$0xf]
        %s982 = scalar_lea.vmem [#allocation2], 8
        %v983 = vld [vmem:[%s982] sm:$0x3f]
        %v984 = vld [vmem:[%s982 + $0x8] sm:$0x3f]
        %v985 = vld [vmem:[%s982 + $0x10] sm:$0x3f]
        %v986 = vld [vmem:[%s982 + $0x18] sm:$0x3f]
        %v987 = vld [vmem:[%s982 + $0x20] sm:$0x3f]
        %v988 = vld [vmem:[%s982 + $0x28] sm:$0x3f]
        %v989 = vld [vmem:[%s982 + $0x30] sm:$0x3f]
        %v990 = vld [vmem:[%s982 + $0x38] sm:$0x3f]
        %v991 = vld [vmem:[%s982 + $0x40] sm:$0x3f]
        %v992 = vld [vmem:[%s982 + $0x48] sm:$0x3f]
        %v993 = vld [vmem:[%s982 + $0x50] sm:$0x3f]
        %v994 = vld [vmem:[%s982 + $0x58] sm:$0x3f]
        %v995 = vld [vmem:[%s982] sm:$0x7f]
        %v996 = vld [vmem:[%s982 + $0x8] sm:$0x7f]
        %v997 = vld [vmem:[%s982 + $0x10] sm:$0x7f]
        %v998 = vld [vmem:[%s982 + $0x18] sm:$0x7f]
        %v999 = vld [vmem:[%s982 + $0x20] sm:$0x7f]
        %v1000 = vld [vmem:[%s982 + $0x28] sm:$0x7f]
        %v1001 = vld [vmem:[%s982 + $0x30] sm:$0x7f]
        %v1002 = vld [vmem:[%s982 + $0x38] sm:$0x7f]
        %v1003 = vld [vmem:[%s982 + $0x40] sm:$0x7f]
        %v1004 = vld [vmem:[%s982 + $0x48] sm:$0x7f]
        %v1005 = vld [vmem:[%s982 + $0x50] sm:$0x7f]
        %v1006 = vld [vmem:[%s982 + $0x58] sm:$0x7f]
        %v1007 = vld [vmem:[%s982] sm:$0x7e]
        %v1008 = vld [vmem:[%s982 + $0x8] sm:$0x7e]
        %v1009 = vld [vmem:[%s982 + $0x10] sm:$0x7e]
        %v1010 = vld [vmem:[%s982 + $0x18] sm:$0x7e]
        %v1011 = vld [vmem:[%s982 + $0x20] sm:$0x7e]
        %v1012 = vld [vmem:[%s982 + $0x28] sm:$0x7e]
        %v1013 = vld [vmem:[%s982 + $0x30] sm:$0x7e]
        %v1014 = vld [vmem:[%s982 + $0x38] sm:$0x7e]
        %v1015 = vld [vmem:[%s982 + $0x40] sm:$0x7e]
        %v1016 = vld [vmem:[%s982 + $0x48] sm:$0x7e]
        %v1017 = vld [vmem:[%s982 + $0x50] sm:$0x7e]
        %v1018 = vld [vmem:[%s982 + $0x58] sm:$0x7e]
        %v1019 = vld [vmem:[%s982] sm:$0xfe]
        %v1020 = vld [vmem:[%s982 + $0x8] sm:$0xfe]
        %v1021 = vld [vmem:[%s982 + $0x10] sm:$0xfe]
        %v1022 = vld [vmem:[%s982 + $0x18] sm:$0xfe]
        %v1023 = vld [vmem:[%s982 + $0x20] sm:$0xfe]
        %v1024 = vld [vmem:[%s982 + $0x28] sm:$0xfe]
        %v1025 = vld [vmem:[%s982 + $0x30] sm:$0xfe]
        %v1026 = vld [vmem:[%s982 + $0x38] sm:$0xfe]
        %v1027 = vld [vmem:[%s982 + $0x40] sm:$0xfe]
        %v1028 = vld [vmem:[%s982 + $0x48] sm:$0xfe]
        %v1029 = vld [vmem:[%s982 + $0x50] sm:$0xfe]
        %v1030 = vld [vmem:[%s982 + $0x58] sm:$0xfe]
        %v1031 = vld [vmem:[%s982] sm:$0xfc]
        %v1032 = vld [vmem:[%s982 + $0x8] sm:$0xfc]
        %v1033 = vld [vmem:[%s982 + $0x10] sm:$0xfc]
        %v1034 = vld [vmem:[%s982 + $0x18] sm:$0xfc]
        %v1035 = vld [vmem:[%s982 + $0x20] sm:$0xfc]
        %v1036 = vld [vmem:[%s982 + $0x28] sm:$0xfc]
        %v1037 = vld [vmem:[%s982 + $0x30] sm:$0xfc]
        %v1038 = vld [vmem:[%s982 + $0x38] sm:$0xfc]
        %v1039 = vld [vmem:[%s982 + $0x40] sm:$0xfc]
        %v1040 = vld [vmem:[%s982 + $0x48] sm:$0xfc]
        %v1041 = vld [vmem:[%s982 + $0x50] sm:$0xfc]
        %v1042 = vld [vmem:[%s982 + $0x58] sm:$0xfc]
        %v1044 = vshrl.u32 %v995, 16
        %v1046 = vshll.u32 %v995, 16
        %v1048 = vrot.slane %v1046, 1
        %v1049 = vor.u32 %v1044, %v1048
        %v1051 = vshrl.u32 %v996, 16
        %v1053 = vshll.u32 %v996, 16
        %v1055 = vrot.slane %v1053, 1
        %v1056 = vor.u32 %v1051, %v1055
        %v1058 = vshrl.u32 %v997, 16
        %v1060 = vshll.u32 %v997, 16
        %v1062 = vrot.slane %v1060, 1
        %v1063 = vor.u32 %v1058, %v1062
        %v1065 = vshrl.u32 %v998, 16
        %v1067 = vshll.u32 %v998, 16
        %v1069 = vrot.slane %v1067, 1
        %v1070 = vor.u32 %v1065, %v1069
        %v1072 = vshrl.u32 %v999, 16
        %v1074 = vshll.u32 %v999, 16
        %v1076 = vrot.slane %v1074, 1
        %v1077 = vor.u32 %v1072, %v1076
        %v1079 = vshrl.u32 %v1000, 16
        %v1081 = vshll.u32 %v1000, 16
        %v1083 = vrot.slane %v1081, 1
        %v1084 = vor.u32 %v1079, %v1083
        %v1086 = vshrl.u32 %v1001, 16
        %v1088 = vshll.u32 %v1001, 16
        %v1090 = vrot.slane %v1088, 1
        %v1091 = vor.u32 %v1086, %v1090
        %v1093 = vshrl.u32 %v1002, 16
        %v1095 = vshll.u32 %v1002, 16
        %v1097 = vrot.slane %v1095, 1
        %v1098 = vor.u32 %v1093, %v1097
        %v1100 = vshrl.u32 %v1003, 16
        %v1102 = vshll.u32 %v1003, 16
        %v1104 = vrot.slane %v1102, 1
        %v1105 = vor.u32 %v1100, %v1104
        %v1107 = vshrl.u32 %v1004, 16
        %v1109 = vshll.u32 %v1004, 16
        %v1111 = vrot.slane %v1109, 1
        %v1112 = vor.u32 %v1107, %v1111
        %v1114 = vshrl.u32 %v1005, 16
        %v1116 = vshll.u32 %v1005, 16
        %v1118 = vrot.slane %v1116, 1
        %v1119 = vor.u32 %v1114, %v1118
        %v1121 = vshrl.u32 %v1006, 16
        %v1123 = vshll.u32 %v1006, 16
        %v1125 = vrot.slane %v1123, 1
        %v1126 = vor.u32 %v1121, %v1125
        %1127 = vrot.lane.b32.xlu0 %v1049, 16
        %v1128 = vpop.permute.xlu0 %1127
        %1129 = vrot.lane.b32.xlu0 %v1056, 16
        %v1130 = vpop.permute.xlu0 %1129
        %1131 = vrot.lane.b32.xlu0 %v1063, 16
        %v1132 = vpop.permute.xlu0 %1131
        %1133 = vrot.lane.b32.xlu0 %v1070, 16
        %v1134 = vpop.permute.xlu0 %1133
        %1135 = vrot.lane.b32.xlu0 %v1077, 16
        %v1136 = vpop.permute.xlu0 %1135
        %1137 = vrot.lane.b32.xlu0 %v1084, 16
        %v1138 = vpop.permute.xlu0 %1137
        %1139 = vrot.lane.b32.xlu0 %v1091, 16
        %v1140 = vpop.permute.xlu0 %1139
        %1141 = vrot.lane.b32.xlu0 %v1098, 16
        %v1142 = vpop.permute.xlu0 %1141
        %1143 = vrot.lane.b32.xlu0 %v1105, 16
        %v1144 = vpop.permute.xlu0 %1143
        %1145 = vrot.lane.b32.xlu0 %v1112, 16
        %v1146 = vpop.permute.xlu0 %1145
        %1147 = vrot.lane.b32.xlu0 %v1119, 16
        %v1148 = vpop.permute.xlu0 %1147
        %1149 = vrot.lane.b32.xlu0 %v1126, 16
        %v1150 = vpop.permute.xlu0 %1149
        %v1163 = vrot.slane %v1007, 1
        %v1164 = vrot.slane %v1008, 1
        %v1165 = vrot.slane %v1009, 1
        %v1166 = vrot.slane %v1010, 1
        %v1167 = vrot.slane %v1011, 1
        %v1168 = vrot.slane %v1012, 1
        %v1169 = vrot.slane %v1013, 1
        %v1170 = vrot.slane %v1014, 1
        %v1171 = vrot.slane %v1015, 1
        %v1172 = vrot.slane %v1016, 1
        %v1173 = vrot.slane %v1017, 1
        %v1174 = vrot.slane %v1018, 1
        %1175 = vrot.lane.b32.xlu0 %v1163, 32
        %v1176 = vpop.permute.xlu0 %1175
        %1177 = vrot.lane.b32.xlu0 %v1164, 32
        %v1178 = vpop.permute.xlu0 %1177
        %1179 = vrot.lane.b32.xlu0 %v1165, 32
        %v1180 = vpop.permute.xlu0 %1179
        %1181 = vrot.lane.b32.xlu0 %v1166, 32
        %v1182 = vpop.permute.xlu0 %1181
        %1183 = vrot.lane.b32.xlu0 %v1167, 32
        %v1184 = vpop.permute.xlu0 %1183
        %1185 = vrot.lane.b32.xlu0 %v1168, 32
        %v1186 = vpop.permute.xlu0 %1185
        %1187 = vrot.lane.b32.xlu0 %v1169, 32
        %v1188 = vpop.permute.xlu0 %1187
        %1189 = vrot.lane.b32.xlu0 %v1170, 32
        %v1190 = vpop.permute.xlu0 %1189
        %1191 = vrot.lane.b32.xlu0 %v1171, 32
        %v1192 = vpop.permute.xlu0 %1191
        %1193 = vrot.lane.b32.xlu0 %v1172, 32
        %v1194 = vpop.permute.xlu0 %1193
        %1195 = vrot.lane.b32.xlu0 %v1173, 32
        %v1196 = vpop.permute.xlu0 %1195
        %1197 = vrot.lane.b32.xlu0 %v1174, 32
        %v1198 = vpop.permute.xlu0 %1197
        %v1200 = vshrl.u32 %v1019, 16
        %v1202 = vrot.slane %v1200, 1
        %v1203 = vshll.u32 %v1019, 16
        %v1205 = vrot.slane %v1203, 2
        %v1206 = vor.u32 %v1202, %v1205
        %v1208 = vshrl.u32 %v1020, 16
        %v1210 = vrot.slane %v1208, 1
        %v1211 = vshll.u32 %v1020, 16
        %v1213 = vrot.slane %v1211, 2
        %v1214 = vor.u32 %v1210, %v1213
        %v1216 = vshrl.u32 %v1021, 16
        %v1218 = vrot.slane %v1216, 1
        %v1219 = vshll.u32 %v1021, 16
        %v1221 = vrot.slane %v1219, 2
        %v1222 = vor.u32 %v1218, %v1221
        %v1224 = vshrl.u32 %v1022, 16
        %v1226 = vrot.slane %v1224, 1
        %v1227 = vshll.u32 %v1022, 16
        %v1229 = vrot.slane %v1227, 2
        %v1230 = vor.u32 %v1226, %v1229
        %v1232 = vshrl.u32 %v1023, 16
        %v1234 = vrot.slane %v1232, 1
        %v1235 = vshll.u32 %v1023, 16
        %v1237 = vrot.slane %v1235, 2
        %v1238 = vor.u32 %v1234, %v1237
        %v1240 = vshrl.u32 %v1024, 16
        %v1242 = vrot.slane %v1240, 1
        %v1243 = vshll.u32 %v1024, 16
        %v1245 = vrot.slane %v1243, 2
        %v1246 = vor.u32 %v1242, %v1245
        %v1248 = vshrl.u32 %v1025, 16
        %v1250 = vrot.slane %v1248, 1
        %v1251 = vshll.u32 %v1025, 16
        %v1253 = vrot.slane %v1251, 2
        %v1254 = vor.u32 %v1250, %v1253
        %v1256 = vshrl.u32 %v1026, 16
        %v1258 = vrot.slane %v1256, 1
        %v1259 = vshll.u32 %v1026, 16
        %v1261 = vrot.slane %v1259, 2
        %v1262 = vor.u32 %v1258, %v1261
        %v1264 = vshrl.u32 %v1027, 16
        %v1266 = vrot.slane %v1264, 1
        %v1267 = vshll.u32 %v1027, 16
        %v1269 = vrot.slane %v1267, 2
        %v1270 = vor.u32 %v1266, %v1269
        %v1272 = vshrl.u32 %v1028, 16
        %v1274 = vrot.slane %v1272, 1
        %v1275 = vshll.u32 %v1028, 16
        %v1277 = vrot.slane %v1275, 2
        %v1278 = vor.u32 %v1274, %v1277
        %v1280 = vshrl.u32 %v1029, 16
        %v1282 = vrot.slane %v1280, 1
        %v1283 = vshll.u32 %v1029, 16
        %v1285 = vrot.slane %v1283, 2
        %v1286 = vor.u32 %v1282, %v1285
        %v1288 = vshrl.u32 %v1030, 16
        %v1290 = vrot.slane %v1288, 1
        %v1291 = vshll.u32 %v1030, 16
        %v1293 = vrot.slane %v1291, 2
        %v1294 = vor.u32 %v1290, %v1293
        %1295 = vrot.lane.b32.xlu0 %v1206, 48
        %v1296 = vpop.permute.xlu0 %1295
        %1297 = vrot.lane.b32.xlu0 %v1214, 48
        %v1298 = vpop.permute.xlu0 %1297
        %1299 = vrot.lane.b32.xlu0 %v1222, 48
        %v1300 = vpop.permute.xlu0 %1299
        %1301 = vrot.lane.b32.xlu0 %v1230, 48
        %v1302 = vpop.permute.xlu0 %1301
        %1303 = vrot.lane.b32.xlu0 %v1238, 48
        %v1304 = vpop.permute.xlu0 %1303
        %1305 = vrot.lane.b32.xlu0 %v1246, 48
        %v1306 = vpop.permute.xlu0 %1305
        %1307 = vrot.lane.b32.xlu0 %v1254, 48
        %v1308 = vpop.permute.xlu0 %1307
        %1309 = vrot.lane.b32.xlu0 %v1262, 48
        %v1310 = vpop.permute.xlu0 %1309
        %1311 = vrot.lane.b32.xlu0 %v1270, 48
        %v1312 = vpop.permute.xlu0 %1311
        %1313 = vrot.lane.b32.xlu0 %v1278, 48
        %v1314 = vpop.permute.xlu0 %1313
        %1315 = vrot.lane.b32.xlu0 %v1286, 48
        %v1316 = vpop.permute.xlu0 %1315
        %1317 = vrot.lane.b32.xlu0 %v1294, 48
        %v1318 = vpop.permute.xlu0 %1317
        %v1331 = vrot.slane %v1031, 2
        %v1332 = vrot.slane %v1032, 2
        %v1333 = vrot.slane %v1033, 2
        %v1334 = vrot.slane %v1034, 2
        %v1335 = vrot.slane %v1035, 2
        %v1336 = vrot.slane %v1036, 2
        %v1337 = vrot.slane %v1037, 2
        %v1338 = vrot.slane %v1038, 2
        %v1339 = vrot.slane %v1039, 2
        %v1340 = vrot.slane %v1040, 2
        %v1341 = vrot.slane %v1041, 2
        %v1342 = vrot.slane %v1042, 2
        %1343 = vrot.lane.b32.xlu0 %v1331, 64
        %v1344 = vpop.permute.xlu0 %1343
        %1345 = vrot.lane.b32.xlu0 %v1332, 64
        %v1346 = vpop.permute.xlu0 %1345
        %1347 = vrot.lane.b32.xlu0 %v1333, 64
        %v1348 = vpop.permute.xlu0 %1347
        %1349 = vrot.lane.b32.xlu0 %v1334, 64
        %v1350 = vpop.permute.xlu0 %1349
        %1351 = vrot.lane.b32.xlu0 %v1335, 64
        %v1352 = vpop.permute.xlu0 %1351
        %1353 = vrot.lane.b32.xlu0 %v1336, 64
        %v1354 = vpop.permute.xlu0 %1353
        %1355 = vrot.lane.b32.xlu0 %v1337, 64
        %v1356 = vpop.permute.xlu0 %1355
        %1357 = vrot.lane.b32.xlu0 %v1338, 64
        %v1358 = vpop.permute.xlu0 %1357
        %1359 = vrot.lane.b32.xlu0 %v1339, 64
        %v1360 = vpop.permute.xlu0 %1359
        %1361 = vrot.lane.b32.xlu0 %v1340, 64
        %v1362 = vpop.permute.xlu0 %1361
        %1363 = vrot.lane.b32.xlu0 %v1341, 64
        %v1364 = vpop.permute.xlu0 %1363
        %1365 = vrot.lane.b32.xlu0 %v1342, 64
        %v1366 = vpop.permute.xlu0 %1365
        %v1369 = vsel %vm198, %v983, %v1128
        %v1372 = vsel %vm198, %v984, %v1130
        %v1375 = vsel %vm198, %v985, %v1132
        %v1378 = vsel %vm198, %v986, %v1134
        %v1381 = vsel %vm198, %v987, %v1136
        %v1384 = vsel %vm198, %v988, %v1138
        %v1387 = vsel %vm198, %v989, %v1140
        %v1390 = vsel %vm198, %v990, %v1142
        %v1393 = vsel %vm198, %v991, %v1144
        %v1396 = vsel %vm198, %v992, %v1146
        %v1399 = vsel %vm198, %v993, %v1148
        %v1402 = vsel %vm198, %v994, %v1150
        %v1404 = vsel %vm693, %v1369, %v1176
        %v1406 = vsel %vm693, %v1372, %v1178
        %v1408 = vsel %vm693, %v1375, %v1180
        %v1410 = vsel %vm693, %v1378, %v1182
        %v1412 = vsel %vm693, %v1381, %v1184
        %v1414 = vsel %vm693, %v1384, %v1186
        %v1416 = vsel %vm693, %v1387, %v1188
        %v1418 = vsel %vm693, %v1390, %v1190
        %v1420 = vsel %vm693, %v1393, %v1192
        %v1422 = vsel %vm693, %v1396, %v1194
        %v1424 = vsel %vm693, %v1399, %v1196
        %v1426 = vsel %vm693, %v1402, %v1198
        %v1428 = vsel %vm718, %v1404, %v1296
        %v1430 = vsel %vm718, %v1406, %v1298
        %v1432 = vsel %vm718, %v1408, %v1300
        %v1434 = vsel %vm718, %v1410, %v1302
        %v1436 = vsel %vm718, %v1412, %v1304
        %v1438 = vsel %vm718, %v1414, %v1306
        %v1440 = vsel %vm718, %v1416, %v1308
        %v1442 = vsel %vm718, %v1418, %v1310
        %v1444 = vsel %vm718, %v1420, %v1312
        %v1446 = vsel %vm718, %v1422, %v1314
        %v1448 = vsel %vm718, %v1424, %v1316
        %v1450 = vsel %vm718, %v1426, %v1318
        %v1452 = vsel %vm743, %v1428, %v1344
        %v1454 = vsel %vm743, %v1430, %v1346
        %v1456 = vsel %vm743, %v1432, %v1348
        %v1458 = vsel %vm743, %v1434, %v1350
        %v1460 = vsel %vm743, %v1436, %v1352
        %v1462 = vsel %vm743, %v1438, %v1354
        %v1464 = vsel %vm743, %v1440, %v1356
        %v1466 = vsel %vm743, %v1442, %v1358
        %v1468 = vsel %vm743, %v1444, %v1360
        %v1470 = vsel %vm743, %v1446, %v1362
        %v1472 = vsel %vm743, %v1448, %v1364
        %v1474 = vsel %vm743, %v1450, %v1366
        %v1487 = vcombine.high %v1452, %v1452
        %v1489 = vunpack.c.l.s4 1983009808
        %v1490 = vunpack.c.0.s8 %v1489
        %v1491 = vlaneseq
        %v1492 = vshrl.u32 %v1491, 7
        %v1493 = vsub.s32 %v1490, %v1492
        %v1494 = vrot.slane %v1452, %v1493
        %v1496 = vunpack.c.l.s4 1983009808
        %v1497 = vunpack.c.0.s8 %v1496
        %v1498 = vlaneseq
        %v1499 = vshrl.u32 %v1498, 7
        %v1500 = vsub.s32 %v1497, %v1499
        %v1501 = vrot.slane %v1487, %v1500
        %v1502 = vcombine.high %v1494, %v1494
        %v1503 = vcombine.high %v1454, %v1454
        %v1505 = vunpack.c.l.s4 1983009808
        %v1506 = vunpack.c.0.s8 %v1505
        %v1507 = vlaneseq
        %v1508 = vshrl.u32 %v1507, 7
        %v1509 = vsub.s32 %v1506, %v1508
        %v1510 = vrot.slane %v1454, %v1509
        %v1512 = vunpack.c.l.s4 1983009808
        %v1513 = vunpack.c.0.s8 %v1512
        %v1514 = vlaneseq
        %v1515 = vshrl.u32 %v1514, 7
        %v1516 = vsub.s32 %v1513, %v1515
        %v1517 = vrot.slane %v1503, %v1516
        %v1518 = vcombine.high %v1510, %v1510
        %v1519 = vcombine.high %v1456, %v1456
        %v1521 = vunpack.c.l.s4 1983009808
        %v1522 = vunpack.c.0.s8 %v1521
        %v1523 = vlaneseq
        %v1524 = vshrl.u32 %v1523, 7
        %v1525 = vsub.s32 %v1522, %v1524
        %v1526 = vrot.slane %v1456, %v1525
        %v1528 = vunpack.c.l.s4 1983009808
        %v1529 = vunpack.c.0.s8 %v1528
        %v1530 = vlaneseq
        %v1531 = vshrl.u32 %v1530, 7
        %v1532 = vsub.s32 %v1529, %v1531
        %v1533 = vrot.slane %v1519, %v1532
        %v1534 = vcombine.high %v1526, %v1526
        %v1535 = vcombine.high %v1458, %v1458
        %v1537 = vunpack.c.l.s4 1983009808
        %v1538 = vunpack.c.0.s8 %v1537
        %v1539 = vlaneseq
        %v1540 = vshrl.u32 %v1539, 7
        %v1541 = vsub.s32 %v1538, %v1540
        %v1542 = vrot.slane %v1458, %v1541
        %v1544 = vunpack.c.l.s4 1983009808
        %v1545 = vunpack.c.0.s8 %v1544
        %v1546 = vlaneseq
        %v1547 = vshrl.u32 %v1546, 7
        %v1548 = vsub.s32 %v1545, %v1547
        %v1549 = vrot.slane %v1535, %v1548
        %v1550 = vcombine.high %v1542, %v1542
        %v1551 = vcombine.high %v1460, %v1460
        %v1553 = vunpack.c.l.s4 1983009808
        %v1554 = vunpack.c.0.s8 %v1553
        %v1555 = vlaneseq
        %v1556 = vshrl.u32 %v1555, 7
        %v1557 = vsub.s32 %v1554, %v1556
        %v1558 = vrot.slane %v1460, %v1557
        %v1560 = vunpack.c.l.s4 1983009808
        %v1561 = vunpack.c.0.s8 %v1560
        %v1562 = vlaneseq
        %v1563 = vshrl.u32 %v1562, 7
        %v1564 = vsub.s32 %v1561, %v1563
        %v1565 = vrot.slane %v1551, %v1564
        %v1566 = vcombine.high %v1558, %v1558
        %v1567 = vcombine.high %v1462, %v1462
        %v1569 = vunpack.c.l.s4 1983009808
        %v1570 = vunpack.c.0.s8 %v1569
        %v1571 = vlaneseq
        %v1572 = vshrl.u32 %v1571, 7
        %v1573 = vsub.s32 %v1570, %v1572
        %v1574 = vrot.slane %v1462, %v1573
        %v1576 = vunpack.c.l.s4 1983009808
        %v1577 = vunpack.c.0.s8 %v1576
        %v1578 = vlaneseq
        %v1579 = vshrl.u32 %v1578, 7
        %v1580 = vsub.s32 %v1577, %v1579
        %v1581 = vrot.slane %v1567, %v1580
        %v1582 = vcombine.high %v1574, %v1574
        %v1583 = vcombine.high %v1464, %v1464
        %v1585 = vunpack.c.l.s4 1983009808
        %v1586 = vunpack.c.0.s8 %v1585
        %v1587 = vlaneseq
        %v1588 = vshrl.u32 %v1587, 7
        %v1589 = vsub.s32 %v1586, %v1588
        %v1590 = vrot.slane %v1464, %v1589
        %v1592 = vunpack.c.l.s4 1983009808
        %v1593 = vunpack.c.0.s8 %v1592
        %v1594 = vlaneseq
        %v1595 = vshrl.u32 %v1594, 7
        %v1596 = vsub.s32 %v1593, %v1595
        %v1597 = vrot.slane %v1583, %v1596
        %v1598 = vcombine.high %v1590, %v1590
        %v1599 = vcombine.high %v1466, %v1466
        %v1601 = vunpack.c.l.s4 1983009808
        %v1602 = vunpack.c.0.s8 %v1601
        %v1603 = vlaneseq
        %v1604 = vshrl.u32 %v1603, 7
        %v1605 = vsub.s32 %v1602, %v1604
        %v1606 = vrot.slane %v1466, %v1605
        %v1608 = vunpack.c.l.s4 1983009808
        %v1609 = vunpack.c.0.s8 %v1608
        %v1610 = vlaneseq
        %v1611 = vshrl.u32 %v1610, 7
        %v1612 = vsub.s32 %v1609, %v1611
        %v1613 = vrot.slane %v1599, %v1612
        %v1614 = vcombine.high %v1606, %v1606
        %v1615 = vcombine.high %v1468, %v1468
        %v1617 = vunpack.c.l.s4 1983009808
        %v1618 = vunpack.c.0.s8 %v1617
        %v1619 = vlaneseq
        %v1620 = vshrl.u32 %v1619, 7
        %v1621 = vsub.s32 %v1618, %v1620
        %v1622 = vrot.slane %v1468, %v1621
        %v1624 = vunpack.c.l.s4 1983009808
        %v1625 = vunpack.c.0.s8 %v1624
        %v1626 = vlaneseq
        %v1627 = vshrl.u32 %v1626, 7
        %v1628 = vsub.s32 %v1625, %v1627
        %v1629 = vrot.slane %v1615, %v1628
        %v1630 = vcombine.high %v1622, %v1622
        %v1631 = vcombine.high %v1470, %v1470
        %v1633 = vunpack.c.l.s4 1983009808
        %v1634 = vunpack.c.0.s8 %v1633
        %v1635 = vlaneseq
        %v1636 = vshrl.u32 %v1635, 7
        %v1637 = vsub.s32 %v1634, %v1636
        %v1638 = vrot.slane %v1470, %v1637
        %v1640 = vunpack.c.l.s4 1983009808
        %v1641 = vunpack.c.0.s8 %v1640
        %v1642 = vlaneseq
        %v1643 = vshrl.u32 %v1642, 7
        %v1644 = vsub.s32 %v1641, %v1643
        %v1645 = vrot.slane %v1631, %v1644
        %v1646 = vcombine.high %v1638, %v1638
        %v1647 = vcombine.high %v1472, %v1472
        %v1649 = vunpack.c.l.s4 1983009808
        %v1650 = vunpack.c.0.s8 %v1649
        %v1651 = vlaneseq
        %v1652 = vshrl.u32 %v1651, 7
        %v1653 = vsub.s32 %v1650, %v1652
        %v1654 = vrot.slane %v1472, %v1653
        %v1656 = vunpack.c.l.s4 1983009808
        %v1657 = vunpack.c.0.s8 %v1656
        %v1658 = vlaneseq
        %v1659 = vshrl.u32 %v1658, 7
        %v1660 = vsub.s32 %v1657, %v1659
        %v1661 = vrot.slane %v1647, %v1660
        %v1662 = vcombine.high %v1654, %v1654
        %v1663 = vcombine.high %v1474, %v1474
        %v1665 = vunpack.c.l.s4 1983009808
        %v1666 = vunpack.c.0.s8 %v1665
        %v1667 = vlaneseq
        %v1668 = vshrl.u32 %v1667, 7
        %v1669 = vsub.s32 %v1666, %v1668
        %v1670 = vrot.slane %v1474, %v1669
        %v1672 = vunpack.c.l.s4 1983009808
        %v1673 = vunpack.c.0.s8 %v1672
        %v1674 = vlaneseq
        %v1675 = vshrl.u32 %v1674, 7
        %v1676 = vsub.s32 %v1673, %v1675
        %v1677 = vrot.slane %v1663, %v1676
        %v1678 = vcombine.high %v1670, %v1670
        %s1679 = scalar_lea.vmem [#allocation3], 40
        %v1680 = vld [vmem:[%s1679] sm:$0xf]
        %v1681 = vld [vmem:[%s1679 + $0x4] sm:$0xf]
        %v1682 = vld [vmem:[%s1679 + $0x8] sm:$0xf]
        %v1683 = vld [vmem:[%s1679 + $0xc] sm:$0xf]
        %v1684 = vld [vmem:[%s1679 + $0x10] sm:$0xf]
        %v1685 = vld [vmem:[%s1679 + $0x14] sm:$0xf]
        %v1686 = vld [vmem:[%s1679 + $0x18] sm:$0xf]
        %v1687 = vld [vmem:[%s1679 + $0x1c] sm:$0xf]
        %v1688 = vld [vmem:[%s1679 + $0x20] sm:$0xf]
        %v1689 = vld [vmem:[%s1679 + $0x24] sm:$0xf]
        %v1690 = vcombine.low %v1494, %v1502
        %v1691 = vcombine.low %v1501, %v1510
        %v1693 = vunpack.c.l.s4 1983009808
        %v1694 = vunpack.c.0.s8 %v1693
        %v1695 = vlaneseq
        %v1696 = vshrl.u32 %v1695, 7
        %v1697 = vsub.s32 %v1694, %v1696
        %v1698 = vrot.slane %v1690, %v1697
        %v1700 = vunpack.c.l.s4 1983009808
        %v1701 = vunpack.c.0.s8 %v1700
        %v1702 = vlaneseq
        %v1703 = vshrl.u32 %v1702, 7
        %v1704 = vsub.s32 %v1701, %v1703
        %v1705 = vrot.slane %v1691, %v1704
        %v1706 = vcombine.low %v1698, %v1705
        %v1707 = vcombine.low %v1518, %v1517
        %v1708 = vcombine.low %v1526, %v1534
        %v1710 = vunpack.c.l.s4 1983009808
        %v1711 = vunpack.c.0.s8 %v1710
        %v1712 = vlaneseq
        %v1713 = vshrl.u32 %v1712, 7
        %v1714 = vsub.s32 %v1711, %v1713
        %v1715 = vrot.slane %v1707, %v1714
        %v1717 = vunpack.c.l.s4 1983009808
        %v1718 = vunpack.c.0.s8 %v1717
        %v1719 = vlaneseq
        %v1720 = vshrl.u32 %v1719, 7
        %v1721 = vsub.s32 %v1718, %v1720
        %v1722 = vrot.slane %v1708, %v1721
        %v1723 = vcombine.low %v1715, %v1722
        %v1724 = vcombine.low %v1533, %v1542
        %v1725 = vcombine.low %v1550, %v1549
        %v1727 = vunpack.c.l.s4 1983009808
        %v1728 = vunpack.c.0.s8 %v1727
        %v1729 = vlaneseq
        %v1730 = vshrl.u32 %v1729, 7
        %v1731 = vsub.s32 %v1728, %v1730
        %v1732 = vrot.slane %v1724, %v1731
        %v1734 = vunpack.c.l.s4 1983009808
        %v1735 = vunpack.c.0.s8 %v1734
        %v1736 = vlaneseq
        %v1737 = vshrl.u32 %v1736, 7
        %v1738 = vsub.s32 %v1735, %v1737
        %v1739 = vrot.slane %v1725, %v1738
        %v1740 = vcombine.low %v1732, %v1739
        %v1741 = vcombine.low %v1558, %v1566
        %v1742 = vcombine.low %v1565, %v1574
        %v1744 = vunpack.c.l.s4 1983009808
        %v1745 = vunpack.c.0.s8 %v1744
        %v1746 = vlaneseq
        %v1747 = vshrl.u32 %v1746, 7
        %v1748 = vsub.s32 %v1745, %v1747
        %v1749 = vrot.slane %v1741, %v1748
        %v1751 = vunpack.c.l.s4 1983009808
        %v1752 = vunpack.c.0.s8 %v1751
        %v1753 = vlaneseq
        %v1754 = vshrl.u32 %v1753, 7
        %v1755 = vsub.s32 %v1752, %v1754
        %v1756 = vrot.slane %v1742, %v1755
        %v1757 = vcombine.low %v1749, %v1756
        %v1758 = vcombine.low %v1582, %v1581
        %v1759 = vcombine.low %v1590, %v1598
        %v1761 = vunpack.c.l.s4 1983009808
        %v1762 = vunpack.c.0.s8 %v1761
        %v1763 = vlaneseq
        %v1764 = vshrl.u32 %v1763, 7
        %v1765 = vsub.s32 %v1762, %v1764
        %v1766 = vrot.slane %v1758, %v1765
        %v1768 = vunpack.c.l.s4 1983009808
        %v1769 = vunpack.c.0.s8 %v1768
        %v1770 = vlaneseq
        %v1771 = vshrl.u32 %v1770, 7
        %v1772 = vsub.s32 %v1769, %v1771
        %v1773 = vrot.slane %v1759, %v1772
        %v1774 = vcombine.low %v1766, %v1773
        %v1775 = vcombine.low %v1597, %v1606
        %v1776 = vcombine.low %v1614, %v1613
        %v1778 = vunpack.c.l.s4 1983009808
        %v1779 = vunpack.c.0.s8 %v1778
        %v1780 = vlaneseq
        %v1781 = vshrl.u32 %v1780, 7
        %v1782 = vsub.s32 %v1779, %v1781
        %v1783 = vrot.slane %v1775, %v1782
        %v1785 = vunpack.c.l.s4 1983009808
        %v1786 = vunpack.c.0.s8 %v1785
        %v1787 = vlaneseq
        %v1788 = vshrl.u32 %v1787, 7
        %v1789 = vsub.s32 %v1786, %v1788
        %v1790 = vrot.slane %v1776, %v1789
        %v1791 = vcombine.low %v1783, %v1790
        %v1792 = vcombine.low %v1622, %v1630
        %v1793 = vcombine.low %v1629, %v1638
        %v1795 = vunpack.c.l.s4 1983009808
        %v1796 = vunpack.c.0.s8 %v1795
        %v1797 = vlaneseq
        %v1798 = vshrl.u32 %v1797, 7
        %v1799 = vsub.s32 %v1796, %v1798
        %v1800 = vrot.slane %v1792, %v1799
        %v1802 = vunpack.c.l.s4 1983009808
        %v1803 = vunpack.c.0.s8 %v1802
        %v1804 = vlaneseq
        %v1805 = vshrl.u32 %v1804, 7
        %v1806 = vsub.s32 %v1803, %v1805
        %v1807 = vrot.slane %v1793, %v1806
        %v1808 = vcombine.low %v1800, %v1807
        %v1809 = vcombine.low %v1646, %v1645
        %v1810 = vcombine.low %v1654, %v1662
        %v1812 = vunpack.c.l.s4 1983009808
        %v1813 = vunpack.c.0.s8 %v1812
        %v1814 = vlaneseq
        %v1815 = vshrl.u32 %v1814, 7
        %v1816 = vsub.s32 %v1813, %v1815
        %v1817 = vrot.slane %v1809, %v1816
        %v1819 = vunpack.c.l.s4 1983009808
        %v1820 = vunpack.c.0.s8 %v1819
        %v1821 = vlaneseq
        %v1822 = vshrl.u32 %v1821, 7
        %v1823 = vsub.s32 %v1820, %v1822
        %v1824 = vrot.slane %v1810, %v1823
        %v1825 = vcombine.low %v1817, %v1824
        %v1826 = vcombine.low %v1661, %v1670
        %v1827 = vcombine.low %v1678, %v1677
        %v1829 = vunpack.c.l.s4 1983009808
        %v1830 = vunpack.c.0.s8 %v1829
        %v1831 = vlaneseq
        %v1832 = vshrl.u32 %v1831, 7
        %v1833 = vsub.s32 %v1830, %v1832
        %v1834 = vrot.slane %v1826, %v1833
        %v1836 = vunpack.c.l.s4 1983009808
        %v1837 = vunpack.c.0.s8 %v1836
        %v1838 = vlaneseq
        %v1839 = vshrl.u32 %v1838, 7
        %v1840 = vsub.s32 %v1837, %v1839
        %v1841 = vrot.slane %v1827, %v1840
        %v1842 = vcombine.low %v1834, %v1841
        %v1853 = vunpack.c.l.b16 %v1680
        %v1854 = vunpack.c.l.b16 %v1681
        %v1855 = vunpack.c.l.b16 %v1682
        %v1856 = vunpack.c.l.b16 %v1683
        %v1857 = vunpack.c.l.b16 %v1684
        %v1858 = vunpack.c.l.b16 %v1685
        %v1859 = vunpack.c.l.b16 %v1686
        %v1860 = vunpack.c.l.b16 %v1687
        %v1861 = vunpack.c.l.b16 %v1688
        %v1862 = vunpack.c.l.b16 %v1689
        %v1863 = vpack.c.b16 %v1854, %v1853
        %v1864 = vpack.c.b16 %v1856, %v1855
        %v1865 = vpack.c.b16 %v1858, %v1857
        %v1866 = vpack.c.b16 %v1860, %v1859
        %v1867 = vpack.c.b16 %v1862, %v1861
        %vm1873 = vcmask 654336
        %v1875 = vsel %vm1873, %v1706, 0
        %v1878 = vsel %vm1873, %v1723, 0
        %v1881 = vsel %vm1873, %v1740, 0
        %v1884 = vsel %vm1873, %v1757, 0
        %v1887 = vsel %vm1873, %v1774, 0
        %v1890 = vsel %vm1873, %v1791, 0
        %v1893 = vsel %vm1873, %v1808, 0
        %v1896 = vsel %vm1873, %v1825, 0
        %v1899 = vsel %vm1873, %v1842, 0
        %1901 = vmatprep.subr.bf16.mxu0 0
        %1902 = vmatpush1.bf16.msra.mxu0 %v1863
        %1903 = vmatprep.subr.bf16.mxu0 0
        %1904 = vmatpush1.bf16.msra.mxu0 %v1864
        %1905 = vmatprep.subr.bf16.mxu0 0
        %1906 = vmatpush1.bf16.msra.mxu0 %v1865
        %1907 = vmatprep.subr.bf16.mxu0 0
        %1908 = vmatpush1.bf16.msra.mxu0 %v1866
        %1909 = vmatprep.subr.bf16.mxu0 0
        %1910 = vmatpush1.bf16.msra.mxu0 %v1867
        %1911 = vmatprep.subr.bf16.mxu0 0
        %1912 = vmatpush1.bf16.msra.mxu0 0
        %1913 = vmatprep.subr.bf16.mxu0 0
        %1914 = vmatpush1.bf16.msra.mxu0 0
        %1915 = vmatprep.subr.bf16.mxu0 0
        %1916 = vmatpush1.bf16.msra.mxu0 0
        %1917 = vmatprep.subr.bf16.mxu0 0
        %1918 = vmatpush1.bf16.msra.mxu0 0
        %1919 = vmatprep.subr.bf16.mxu0 0
        %1920 = vmatpush1.bf16.msra.mxu0 0
        %1921 = vmatprep.subr.bf16.mxu0 0
        %1922 = vmatpush1.bf16.msra.mxu0 0
        %1923 = vmatprep.subr.bf16.mxu0 0
        %1924 = vmatpush1.bf16.msra.mxu0 0
        %1925 = vmatprep.subr.bf16.mxu0 0
        %1926 = vmatpush1.bf16.msra.mxu0 0
        %1927 = vmatprep.subr.bf16.mxu0 0
        %1928 = vmatpush1.bf16.msra.mxu0 0
        %1929 = vmatprep.subr.bf16.mxu0 0
        %1930 = vmatpush1.bf16.msra.mxu0 0
        %1931 = vmatprep.subr.bf16.mxu0 0
        %1932 = vmatpush1.bf16.msra.mxu0 0
        %1933 = vmatprep.mubr.bf16.mxu0 0
        %1934 = vmatmul.mubr.bf16.gmra.mrb[0].mxu0 %v1875
        %v1935 = vpop.f32.mrb[0].mxu0
        %v1936 = vadd.f32 0.0, %v1935
        %v1937 = vpop.f32.mrb[0].mxu0
        %v1938 = vpop.f32.mrb[0].mxu0
        %v1939 = vadd.f32 0.0, %v1938
        %v1940 = vpop.f32.mrb[0].mxu0
        %1941 = vmatprep.mubr.bf16.mxu0 0
        %1942 = vmatmul.mubr.bf16.gmra.mrb[0].mxu0 %v1878
        %v1943 = vpop.f32.mrb[0].mxu0
        %v1944 = vadd.f32 0.0, %v1943
        %v1945 = vpop.f32.mrb[0].mxu0
        %v1946 = vpop.f32.mrb[0].mxu0
        %v1947 = vadd.f32 0.0, %v1946
        %v1948 = vpop.f32.mrb[0].mxu0
        %1949 = vmatprep.mubr.bf16.mxu0 0
        %1950 = vmatmul.mubr.bf16.gmra.mrb[0].mxu0 %v1881
        %v1951 = vpop.f32.mrb[0].mxu0
        %v1952 = vadd.f32 0.0, %v1951
        %v1953 = vpop.f32.mrb[0].mxu0
        %v1954 = vpop.f32.mrb[0].mxu0
        %v1955 = vadd.f32 0.0, %v1954
        %v1956 = vpop.f32.mrb[0].mxu0
        %1957 = vmatprep.mubr.bf16.mxu0 0
        %1958 = vmatmul.mubr.bf16.gmra.mrb[0].mxu0 %v1884
        %v1959 = vpop.f32.mrb[0].mxu0
        %v1960 = vadd.f32 0.0, %v1959
        %v1961 = vpop.f32.mrb[0].mxu0
        %v1962 = vpop.f32.mrb[0].mxu0
        %v1963 = vadd.f32 0.0, %v1962
        %v1964 = vpop.f32.mrb[0].mxu0
        %1965 = vmatprep.mubr.bf16.mxu0 0
        %1966 = vmatmul.mubr.bf16.gmra.mrb[0].mxu0 %v1887
        %v1967 = vpop.f32.mrb[0].mxu0
        %v1968 = vadd.f32 0.0, %v1967
        %v1969 = vpop.f32.mrb[0].mxu0
        %v1970 = vpop.f32.mrb[0].mxu0
        %v1971 = vadd.f32 0.0, %v1970
        %v1972 = vpop.f32.mrb[0].mxu0
        %1973 = vmatprep.mubr.bf16.mxu0 0
        %1974 = vmatmul.mubr.bf16.gmra.mrb[0].mxu0 %v1890
        %v1975 = vpop.f32.mrb[0].mxu0
        %v1976 = vadd.f32 0.0, %v1975
        %v1977 = vpop.f32.mrb[0].mxu0
        %v1978 = vpop.f32.mrb[0].mxu0
        %v1979 = vadd.f32 0.0, %v1978
        %v1980 = vpop.f32.mrb[0].mxu0
        %1981 = vmatprep.mubr.bf16.mxu0 0
        %1982 = vmatmul.mubr.bf16.gmra.mrb[0].mxu0 %v1893
        %v1983 = vpop.f32.mrb[0].mxu0
        %v1984 = vadd.f32 0.0, %v1983
        %v1985 = vpop.f32.mrb[0].mxu0
        %v1986 = vpop.f32.mrb[0].mxu0
        %v1987 = vadd.f32 0.0, %v1986
        %v1988 = vpop.f32.mrb[0].mxu0
        %1989 = vmatprep.mubr.bf16.mxu0 0
        %1990 = vmatmul.mubr.bf16.gmra.mrb[0].mxu0 %v1896
        %v1991 = vpop.f32.mrb[0].mxu0
        %v1992 = vadd.f32 0.0, %v1991
        %v1993 = vpop.f32.mrb[0].mxu0
        %v1994 = vpop.f32.mrb[0].mxu0
        %v1995 = vadd.f32 0.0, %v1994
        %v1996 = vpop.f32.mrb[0].mxu0
        %1997 = vmatprep.mubr.bf16.mxu0 0
        %1998 = vmatmul.mubr.bf16.gmra.mrb[0].mxu0 %v1899
        %v1999 = vpop.f32.mrb[0].mxu0
        %v2000 = vadd.f32 0.0, %v1999
        %v2001 = vpop.f32.mrb[0].mxu0
        %v2002 = vpop.f32.mrb[0].mxu0
        %v2003 = vadd.f32 0.0, %v2002
        %v2004 = vpop.f32.mrb[0].mxu0
        %2005 = vdwg.mxu0
        %v2006 = vcombine.low %v787, %v795
        %v2007 = vcombine.low %v794, %v803
        %v2009 = vunpack.c.l.s4 1983009808
        %v2010 = vunpack.c.0.s8 %v2009
        %v2011 = vlaneseq
        %v2012 = vshrl.u32 %v2011, 7
        %v2013 = vsub.s32 %v2010, %v2012
        %v2014 = vrot.slane %v2006, %v2013
        %v2016 = vunpack.c.l.s4 1983009808
        %v2017 = vunpack.c.0.s8 %v2016
        %v2018 = vlaneseq
        %v2019 = vshrl.u32 %v2018, 7
        %v2020 = vsub.s32 %v2017, %v2019
        %v2021 = vrot.slane %v2007, %v2020
        %v2022 = vcombine.low %v2014, %v2021
        %v2023 = vcombine.low %v811, %v810
        %v2024 = vcombine.low %v819, %v827
        %v2026 = vunpack.c.l.s4 1983009808
        %v2027 = vunpack.c.0.s8 %v2026
        %v2028 = vlaneseq
        %v2029 = vshrl.u32 %v2028, 7
        %v2030 = vsub.s32 %v2027, %v2029
        %v2031 = vrot.slane %v2023, %v2030
        %v2033 = vunpack.c.l.s4 1983009808
        %v2034 = vunpack.c.0.s8 %v2033
        %v2035 = vlaneseq
        %v2036 = vshrl.u32 %v2035, 7
        %v2037 = vsub.s32 %v2034, %v2036
        %v2038 = vrot.slane %v2024, %v2037
        %v2039 = vcombine.low %v2031, %v2038
        %v2040 = vcombine.low %v826, %v835
        %v2041 = vcombine.low %v843, %v842
        %v2043 = vunpack.c.l.s4 1983009808
        %v2044 = vunpack.c.0.s8 %v2043
        %v2045 = vlaneseq
        %v2046 = vshrl.u32 %v2045, 7
        %v2047 = vsub.s32 %v2044, %v2046
        %v2048 = vrot.slane %v2040, %v2047
        %v2050 = vunpack.c.l.s4 1983009808
        %v2051 = vunpack.c.0.s8 %v2050
        %v2052 = vlaneseq
        %v2053 = vshrl.u32 %v2052, 7
        %v2054 = vsub.s32 %v2051, %v2053
        %v2055 = vrot.slane %v2041, %v2054
        %v2056 = vcombine.low %v2048, %v2055
        %v2057 = vcombine.low %v851, %v859
        %v2058 = vcombine.low %v858, %v867
        %v2060 = vunpack.c.l.s4 1983009808
        %v2061 = vunpack.c.0.s8 %v2060
        %v2062 = vlaneseq
        %v2063 = vshrl.u32 %v2062, 7
        %v2064 = vsub.s32 %v2061, %v2063
        %v2065 = vrot.slane %v2057, %v2064
        %v2067 = vunpack.c.l.s4 1983009808
        %v2068 = vunpack.c.0.s8 %v2067
        %v2069 = vlaneseq
        %v2070 = vshrl.u32 %v2069, 7
        %v2071 = vsub.s32 %v2068, %v2070
        %v2072 = vrot.slane %v2058, %v2071
        %v2073 = vcombine.low %v2065, %v2072
        %v2074 = vcombine.low %v875, %v874
        %v2075 = vcombine.low %v883, %v891
        %v2077 = vunpack.c.l.s4 1983009808
        %v2078 = vunpack.c.0.s8 %v2077
        %v2079 = vlaneseq
        %v2080 = vshrl.u32 %v2079, 7
        %v2081 = vsub.s32 %v2078, %v2080
        %v2082 = vrot.slane %v2074, %v2081
        %v2084 = vunpack.c.l.s4 1983009808
        %v2085 = vunpack.c.0.s8 %v2084
        %v2086 = vlaneseq
        %v2087 = vshrl.u32 %v2086, 7
        %v2088 = vsub.s32 %v2085, %v2087
        %v2089 = vrot.slane %v2075, %v2088
        %v2090 = vcombine.low %v2082, %v2089
        %v2091 = vcombine.low %v890, %v899
        %v2092 = vcombine.low %v907, %v906
        %v2094 = vunpack.c.l.s4 1983009808
        %v2095 = vunpack.c.0.s8 %v2094
        %v2096 = vlaneseq
        %v2097 = vshrl.u32 %v2096, 7
        %v2098 = vsub.s32 %v2095, %v2097
        %v2099 = vrot.slane %v2091, %v2098
        %v2101 = vunpack.c.l.s4 1983009808
        %v2102 = vunpack.c.0.s8 %v2101
        %v2103 = vlaneseq
        %v2104 = vshrl.u32 %v2103, 7
        %v2105 = vsub.s32 %v2102, %v2104
        %v2106 = vrot.slane %v2092, %v2105
        %v2107 = vcombine.low %v2099, %v2106
        %v2108 = vcombine.low %v915, %v923
        %v2109 = vcombine.low %v922, %v931
        %v2111 = vunpack.c.l.s4 1983009808
        %v2112 = vunpack.c.0.s8 %v2111
        %v2113 = vlaneseq
        %v2114 = vshrl.u32 %v2113, 7
        %v2115 = vsub.s32 %v2112, %v2114
        %v2116 = vrot.slane %v2108, %v2115
        %v2118 = vunpack.c.l.s4 1983009808
        %v2119 = vunpack.c.0.s8 %v2118
        %v2120 = vlaneseq
        %v2121 = vshrl.u32 %v2120, 7
        %v2122 = vsub.s32 %v2119, %v2121
        %v2123 = vrot.slane %v2109, %v2122
        %v2124 = vcombine.low %v2116, %v2123
        %v2125 = vcombine.low %v939, %v938
        %v2126 = vcombine.low %v947, %v955
        %v2128 = vunpack.c.l.s4 1983009808
        %v2129 = vunpack.c.0.s8 %v2128
        %v2130 = vlaneseq
        %v2131 = vshrl.u32 %v2130, 7
        %v2132 = vsub.s32 %v2129, %v2131
        %v2133 = vrot.slane %v2125, %v2132
        %v2135 = vunpack.c.l.s4 1983009808
        %v2136 = vunpack.c.0.s8 %v2135
        %v2137 = vlaneseq
        %v2138 = vshrl.u32 %v2137, 7
        %v2139 = vsub.s32 %v2136, %v2138
        %v2140 = vrot.slane %v2126, %v2139
        %v2141 = vcombine.low %v2133, %v2140
        %v2142 = vcombine.low %v954, %v963
        %v2143 = vcombine.low %v971, %v970
        %v2145 = vunpack.c.l.s4 1983009808
        %v2146 = vunpack.c.0.s8 %v2145
        %v2147 = vlaneseq
        %v2148 = vshrl.u32 %v2147, 7
        %v2149 = vsub.s32 %v2146, %v2148
        %v2150 = vrot.slane %v2142, %v2149
        %v2152 = vunpack.c.l.s4 1983009808
        %v2153 = vunpack.c.0.s8 %v2152
        %v2154 = vlaneseq
        %v2155 = vshrl.u32 %v2154, 7
        %v2156 = vsub.s32 %v2153, %v2155
        %v2157 = vrot.slane %v2143, %v2156
        %v2158 = vcombine.low %v2150, %v2157
        %v2169 = vunpack.c.l.b16 %v972
        %v2170 = vunpack.c.l.b16 %v973
        %v2171 = vunpack.c.l.b16 %v974
        %v2172 = vunpack.c.l.b16 %v975
        %v2173 = vunpack.c.l.b16 %v976
        %v2174 = vunpack.c.l.b16 %v977
        %v2175 = vunpack.c.l.b16 %v978
        %v2176 = vunpack.c.l.b16 %v979
        %v2177 = vunpack.c.l.b16 %v980
        %v2178 = vunpack.c.l.b16 %v981
        %v2179 = vpack.c.b16 %v2170, %v2169
        %v2180 = vpack.c.b16 %v2172, %v2171
        %v2181 = vpack.c.b16 %v2174, %v2173
        %v2182 = vpack.c.b16 %v2176, %v2175
        %v2183 = vpack.c.b16 %v2178, %v2177
        %v2190 = vsel %vm1873, %v2022, 0
        %v2193 = vsel %vm1873, %v2039, 0
        %v2196 = vsel %vm1873, %v2056, 0
        %v2199 = vsel %vm1873, %v2073, 0
        %v2202 = vsel %vm1873, %v2090, 0
        %v2205 = vsel %vm1873, %v2107, 0
        %v2208 = vsel %vm1873, %v2124, 0
        %v2211 = vsel %vm1873, %v2141, 0
        %v2214 = vsel %vm1873, %v2158, 0
        %2216 = vmatprep.subr.bf16.mxu0 0
        %2217 = vmatpush1.bf16.msra.mxu0 %v2179
        %2218 = vmatprep.subr.bf16.mxu0 0
        %2219 = vmatpush1.bf16.msra.mxu0 %v2180
        %2220 = vmatprep.subr.bf16.mxu0 0
        %2221 = vmatpush1.bf16.msra.mxu0 %v2181
        %2222 = vmatprep.subr.bf16.mxu0 0
        %2223 = vmatpush1.bf16.msra.mxu0 %v2182
        %2224 = vmatprep.subr.bf16.mxu0 0
        %2225 = vmatpush1.bf16.msra.mxu0 %v2183
        %2226 = vmatprep.subr.bf16.mxu0 0
        %2227 = vmatpush1.bf16.msra.mxu0 0
        %2228 = vmatprep.subr.bf16.mxu0 0
        %2229 = vmatpush1.bf16.msra.mxu0 0
        %2230 = vmatprep.subr.bf16.mxu0 0
        %2231 = vmatpush1.bf16.msra.mxu0 0
        %2232 = vmatprep.subr.bf16.mxu0 0
        %2233 = vmatpush1.bf16.msra.mxu0 0
        %2234 = vmatprep.subr.bf16.mxu0 0
        %2235 = vmatpush1.bf16.msra.mxu0 0
        %2236 = vmatprep.subr.bf16.mxu0 0
        %2237 = vmatpush1.bf16.msra.mxu0 0
        %2238 = vmatprep.subr.bf16.mxu0 0
        %2239 = vmatpush1.bf16.msra.mxu0 0
        %2240 = vmatprep.subr.bf16.mxu0 0
        %2241 = vmatpush1.bf16.msra.mxu0 0
        %2242 = vmatprep.subr.bf16.mxu0 0
        %2243 = vmatpush1.bf16.msra.mxu0 0
        %2244 = vmatprep.subr.bf16.mxu0 0
        %2245 = vmatpush1.bf16.msra.mxu0 0
        %2246 = vmatprep.subr.bf16.mxu0 0
        %2247 = vmatpush1.bf16.msra.mxu0 0
        %2248 = vmatprep.mubr.bf16.mxu0 0
        %2249 = vmatmul.mubr.bf16.gmra.mrb[0].mxu0 %v2190
        %v2250 = vpop.f32.mrb[0].mxu0
        %v2251 = vadd.f32 %v1936, %v2250
        %v2252 = vpop.f32.mrb[0].mxu0
        %v2253 = vpop.f32.mrb[0].mxu0
        %v2254 = vadd.f32 %v1939, %v2253
        %v2255 = vpop.f32.mrb[0].mxu0
        %2256 = vmatprep.mubr.bf16.mxu0 0
        %2257 = vmatmul.mubr.bf16.gmra.mrb[0].mxu0 %v2193
        %v2258 = vpop.f32.mrb[0].mxu0
        %v2259 = vadd.f32 %v1944, %v2258
        %v2260 = vpop.f32.mrb[0].mxu0
        %v2261 = vpop.f32.mrb[0].mxu0
        %v2262 = vadd.f32 %v1947, %v2261
        %v2263 = vpop.f32.mrb[0].mxu0
        %2264 = vmatprep.mubr.bf16.mxu0 0
        %2265 = vmatmul.mubr.bf16.gmra.mrb[0].mxu0 %v2196
        %v2266 = vpop.f32.mrb[0].mxu0
        %v2267 = vadd.f32 %v1952, %v2266
        %v2268 = vpop.f32.mrb[0].mxu0
        %v2269 = vpop.f32.mrb[0].mxu0
        %v2270 = vadd.f32 %v1955, %v2269
        %v2271 = vpop.f32.mrb[0].mxu0
        %2272 = vmatprep.mubr.bf16.mxu0 0
        %2273 = vmatmul.mubr.bf16.gmra.mrb[0].mxu0 %v2199
        %v2274 = vpop.f32.mrb[0].mxu0
        %v2275 = vadd.f32 %v1960, %v2274
        %v2276 = vpop.f32.mrb[0].mxu0
        %v2277 = vpop.f32.mrb[0].mxu0
        %v2278 = vadd.f32 %v1963, %v2277
        %v2279 = vpop.f32.mrb[0].mxu0
        %2280 = vmatprep.mubr.bf16.mxu0 0
        %2281 = vmatmul.mubr.bf16.gmra.mrb[0].mxu0 %v2202
        %v2282 = vpop.f32.mrb[0].mxu0
        %v2283 = vadd.f32 %v1968, %v2282
        %v2284 = vpop.f32.mrb[0].mxu0
        %v2285 = vpop.f32.mrb[0].mxu0
        %v2286 = vadd.f32 %v1971, %v2285
        %v2287 = vpop.f32.mrb[0].mxu0
        %2288 = vmatprep.mubr.bf16.mxu0 0
        %2289 = vmatmul.mubr.bf16.gmra.mrb[0].mxu0 %v2205
        %v2290 = vpop.f32.mrb[0].mxu0
        %v2291 = vadd.f32 %v1976, %v2290
        %v2292 = vpop.f32.mrb[0].mxu0
        %v2293 = vpop.f32.mrb[0].mxu0
        %v2294 = vadd.f32 %v1979, %v2293
        %v2295 = vpop.f32.mrb[0].mxu0
        %2296 = vmatprep.mubr.bf16.mxu0 0
        %2297 = vmatmul.mubr.bf16.gmra.mrb[0].mxu0 %v2208
        %v2298 = vpop.f32.mrb[0].mxu0
        %v2299 = vadd.f32 %v1984, %v2298
        %v2300 = vpop.f32.mrb[0].mxu0
        %v2301 = vpop.f32.mrb[0].mxu0
        %v2302 = vadd.f32 %v1987, %v2301
        %v2303 = vpop.f32.mrb[0].mxu0
        %2304 = vmatprep.mubr.bf16.mxu0 0
        %2305 = vmatmul.mubr.bf16.gmra.mrb[0].mxu0 %v2211
        %v2306 = vpop.f32.mrb[0].mxu0
        %v2307 = vadd.f32 %v1992, %v2306
        %v2308 = vpop.f32.mrb[0].mxu0
        %v2309 = vpop.f32.mrb[0].mxu0
        %v2310 = vadd.f32 %v1995, %v2309
        %v2311 = vpop.f32.mrb[0].mxu0
        %2312 = vmatprep.mubr.bf16.mxu0 0
        %2313 = vmatmul.mubr.bf16.gmra.mrb[0].mxu0 %v2214
        %v2314 = vpop.f32.mrb[0].mxu0
        %v2315 = vadd.f32 %v2000, %v2314
        %v2316 = vpop.f32.mrb[0].mxu0
        %v2317 = vpop.f32.mrb[0].mxu0
        %v2318 = vadd.f32 %v2003, %v2317
        %v2319 = vpop.f32.mrb[0].mxu0
        %2320 = vdwg.mxu0
        %s2321 = scalar_lea.vmem [#allocation2], 16
        %v2322 = vld [vmem:[%s2321] sm:$0x3f]
        %v2323 = vld [vmem:[%s2321 + $0x8] sm:$0x3f]
        %v2324 = vld [vmem:[%s2321 + $0x10] sm:$0x3f]
        %v2325 = vld [vmem:[%s2321 + $0x18] sm:$0x3f]
        %v2326 = vld [vmem:[%s2321 + $0x20] sm:$0x3f]
        %v2327 = vld [vmem:[%s2321 + $0x28] sm:$0x3f]
        %v2328 = vld [vmem:[%s2321 + $0x30] sm:$0x3f]
        %v2329 = vld [vmem:[%s2321 + $0x38] sm:$0x3f]
        %v2330 = vld [vmem:[%s2321 + $0x40] sm:$0x3f]
        %v2331 = vld [vmem:[%s2321 + $0x48] sm:$0x3f]
        %v2332 = vld [vmem:[%s2321 + $0x50] sm:$0x3f]
        %v2333 = vld [vmem:[%s2321 + $0x58] sm:$0x3f]
        %v2334 = vld [vmem:[%s2321] sm:$0x7f]
        %v2335 = vld [vmem:[%s2321 + $0x8] sm:$0x7f]
        %v2336 = vld [vmem:[%s2321 + $0x10] sm:$0x7f]
        %v2337 = vld [vmem:[%s2321 + $0x18] sm:$0x7f]
        %v2338 = vld [vmem:[%s2321 + $0x20] sm:$0x7f]
        %v2339 = vld [vmem:[%s2321 + $0x28] sm:$0x7f]
        %v2340 = vld [vmem:[%s2321 + $0x30] sm:$0x7f]
        %v2341 = vld [vmem:[%s2321 + $0x38] sm:$0x7f]
        %v2342 = vld [vmem:[%s2321 + $0x40] sm:$0x7f]
        %v2343 = vld [vmem:[%s2321 + $0x48] sm:$0x7f]
        %v2344 = vld [vmem:[%s2321 + $0x50] sm:$0x7f]
        %v2345 = vld [vmem:[%s2321 + $0x58] sm:$0x7f]
        %v2346 = vld [vmem:[%s2321] sm:$0x7e]
        %v2347 = vld [vmem:[%s2321 + $0x8] sm:$0x7e]
        %v2348 = vld [vmem:[%s2321 + $0x10] sm:$0x7e]
        %v2349 = vld [vmem:[%s2321 + $0x18] sm:$0x7e]
        %v2350 = vld [vmem:[%s2321 + $0x20] sm:$0x7e]
        %v2351 = vld [vmem:[%s2321 + $0x28] sm:$0x7e]
        %v2352 = vld [vmem:[%s2321 + $0x30] sm:$0x7e]
        %v2353 = vld [vmem:[%s2321 + $0x38] sm:$0x7e]
        %v2354 = vld [vmem:[%s2321 + $0x40] sm:$0x7e]
        %v2355 = vld [vmem:[%s2321 + $0x48] sm:$0x7e]
        %v2356 = vld [vmem:[%s2321 + $0x50] sm:$0x7e]
        %v2357 = vld [vmem:[%s2321 + $0x58] sm:$0x7e]
        %v2358 = vld [vmem:[%s2321] sm:$0xfe]
        %v2359 = vld [vmem:[%s2321 + $0x8] sm:$0xfe]
        %v2360 = vld [vmem:[%s2321 + $0x10] sm:$0xfe]
        %v2361 = vld [vmem:[%s2321 + $0x18] sm:$0xfe]
        %v2362 = vld [vmem:[%s2321 + $0x20] sm:$0xfe]
        %v2363 = vld [vmem:[%s2321 + $0x28] sm:$0xfe]
        %v2364 = vld [vmem:[%s2321 + $0x30] sm:$0xfe]
        %v2365 = vld [vmem:[%s2321 + $0x38] sm:$0xfe]
        %v2366 = vld [vmem:[%s2321 + $0x40] sm:$0xfe]
        %v2367 = vld [vmem:[%s2321 + $0x48] sm:$0xfe]
        %v2368 = vld [vmem:[%s2321 + $0x50] sm:$0xfe]
        %v2369 = vld [vmem:[%s2321 + $0x58] sm:$0xfe]
        %v2370 = vld [vmem:[%s2321] sm:$0xfc]
        %v2371 = vld [vmem:[%s2321 + $0x8] sm:$0xfc]
        %v2372 = vld [vmem:[%s2321 + $0x10] sm:$0xfc]
        %v2373 = vld [vmem:[%s2321 + $0x18] sm:$0xfc]
        %v2374 = vld [vmem:[%s2321 + $0x20] sm:$0xfc]
        %v2375 = vld [vmem:[%s2321 + $0x28] sm:$0xfc]
        %v2376 = vld [vmem:[%s2321 + $0x30] sm:$0xfc]
        %v2377 = vld [vmem:[%s2321 + $0x38] sm:$0xfc]
        %v2378 = vld [vmem:[%s2321 + $0x40] sm:$0xfc]
        %v2379 = vld [vmem:[%s2321 + $0x48] sm:$0xfc]
        %v2380 = vld [vmem:[%s2321 + $0x50] sm:$0xfc]
        %v2381 = vld [vmem:[%s2321 + $0x58] sm:$0xfc]
        %v2383 = vshrl.u32 %v2334, 16
        %v2385 = vshll.u32 %v2334, 16
        %v2387 = vrot.slane %v2385, 1
        %v2388 = vor.u32 %v2383, %v2387
        %v2390 = vshrl.u32 %v2335, 16
        %v2392 = vshll.u32 %v2335, 16
        %v2394 = vrot.slane %v2392, 1
        %v2395 = vor.u32 %v2390, %v2394
        %v2397 = vshrl.u32 %v2336, 16
        %v2399 = vshll.u32 %v2336, 16
        %v2401 = vrot.slane %v2399, 1
        %v2402 = vor.u32 %v2397, %v2401
        %v2404 = vshrl.u32 %v2337, 16
        %v2406 = vshll.u32 %v2337, 16
        %v2408 = vrot.slane %v2406, 1
        %v2409 = vor.u32 %v2404, %v2408
        %v2411 = vshrl.u32 %v2338, 16
        %v2413 = vshll.u32 %v2338, 16
        %v2415 = vrot.slane %v2413, 1
        %v2416 = vor.u32 %v2411, %v2415
        %v2418 = vshrl.u32 %v2339, 16
        %v2420 = vshll.u32 %v2339, 16
        %v2422 = vrot.slane %v2420, 1
        %v2423 = vor.u32 %v2418, %v2422
        %v2425 = vshrl.u32 %v2340, 16
        %v2427 = vshll.u32 %v2340, 16
        %v2429 = vrot.slane %v2427, 1
        %v2430 = vor.u32 %v2425, %v2429
        %v2432 = vshrl.u32 %v2341, 16
        %v2434 = vshll.u32 %v2341, 16
        %v2436 = vrot.slane %v2434, 1
        %v2437 = vor.u32 %v2432, %v2436
        %v2439 = vshrl.u32 %v2342, 16
        %v2441 = vshll.u32 %v2342, 16
        %v2443 = vrot.slane %v2441, 1
        %v2444 = vor.u32 %v2439, %v2443
        %v2446 = vshrl.u32 %v2343, 16
        %v2448 = vshll.u32 %v2343, 16
        %v2450 = vrot.slane %v2448, 1
        %v2451 = vor.u32 %v2446, %v2450
        %v2453 = vshrl.u32 %v2344, 16
        %v2455 = vshll.u32 %v2344, 16
        %v2457 = vrot.slane %v2455, 1
        %v2458 = vor.u32 %v2453, %v2457
        %v2460 = vshrl.u32 %v2345, 16
        %v2462 = vshll.u32 %v2345, 16
        %v2464 = vrot.slane %v2462, 1
        %v2465 = vor.u32 %v2460, %v2464
        %2466 = vrot.lane.b32.xlu0 %v2388, 16
        %v2467 = vpop.permute.xlu0 %2466
        %2468 = vrot.lane.b32.xlu0 %v2395, 16
        %v2469 = vpop.permute.xlu0 %2468
        %2470 = vrot.lane.b32.xlu0 %v2402, 16
        %v2471 = vpop.permute.xlu0 %2470
        %2472 = vrot.lane.b32.xlu0 %v2409, 16
        %v2473 = vpop.permute.xlu0 %2472
        %2474 = vrot.lane.b32.xlu0 %v2416, 16
        %v2475 = vpop.permute.xlu0 %2474
        %2476 = vrot.lane.b32.xlu0 %v2423, 16
        %v2477 = vpop.permute.xlu0 %2476
        %2478 = vrot.lane.b32.xlu0 %v2430, 16
        %v2479 = vpop.permute.xlu0 %2478
        %2480 = vrot.lane.b32.xlu0 %v2437, 16
        %v2481 = vpop.permute.xlu0 %2480
        %2482 = vrot.lane.b32.xlu0 %v2444, 16
        %v2483 = vpop.permute.xlu0 %2482
        %2484 = vrot.lane.b32.xlu0 %v2451, 16
        %v2485 = vpop.permute.xlu0 %2484
        %2486 = vrot.lane.b32.xlu0 %v2458, 16
        %v2487 = vpop.permute.xlu0 %2486
        %2488 = vrot.lane.b32.xlu0 %v2465, 16
        %v2489 = vpop.permute.xlu0 %2488
        %v2502 = vrot.slane %v2346, 1
        %v2503 = vrot.slane %v2347, 1
        %v2504 = vrot.slane %v2348, 1
        %v2505 = vrot.slane %v2349, 1
        %v2506 = vrot.slane %v2350, 1
        %v2507 = vrot.slane %v2351, 1
        %v2508 = vrot.slane %v2352, 1
        %v2509 = vrot.slane %v2353, 1
        %v2510 = vrot.slane %v2354, 1
        %v2511 = vrot.slane %v2355, 1
        %v2512 = vrot.slane %v2356, 1
        %v2513 = vrot.slane %v2357, 1
        %2514 = vrot.lane.b32.xlu0 %v2502, 32
        %v2515 = vpop.permute.xlu0 %2514
        %2516 = vrot.lane.b32.xlu0 %v2503, 32
        %v2517 = vpop.permute.xlu0 %2516
        %2518 = vrot.lane.b32.xlu0 %v2504, 32
        %v2519 = vpop.permute.xlu0 %2518
        %2520 = vrot.lane.b32.xlu0 %v2505, 32
        %v2521 = vpop.permute.xlu0 %2520
        %2522 = vrot.lane.b32.xlu0 %v2506, 32
        %v2523 = vpop.permute.xlu0 %2522
        %2524 = vrot.lane.b32.xlu0 %v2507, 32
        %v2525 = vpop.permute.xlu0 %2524
        %2526 = vrot.lane.b32.xlu0 %v2508, 32
        %v2527 = vpop.permute.xlu0 %2526
        %2528 = vrot.lane.b32.xlu0 %v2509, 32
        %v2529 = vpop.permute.xlu0 %2528
        %2530 = vrot.lane.b32.xlu0 %v2510, 32
        %v2531 = vpop.permute.xlu0 %2530
        %2532 = vrot.lane.b32.xlu0 %v2511, 32
        %v2533 = vpop.permute.xlu0 %2532
        %2534 = vrot.lane.b32.xlu0 %v2512, 32
        %v2535 = vpop.permute.xlu0 %2534
        %2536 = vrot.lane.b32.xlu0 %v2513, 32
        %v2537 = vpop.permute.xlu0 %2536
        %v2539 = vshrl.u32 %v2358, 16
        %v2541 = vrot.slane %v2539, 1
        %v2542 = vshll.u32 %v2358, 16
        %v2544 = vrot.slane %v2542, 2
        %v2545 = vor.u32 %v2541, %v2544
        %v2547 = vshrl.u32 %v2359, 16
        %v2549 = vrot.slane %v2547, 1
        %v2550 = vshll.u32 %v2359, 16
        %v2552 = vrot.slane %v2550, 2
        %v2553 = vor.u32 %v2549, %v2552
        %v2555 = vshrl.u32 %v2360, 16
        %v2557 = vrot.slane %v2555, 1
        %v2558 = vshll.u32 %v2360, 16
        %v2560 = vrot.slane %v2558, 2
        %v2561 = vor.u32 %v2557, %v2560
        %v2563 = vshrl.u32 %v2361, 16
        %v2565 = vrot.slane %v2563, 1
        %v2566 = vshll.u32 %v2361, 16
        %v2568 = vrot.slane %v2566, 2
        %v2569 = vor.u32 %v2565, %v2568
        %v2571 = vshrl.u32 %v2362, 16
        %v2573 = vrot.slane %v2571, 1
        %v2574 = vshll.u32 %v2362, 16
        %v2576 = vrot.slane %v2574, 2
        %v2577 = vor.u32 %v2573, %v2576
        %v2579 = vshrl.u32 %v2363, 16
        %v2581 = vrot.slane %v2579, 1
        %v2582 = vshll.u32 %v2363, 16
        %v2584 = vrot.slane %v2582, 2
        %v2585 = vor.u32 %v2581, %v2584
        %v2587 = vshrl.u32 %v2364, 16
        %v2589 = vrot.slane %v2587, 1
        %v2590 = vshll.u32 %v2364, 16
        %v2592 = vrot.slane %v2590, 2
        %v2593 = vor.u32 %v2589, %v2592
        %v2595 = vshrl.u32 %v2365, 16
        %v2597 = vrot.slane %v2595, 1
        %v2598 = vshll.u32 %v2365, 16
        %v2600 = vrot.slane %v2598, 2
        %v2601 = vor.u32 %v2597, %v2600
        %v2603 = vshrl.u32 %v2366, 16
        %v2605 = vrot.slane %v2603, 1
        %v2606 = vshll.u32 %v2366, 16
        %v2608 = vrot.slane %v2606, 2
        %v2609 = vor.u32 %v2605, %v2608
        %v2611 = vshrl.u32 %v2367, 16
        %v2613 = vrot.slane %v2611, 1
        %v2614 = vshll.u32 %v2367, 16
        %v2616 = vrot.slane %v2614, 2
        %v2617 = vor.u32 %v2613, %v2616
        %v2619 = vshrl.u32 %v2368, 16
        %v2621 = vrot.slane %v2619, 1
        %v2622 = vshll.u32 %v2368, 16
        %v2624 = vrot.slane %v2622, 2
        %v2625 = vor.u32 %v2621, %v2624
        %v2627 = vshrl.u32 %v2369, 16
        %v2629 = vrot.slane %v2627, 1
        %v2630 = vshll.u32 %v2369, 16
        %v2632 = vrot.slane %v2630, 2
        %v2633 = vor.u32 %v2629, %v2632
        %2634 = vrot.lane.b32.xlu0 %v2545, 48
        %v2635 = vpop.permute.xlu0 %2634
        %2636 = vrot.lane.b32.xlu0 %v2553, 48
        %v2637 = vpop.permute.xlu0 %2636
        %2638 = vrot.lane.b32.xlu0 %v2561, 48
        %v2639 = vpop.permute.xlu0 %2638
        %2640 = vrot.lane.b32.xlu0 %v2569, 48
        %v2641 = vpop.permute.xlu0 %2640
        %2642 = vrot.lane.b32.xlu0 %v2577, 48
        %v2643 = vpop.permute.xlu0 %2642
        %2644 = vrot.lane.b32.xlu0 %v2585, 48
        %v2645 = vpop.permute.xlu0 %2644
        %2646 = vrot.lane.b32.xlu0 %v2593, 48
        %v2647 = vpop.permute.xlu0 %2646
        %2648 = vrot.lane.b32.xlu0 %v2601, 48
        %v2649 = vpop.permute.xlu0 %2648
        %2650 = vrot.lane.b32.xlu0 %v2609, 48
        %v2651 = vpop.permute.xlu0 %2650
        %2652 = vrot.lane.b32.xlu0 %v2617, 48
        %v2653 = vpop.permute.xlu0 %2652
        %2654 = vrot.lane.b32.xlu0 %v2625, 48
        %v2655 = vpop.permute.xlu0 %2654
        %2656 = vrot.lane.b32.xlu0 %v2633, 48
        %v2657 = vpop.permute.xlu0 %2656
        %v2670 = vrot.slane %v2370, 2
        %v2671 = vrot.slane %v2371, 2
        %v2672 = vrot.slane %v2372, 2
        %v2673 = vrot.slane %v2373, 2
        %v2674 = vrot.slane %v2374, 2
        %v2675 = vrot.slane %v2375, 2
        %v2676 = vrot.slane %v2376, 2
        %v2677 = vrot.slane %v2377, 2
        %v2678 = vrot.slane %v2378, 2
        %v2679 = vrot.slane %v2379, 2
        %v2680 = vrot.slane %v2380, 2
        %v2681 = vrot.slane %v2381, 2
        %2682 = vrot.lane.b32.xlu0 %v2670, 64
        %v2683 = vpop.permute.xlu0 %2682
        %2684 = vrot.lane.b32.xlu0 %v2671, 64
        %v2685 = vpop.permute.xlu0 %2684
        %2686 = vrot.lane.b32.xlu0 %v2672, 64
        %v2687 = vpop.permute.xlu0 %2686
        %2688 = vrot.lane.b32.xlu0 %v2673, 64
        %v2689 = vpop.permute.xlu0 %2688
        %2690 = vrot.lane.b32.xlu0 %v2674, 64
        %v2691 = vpop.permute.xlu0 %2690
        %2692 = vrot.lane.b32.xlu0 %v2675, 64
        %v2693 = vpop.permute.xlu0 %2692
        %2694 = vrot.lane.b32.xlu0 %v2676, 64
        %v2695 = vpop.permute.xlu0 %2694
        %2696 = vrot.lane.b32.xlu0 %v2677, 64
        %v2697 = vpop.permute.xlu0 %2696
        %2698 = vrot.lane.b32.xlu0 %v2678, 64
        %v2699 = vpop.permute.xlu0 %2698
        %2700 = vrot.lane.b32.xlu0 %v2679, 64
        %v2701 = vpop.permute.xlu0 %2700
        %2702 = vrot.lane.b32.xlu0 %v2680, 64
        %v2703 = vpop.permute.xlu0 %2702
        %2704 = vrot.lane.b32.xlu0 %v2681, 64
        %v2705 = vpop.permute.xlu0 %2704
        %v2708 = vsel %vm198, %v2322, %v2467
        %v2711 = vsel %vm198, %v2323, %v2469
        %v2714 = vsel %vm198, %v2324, %v2471
        %v2717 = vsel %vm198, %v2325, %v2473
        %v2720 = vsel %vm198, %v2326, %v2475
        %v2723 = vsel %vm198, %v2327, %v2477
        %v2726 = vsel %vm198, %v2328, %v2479
        %v2729 = vsel %vm198, %v2329, %v2481
        %v2732 = vsel %vm198, %v2330, %v2483
        %v2735 = vsel %vm198, %v2331, %v2485
        %v2738 = vsel %vm198, %v2332, %v2487
        %v2741 = vsel %vm198, %v2333, %v2489
        %v2743 = vsel %vm693, %v2708, %v2515
        %v2745 = vsel %vm693, %v2711, %v2517
        %v2747 = vsel %vm693, %v2714, %v2519
        %v2749 = vsel %vm693, %v2717, %v2521
        %v2751 = vsel %vm693, %v2720, %v2523
        %v2753 = vsel %vm693, %v2723, %v2525
        %v2755 = vsel %vm693, %v2726, %v2527
        %v2757 = vsel %vm693, %v2729, %v2529
        %v2759 = vsel %vm693, %v2732, %v2531
        %v2761 = vsel %vm693, %v2735, %v2533
        %v2763 = vsel %vm693, %v2738, %v2535
        %v2765 = vsel %vm693, %v2741, %v2537
        %v2767 = vsel %vm718, %v2743, %v2635
        %v2769 = vsel %vm718, %v2745, %v2637
        %v2771 = vsel %vm718, %v2747, %v2639
        %v2773 = vsel %vm718, %v2749, %v2641
        %v2775 = vsel %vm718, %v2751, %v2643
        %v2777 = vsel %vm718, %v2753, %v2645
        %v2779 = vsel %vm718, %v2755, %v2647
        %v2781 = vsel %vm718, %v2757, %v2649
        %v2783 = vsel %vm718, %v2759, %v2651
        %v2785 = vsel %vm718, %v2761, %v2653
        %v2787 = vsel %vm718, %v2763, %v2655
        %v2789 = vsel %vm718, %v2765, %v2657
        %v2791 = vsel %vm743, %v2767, %v2683
        %v2793 = vsel %vm743, %v2769, %v2685
        %v2795 = vsel %vm743, %v2771, %v2687
        %v2797 = vsel %vm743, %v2773, %v2689
        %v2799 = vsel %vm743, %v2775, %v2691
        %v2801 = vsel %vm743, %v2777, %v2693
        %v2803 = vsel %vm743, %v2779, %v2695
        %v2805 = vsel %vm743, %v2781, %v2697
        %v2807 = vsel %vm743, %v2783, %v2699
        %v2809 = vsel %vm743, %v2785, %v2701
        %v2811 = vsel %vm743, %v2787, %v2703
        %v2813 = vsel %vm743, %v2789, %v2705
        %v2826 = vcombine.high %v2791, %v2791
        %v2828 = vunpack.c.l.s4 1983009808
        %v2829 = vunpack.c.0.s8 %v2828
        %v2830 = vlaneseq
        %v2831 = vshrl.u32 %v2830, 7
        %v2832 = vsub.s32 %v2829, %v2831
        %v2833 = vrot.slane %v2791, %v2832
        %v2835 = vunpack.c.l.s4 1983009808
        %v2836 = vunpack.c.0.s8 %v2835
        %v2837 = vlaneseq
        %v2838 = vshrl.u32 %v2837, 7
        %v2839 = vsub.s32 %v2836, %v2838
        %v2840 = vrot.slane %v2826, %v2839
        %v2841 = vcombine.high %v2833, %v2833
        %v2842 = vcombine.high %v2793, %v2793
        %v2844 = vunpack.c.l.s4 1983009808
        %v2845 = vunpack.c.0.s8 %v2844
        %v2846 = vlaneseq
        %v2847 = vshrl.u32 %v2846, 7
        %v2848 = vsub.s32 %v2845, %v2847
        %v2849 = vrot.slane %v2793, %v2848
        %v2851 = vunpack.c.l.s4 1983009808
        %v2852 = vunpack.c.0.s8 %v2851
        %v2853 = vlaneseq
        %v2854 = vshrl.u32 %v2853, 7
        %v2855 = vsub.s32 %v2852, %v2854
        %v2856 = vrot.slane %v2842, %v2855
        %v2857 = vcombine.high %v2849, %v2849
        %v2858 = vcombine.high %v2795, %v2795
        %v2860 = vunpack.c.l.s4 1983009808
        %v2861 = vunpack.c.0.s8 %v2860
        %v2862 = vlaneseq
        %v2863 = vshrl.u32 %v2862, 7
        %v2864 = vsub.s32 %v2861, %v2863
        %v2865 = vrot.slane %v2795, %v2864
        %v2867 = vunpack.c.l.s4 1983009808
        %v2868 = vunpack.c.0.s8 %v2867
        %v2869 = vlaneseq
        %v2870 = vshrl.u32 %v2869, 7
        %v2871 = vsub.s32 %v2868, %v2870
        %v2872 = vrot.slane %v2858, %v2871
        %v2873 = vcombine.high %v2865, %v2865
        %v2874 = vcombine.high %v2797, %v2797
        %v2876 = vunpack.c.l.s4 1983009808
        %v2877 = vunpack.c.0.s8 %v2876
        %v2878 = vlaneseq
        %v2879 = vshrl.u32 %v2878, 7
        %v2880 = vsub.s32 %v2877, %v2879
        %v2881 = vrot.slane %v2797, %v2880
        %v2883 = vunpack.c.l.s4 1983009808
        %v2884 = vunpack.c.0.s8 %v2883
        %v2885 = vlaneseq
        %v2886 = vshrl.u32 %v2885, 7
        %v2887 = vsub.s32 %v2884, %v2886
        %v2888 = vrot.slane %v2874, %v2887
        %v2889 = vcombine.high %v2881, %v2881
        %v2890 = vcombine.high %v2799, %v2799
        %v2892 = vunpack.c.l.s4 1983009808
        %v2893 = vunpack.c.0.s8 %v2892
        %v2894 = vlaneseq
        %v2895 = vshrl.u32 %v2894, 7
        %v2896 = vsub.s32 %v2893, %v2895
        %v2897 = vrot.slane %v2799, %v2896
        %v2899 = vunpack.c.l.s4 1983009808
        %v2900 = vunpack.c.0.s8 %v2899
        %v2901 = vlaneseq
        %v2902 = vshrl.u32 %v2901, 7
        %v2903 = vsub.s32 %v2900, %v2902
        %v2904 = vrot.slane %v2890, %v2903
        %v2905 = vcombine.high %v2897, %v2897
        %v2906 = vcombine.high %v2801, %v2801
        %v2908 = vunpack.c.l.s4 1983009808
        %v2909 = vunpack.c.0.s8 %v2908
        %v2910 = vlaneseq
        %v2911 = vshrl.u32 %v2910, 7
        %v2912 = vsub.s32 %v2909, %v2911
        %v2913 = vrot.slane %v2801, %v2912
        %v2915 = vunpack.c.l.s4 1983009808
        %v2916 = vunpack.c.0.s8 %v2915
        %v2917 = vlaneseq
        %v2918 = vshrl.u32 %v2917, 7
        %v2919 = vsub.s32 %v2916, %v2918
        %v2920 = vrot.slane %v2906, %v2919
        %v2921 = vcombine.high %v2913, %v2913
        %v2922 = vcombine.high %v2803, %v2803
        %v2924 = vunpack.c.l.s4 1983009808
        %v2925 = vunpack.c.0.s8 %v2924
        %v2926 = vlaneseq
        %v2927 = vshrl.u32 %v2926, 7
        %v2928 = vsub.s32 %v2925, %v2927
        %v2929 = vrot.slane %v2803, %v2928
        %v2931 = vunpack.c.l.s4 1983009808
        %v2932 = vunpack.c.0.s8 %v2931
        %v2933 = vlaneseq
        %v2934 = vshrl.u32 %v2933, 7
        %v2935 = vsub.s32 %v2932, %v2934
        %v2936 = vrot.slane %v2922, %v2935
        %v2937 = vcombine.high %v2929, %v2929
        %v2938 = vcombine.high %v2805, %v2805
        %v2940 = vunpack.c.l.s4 1983009808
        %v2941 = vunpack.c.0.s8 %v2940
        %v2942 = vlaneseq
        %v2943 = vshrl.u32 %v2942, 7
        %v2944 = vsub.s32 %v2941, %v2943
        %v2945 = vrot.slane %v2805, %v2944
        %v2947 = vunpack.c.l.s4 1983009808
        %v2948 = vunpack.c.0.s8 %v2947
        %v2949 = vlaneseq
        %v2950 = vshrl.u32 %v2949, 7
        %v2951 = vsub.s32 %v2948, %v2950
        %v2952 = vrot.slane %v2938, %v2951
        %v2953 = vcombine.high %v2945, %v2945
        %v2954 = vcombine.high %v2807, %v2807
        %v2956 = vunpack.c.l.s4 1983009808
        %v2957 = vunpack.c.0.s8 %v2956
        %v2958 = vlaneseq
        %v2959 = vshrl.u32 %v2958, 7
        %v2960 = vsub.s32 %v2957, %v2959
        %v2961 = vrot.slane %v2807, %v2960
        %v2963 = vunpack.c.l.s4 1983009808
        %v2964 = vunpack.c.0.s8 %v2963
        %v2965 = vlaneseq
        %v2966 = vshrl.u32 %v2965, 7
        %v2967 = vsub.s32 %v2964, %v2966
        %v2968 = vrot.slane %v2954, %v2967
        %v2969 = vcombine.high %v2961, %v2961
        %v2970 = vcombine.high %v2809, %v2809
        %v2972 = vunpack.c.l.s4 1983009808
        %v2973 = vunpack.c.0.s8 %v2972
        %v2974 = vlaneseq
        %v2975 = vshrl.u32 %v2974, 7
        %v2976 = vsub.s32 %v2973, %v2975
        %v2977 = vrot.slane %v2809, %v2976
        %v2979 = vunpack.c.l.s4 1983009808
        %v2980 = vunpack.c.0.s8 %v2979
        %v2981 = vlaneseq
        %v2982 = vshrl.u32 %v2981, 7
        %v2983 = vsub.s32 %v2980, %v2982
        %v2984 = vrot.slane %v2970, %v2983
        %v2985 = vcombine.high %v2977, %v2977
        %v2986 = vcombine.high %v2811, %v2811
        %v2988 = vunpack.c.l.s4 1983009808
        %v2989 = vunpack.c.0.s8 %v2988
        %v2990 = vlaneseq
        %v2991 = vshrl.u32 %v2990, 7
        %v2992 = vsub.s32 %v2989, %v2991
        %v2993 = vrot.slane %v2811, %v2992
        %v2995 = vunpack.c.l.s4 1983009808
        %v2996 = vunpack.c.0.s8 %v2995
        %v2997 = vlaneseq
        %v2998 = vshrl.u32 %v2997, 7
        %v2999 = vsub.s32 %v2996, %v2998
        %v3000 = vrot.slane %v2986, %v2999
        %v3001 = vcombine.high %v2993, %v2993
        %v3002 = vcombine.high %v2813, %v2813
        %v3004 = vunpack.c.l.s4 1983009808
        %v3005 = vunpack.c.0.s8 %v3004
        %v3006 = vlaneseq
        %v3007 = vshrl.u32 %v3006, 7
        %v3008 = vsub.s32 %v3005, %v3007
        %v3009 = vrot.slane %v2813, %v3008
        %v3011 = vunpack.c.l.s4 1983009808
        %v3012 = vunpack.c.0.s8 %v3011
        %v3013 = vlaneseq
        %v3014 = vshrl.u32 %v3013, 7
        %v3015 = vsub.s32 %v3012, %v3014
        %v3016 = vrot.slane %v3002, %v3015
        %v3017 = vcombine.high %v3009, %v3009
        %s3018 = scalar_lea.vmem [#allocation3], 80
        %v3019 = vld [vmem:[%s3018] sm:$0xf]
        %v3020 = vld [vmem:[%s3018 + $0x4] sm:$0xf]
        %v3021 = vld [vmem:[%s3018 + $0x8] sm:$0xf]
        %v3022 = vld [vmem:[%s3018 + $0xc] sm:$0xf]
        %v3023 = vld [vmem:[%s3018 + $0x10] sm:$0xf]
        %v3024 = vld [vmem:[%s3018 + $0x14] sm:$0xf]
        %v3025 = vld [vmem:[%s3018 + $0x18] sm:$0xf]
        %v3026 = vld [vmem:[%s3018 + $0x1c] sm:$0xf]
        %v3027 = vld [vmem:[%s3018 + $0x20] sm:$0xf]
        %v3028 = vld [vmem:[%s3018 + $0x24] sm:$0xf]
        %v3029 = vcombine.low %v2833, %v2841
        %v3030 = vcombine.low %v2840, %v2849
        %v3032 = vunpack.c.l.s4 1983009808
        %v3033 = vunpack.c.0.s8 %v3032
        %v3034 = vlaneseq
        %v3035 = vshrl.u32 %v3034, 7
        %v3036 = vsub.s32 %v3033, %v3035
        %v3037 = vrot.slane %v3029, %v3036
        %v3039 = vunpack.c.l.s4 1983009808
        %v3040 = vunpack.c.0.s8 %v3039
        %v3041 = vlaneseq
        %v3042 = vshrl.u32 %v3041, 7
        %v3043 = vsub.s32 %v3040, %v3042
        %v3044 = vrot.slane %v3030, %v3043
        %v3045 = vcombine.low %v3037, %v3044
        %v3046 = vcombine.low %v2857, %v2856
        %v3047 = vcombine.low %v2865, %v2873
        %v3049 = vunpack.c.l.s4 1983009808
        %v3050 = vunpack.c.0.s8 %v3049
        %v3051 = vlaneseq
        %v3052 = vshrl.u32 %v3051, 7
        %v3053 = vsub.s32 %v3050, %v3052
        %v3054 = vrot.slane %v3046, %v3053
        %v3056 = vunpack.c.l.s4 1983009808
        %v3057 = vunpack.c.0.s8 %v3056
        %v3058 = vlaneseq
        %v3059 = vshrl.u32 %v3058, 7
        %v3060 = vsub.s32 %v3057, %v3059
        %v3061 = vrot.slane %v3047, %v3060
        %v3062 = vcombine.low %v3054, %v3061
        %v3063 = vcombine.low %v2872, %v2881
        %v3064 = vcombine.low %v2889, %v2888
        %v3066 = vunpack.c.l.s4 1983009808
        %v3067 = vunpack.c.0.s8 %v3066
        %v3068 = vlaneseq
        %v3069 = vshrl.u32 %v3068, 7
        %v3070 = vsub.s32 %v3067, %v3069
        %v3071 = vrot.slane %v3063, %v3070
        %v3073 = vunpack.c.l.s4 1983009808
        %v3074 = vunpack.c.0.s8 %v3073
        %v3075 = vlaneseq
        %v3076 = vshrl.u32 %v3075, 7
        %v3077 = vsub.s32 %v3074, %v3076
        %v3078 = vrot.slane %v3064, %v3077
        %v3079 = vcombine.low %v3071, %v3078
        %v3080 = vcombine.low %v2897, %v2905
        %v3081 = vcombine.low %v2904, %v2913
        %v3083 = vunpack.c.l.s4 1983009808
        %v3084 = vunpack.c.0.s8 %v3083
        %v3085 = vlaneseq
        %v3086 = vshrl.u32 %v3085, 7
        %v3087 = vsub.s32 %v3084, %v3086
        %v3088 = vrot.slane %v3080, %v3087
        %v3090 = vunpack.c.l.s4 1983009808
        %v3091 = vunpack.c.0.s8 %v3090
        %v3092 = vlaneseq
        %v3093 = vshrl.u32 %v3092, 7
        %v3094 = vsub.s32 %v3091, %v3093
        %v3095 = vrot.slane %v3081, %v3094
        %v3096 = vcombine.low %v3088, %v3095
        %v3097 = vcombine.low %v2921, %v2920
        %v3098 = vcombine.low %v2929, %v2937
        %v3100 = vunpack.c.l.s4 1983009808
        %v3101 = vunpack.c.0.s8 %v3100
        %v3102 = vlaneseq
        %v3103 = vshrl.u32 %v3102, 7
        %v3104 = vsub.s32 %v3101, %v3103
        %v3105 = vrot.slane %v3097, %v3104
        %v3107 = vunpack.c.l.s4 1983009808
        %v3108 = vunpack.c.0.s8 %v3107
        %v3109 = vlaneseq
        %v3110 = vshrl.u32 %v3109, 7
        %v3111 = vsub.s32 %v3108, %v3110
        %v3112 = vrot.slane %v3098, %v3111
        %v3113 = vcombine.low %v3105, %v3112
        %v3114 = vcombine.low %v2936, %v2945
        %v3115 = vcombine.low %v2953, %v2952
        %v3117 = vunpack.c.l.s4 1983009808
        %v3118 = vunpack.c.0.s8 %v3117
        %v3119 = vlaneseq
        %v3120 = vshrl.u32 %v3119, 7
        %v3121 = vsub.s32 %v3118, %v3120
        %v3122 = vrot.slane %v3114, %v3121
        %v3124 = vunpack.c.l.s4 1983009808
        %v3125 = vunpack.c.0.s8 %v3124
        %v3126 = vlaneseq
        %v3127 = vshrl.u32 %v3126, 7
        %v3128 = vsub.s32 %v3125, %v3127
        %v3129 = vrot.slane %v3115, %v3128
        %v3130 = vcombine.low %v3122, %v3129
        %v3131 = vcombine.low %v2961, %v2969
        %v3132 = vcombine.low %v2968, %v2977
        %v3134 = vunpack.c.l.s4 1983009808
        %v3135 = vunpack.c.0.s8 %v3134
        %v3136 = vlaneseq
        %v3137 = vshrl.u32 %v3136, 7
        %v3138 = vsub.s32 %v3135, %v3137
        %v3139 = vrot.slane %v3131, %v3138
        %v3141 = vunpack.c.l.s4 1983009808
        %v3142 = vunpack.c.0.s8 %v3141
        %v3143 = vlaneseq
        %v3144 = vshrl.u32 %v3143, 7
        %v3145 = vsub.s32 %v3142, %v3144
        %v3146 = vrot.slane %v3132, %v3145
        %v3147 = vcombine.low %v3139, %v3146
        %v3148 = vcombine.low %v2985, %v2984
        %v3149 = vcombine.low %v2993, %v3001
        %v3151 = vunpack.c.l.s4 1983009808
        %v3152 = vunpack.c.0.s8 %v3151
        %v3153 = vlaneseq
        %v3154 = vshrl.u32 %v3153, 7
        %v3155 = vsub.s32 %v3152, %v3154
        %v3156 = vrot.slane %v3148, %v3155
        %v3158 = vunpack.c.l.s4 1983009808
        %v3159 = vunpack.c.0.s8 %v3158
        %v3160 = vlaneseq
        %v3161 = vshrl.u32 %v3160, 7
        %v3162 = vsub.s32 %v3159, %v3161
        %v3163 = vrot.slane %v3149, %v3162
        %v3164 = vcombine.low %v3156, %v3163
        %v3165 = vcombine.low %v3000, %v3009
        %v3166 = vcombine.low %v3017, %v3016
        %v3168 = vunpack.c.l.s4 1983009808
        %v3169 = vunpack.c.0.s8 %v3168
        %v3170 = vlaneseq
        %v3171 = vshrl.u32 %v3170, 7
        %v3172 = vsub.s32 %v3169, %v3171
        %v3173 = vrot.slane %v3165, %v3172
        %v3175 = vunpack.c.l.s4 1983009808
        %v3176 = vunpack.c.0.s8 %v3175
        %v3177 = vlaneseq
        %v3178 = vshrl.u32 %v3177, 7
        %v3179 = vsub.s32 %v3176, %v3178
        %v3180 = vrot.slane %v3166, %v3179
        %v3181 = vcombine.low %v3173, %v3180
        %v3192 = vunpack.c.l.b16 %v3019
        %v3193 = vunpack.c.l.b16 %v3020
        %v3194 = vunpack.c.l.b16 %v3021
        %v3195 = vunpack.c.l.b16 %v3022
        %v3196 = vunpack.c.l.b16 %v3023
        %v3197 = vunpack.c.l.b16 %v3024
        %v3198 = vunpack.c.l.b16 %v3025
        %v3199 = vunpack.c.l.b16 %v3026
        %v3200 = vunpack.c.l.b16 %v3027
        %v3201 = vunpack.c.l.b16 %v3028
        %v3202 = vpack.c.b16 %v3193, %v3192
        %v3203 = vpack.c.b16 %v3195, %v3194
        %v3204 = vpack.c.b16 %v3197, %v3196
        %v3205 = vpack.c.b16 %v3199, %v3198
        %v3206 = vpack.c.b16 %v3201, %v3200
        %v3213 = vsel %vm1873, %v3045, 0
        %v3216 = vsel %vm1873, %v3062, 0
        %v3219 = vsel %vm1873, %v3079, 0
        %v3222 = vsel %vm1873, %v3096, 0
        %v3225 = vsel %vm1873, %v3113, 0
        %v3228 = vsel %vm1873, %v3130, 0
        %v3231 = vsel %vm1873, %v3147, 0
        %v3234 = vsel %vm1873, %v3164, 0
        %v3237 = vsel %vm1873, %v3181, 0
        %3239 = vmatprep.subr.bf16.mxu0 0
        %3240 = vmatpush1.bf16.msra.mxu0 %v3202
        %3241 = vmatprep.subr.bf16.mxu0 0
        %3242 = vmatpush1.bf16.msra.mxu0 %v3203
        %3243 = vmatprep.subr.bf16.mxu0 0
        %3244 = vmatpush1.bf16.msra.mxu0 %v3204
        %3245 = vmatprep.subr.bf16.mxu0 0
        %3246 = vmatpush1.bf16.msra.mxu0 %v3205
        %3247 = vmatprep.subr.bf16.mxu0 0
        %3248 = vmatpush1.bf16.msra.mxu0 %v3206
        %3249 = vmatprep.subr.bf16.mxu0 0
        %3250 = vmatpush1.bf16.msra.mxu0 0
        %3251 = vmatprep.subr.bf16.mxu0 0
        %3252 = vmatpush1.bf16.msra.mxu0 0
        %3253 = vmatprep.subr.bf16.mxu0 0
        %3254 = vmatpush1.bf16.msra.mxu0 0
        %3255 = vmatprep.subr.bf16.mxu0 0
        %3256 = vmatpush1.bf16.msra.mxu0 0
        %3257 = vmatprep.subr.bf16.mxu0 0
        %3258 = vmatpush1.bf16.msra.mxu0 0
        %3259 = vmatprep.subr.bf16.mxu0 0
        %3260 = vmatpush1.bf16.msra.mxu0 0
        %3261 = vmatprep.subr.bf16.mxu0 0
        %3262 = vmatpush1.bf16.msra.mxu0 0
        %3263 = vmatprep.subr.bf16.mxu0 0
        %3264 = vmatpush1.bf16.msra.mxu0 0
        %3265 = vmatprep.subr.bf16.mxu0 0
        %3266 = vmatpush1.bf16.msra.mxu0 0
        %3267 = vmatprep.subr.bf16.mxu0 0
        %3268 = vmatpush1.bf16.msra.mxu0 0
        %3269 = vmatprep.subr.bf16.mxu0 0
        %3270 = vmatpush1.bf16.msra.mxu0 0
        %3271 = vmatprep.mubr.bf16.mxu0 0
        %3272 = vmatmul.mubr.bf16.gmra.mrb[0].mxu0 %v3213
        %v3273 = vpop.f32.mrb[0].mxu0
        %v3274 = vadd.f32 0.0, %v3273
        %v3275 = vpop.f32.mrb[0].mxu0
        %v3276 = vpop.f32.mrb[0].mxu0
        %v3277 = vadd.f32 0.0, %v3276
        %v3278 = vpop.f32.mrb[0].mxu0
        %3279 = vmatprep.mubr.bf16.mxu0 0
        %3280 = vmatmul.mubr.bf16.gmra.mrb[0].mxu0 %v3216
        %v3281 = vpop.f32.mrb[0].mxu0
        %v3282 = vadd.f32 0.0, %v3281
        %v3283 = vpop.f32.mrb[0].mxu0
        %v3284 = vpop.f32.mrb[0].mxu0
        %v3285 = vadd.f32 0.0, %v3284
        %v3286 = vpop.f32.mrb[0].mxu0
        %3287 = vmatprep.mubr.bf16.mxu0 0
        %3288 = vmatmul.mubr.bf16.gmra.mrb[0].mxu0 %v3219
        %v3289 = vpop.f32.mrb[0].mxu0
        %v3290 = vadd.f32 0.0, %v3289
        %v3291 = vpop.f32.mrb[0].mxu0
        %v3292 = vpop.f32.mrb[0].mxu0
        %v3293 = vadd.f32 0.0, %v3292
        %v3294 = vpop.f32.mrb[0].mxu0
        %3295 = vmatprep.mubr.bf16.mxu0 0
        %3296 = vmatmul.mubr.bf16.gmra.mrb[0].mxu0 %v3222
        %v3297 = vpop.f32.mrb[0].mxu0
        %v3298 = vadd.f32 0.0, %v3297
        %v3299 = vpop.f32.mrb[0].mxu0
        %v3300 = vpop.f32.mrb[0].mxu0
        %v3301 = vadd.f32 0.0, %v3300
        %v3302 = vpop.f32.mrb[0].mxu0
        %3303 = vmatprep.mubr.bf16.mxu0 0
        %3304 = vmatmul.mubr.bf16.gmra.mrb[0].mxu0 %v3225
        %v3305 = vpop.f32.mrb[0].mxu0
        %v3306 = vadd.f32 0.0, %v3305
        %v3307 = vpop.f32.mrb[0].mxu0
        %v3308 = vpop.f32.mrb[0].mxu0
        %v3309 = vadd.f32 0.0, %v3308
        %v3310 = vpop.f32.mrb[0].mxu0
        %3311 = vmatprep.mubr.bf16.mxu0 0
        %3312 = vmatmul.mubr.bf16.gmra.mrb[0].mxu0 %v3228
        %v3313 = vpop.f32.mrb[0].mxu0
        %v3314 = vadd.f32 0.0, %v3313
        %v3315 = vpop.f32.mrb[0].mxu0
        %v3316 = vpop.f32.mrb[0].mxu0
        %v3317 = vadd.f32 0.0, %v3316
        %v3318 = vpop.f32.mrb[0].mxu0
        %3319 = vmatprep.mubr.bf16.mxu0 0
        %3320 = vmatmul.mubr.bf16.gmra.mrb[0].mxu0 %v3231
        %v3321 = vpop.f32.mrb[0].mxu0
        %v3322 = vadd.f32 0.0, %v3321
        %v3323 = vpop.f32.mrb[0].mxu0
        %v3324 = vpop.f32.mrb[0].mxu0
        %v3325 = vadd.f32 0.0, %v3324
        %v3326 = vpop.f32.mrb[0].mxu0
        %3327 = vmatprep.mubr.bf16.mxu0 0
        %3328 = vmatmul.mubr.bf16.gmra.mrb[0].mxu0 %v3234
        %v3329 = vpop.f32.mrb[0].mxu0
        %v3330 = vadd.f32 0.0, %v3329
        %v3331 = vpop.f32.mrb[0].mxu0
        %v3332 = vpop.f32.mrb[0].mxu0
        %v3333 = vadd.f32 0.0, %v3332
        %v3334 = vpop.f32.mrb[0].mxu0
        %3335 = vmatprep.mubr.bf16.mxu0 0
        %3336 = vmatmul.mubr.bf16.gmra.mrb[0].mxu0 %v3237
        %v3337 = vpop.f32.mrb[0].mxu0
        %v3338 = vadd.f32 0.0, %v3337
        %v3339 = vpop.f32.mrb[0].mxu0
        %v3340 = vpop.f32.mrb[0].mxu0
        %v3341 = vadd.f32 0.0, %v3340
        %v3342 = vpop.f32.mrb[0].mxu0
        %3343 = vdwg.mxu0
        %v3344 = vadd.f32 %v2251, %v3274
        %v3345 = vadd.f32 %v2254, %v3277
        %v3346 = vadd.f32 %v2259, %v3282
        %v3347 = vadd.f32 %v2262, %v3285
        %v3348 = vadd.f32 %v2267, %v3290
        %v3349 = vadd.f32 %v2270, %v3293
        %v3350 = vadd.f32 %v2275, %v3298
        %v3351 = vadd.f32 %v2278, %v3301
        %v3352 = vadd.f32 %v2283, %v3306
        %v3353 = vadd.f32 %v2286, %v3309
        %v3354 = vadd.f32 %v2291, %v3314
        %v3355 = vadd.f32 %v2294, %v3317
        %v3356 = vadd.f32 %v2299, %v3322
        %v3357 = vadd.f32 %v2302, %v3325
        %v3358 = vadd.f32 %v2307, %v3330
        %v3359 = vadd.f32 %v2310, %v3333
        %v3360 = vadd.f32 %v2315, %v3338
        %v3361 = vadd.f32 %v2318, %v3341
        %s3362 = scalar_lea.vmem [#allocation2], 24
        %v3363 = vld [vmem:[%s3362] sm:$0x3f]
        %v3364 = vld [vmem:[%s3362 + $0x8] sm:$0x3f]
        %v3365 = vld [vmem:[%s3362 + $0x10] sm:$0x3f]
        %v3366 = vld [vmem:[%s3362 + $0x18] sm:$0x3f]
        %v3367 = vld [vmem:[%s3362 + $0x20] sm:$0x3f]
        %v3368 = vld [vmem:[%s3362 + $0x28] sm:$0x3f]
        %v3369 = vld [vmem:[%s3362 + $0x30] sm:$0x3f]
        %v3370 = vld [vmem:[%s3362 + $0x38] sm:$0x3f]
        %v3371 = vld [vmem:[%s3362 + $0x40] sm:$0x3f]
        %v3372 = vld [vmem:[%s3362 + $0x48] sm:$0x3f]
        %v3373 = vld [vmem:[%s3362 + $0x50] sm:$0x3f]
        %v3374 = vld [vmem:[%s3362 + $0x58] sm:$0x3f]
        %v3375 = vld [vmem:[%s3362] sm:$0x7f]
        %v3376 = vld [vmem:[%s3362 + $0x8] sm:$0x7f]
        %v3377 = vld [vmem:[%s3362 + $0x10] sm:$0x7f]
        %v3378 = vld [vmem:[%s3362 + $0x18] sm:$0x7f]
        %v3379 = vld [vmem:[%s3362 + $0x20] sm:$0x7f]
        %v3380 = vld [vmem:[%s3362 + $0x28] sm:$0x7f]
        %v3381 = vld [vmem:[%s3362 + $0x30] sm:$0x7f]
        %v3382 = vld [vmem:[%s3362 + $0x38] sm:$0x7f]
        %v3383 = vld [vmem:[%s3362 + $0x40] sm:$0x7f]
        %v3384 = vld [vmem:[%s3362 + $0x48] sm:$0x7f]
        %v3385 = vld [vmem:[%s3362 + $0x50] sm:$0x7f]
        %v3386 = vld [vmem:[%s3362 + $0x58] sm:$0x7f]
        %v3387 = vld [vmem:[%s3362] sm:$0x7e]
        %v3388 = vld [vmem:[%s3362 + $0x8] sm:$0x7e]
        %v3389 = vld [vmem:[%s3362 + $0x10] sm:$0x7e]
        %v3390 = vld [vmem:[%s3362 + $0x18] sm:$0x7e]
        %v3391 = vld [vmem:[%s3362 + $0x20] sm:$0x7e]
        %v3392 = vld [vmem:[%s3362 + $0x28] sm:$0x7e]
        %v3393 = vld [vmem:[%s3362 + $0x30] sm:$0x7e]
        %v3394 = vld [vmem:[%s3362 + $0x38] sm:$0x7e]
        %v3395 = vld [vmem:[%s3362 + $0x40] sm:$0x7e]
        %v3396 = vld [vmem:[%s3362 + $0x48] sm:$0x7e]
        %v3397 = vld [vmem:[%s3362 + $0x50] sm:$0x7e]
        %v3398 = vld [vmem:[%s3362 + $0x58] sm:$0x7e]
        %v3399 = vld [vmem:[%s3362] sm:$0xfe]
        %v3400 = vld [vmem:[%s3362 + $0x8] sm:$0xfe]
        %v3401 = vld [vmem:[%s3362 + $0x10] sm:$0xfe]
        %v3402 = vld [vmem:[%s3362 + $0x18] sm:$0xfe]
        %v3403 = vld [vmem:[%s3362 + $0x20] sm:$0xfe]
        %v3404 = vld [vmem:[%s3362 + $0x28] sm:$0xfe]
        %v3405 = vld [vmem:[%s3362 + $0x30] sm:$0xfe]
        %v3406 = vld [vmem:[%s3362 + $0x38] sm:$0xfe]
        %v3407 = vld [vmem:[%s3362 + $0x40] sm:$0xfe]
        %v3408 = vld [vmem:[%s3362 + $0x48] sm:$0xfe]
        %v3409 = vld [vmem:[%s3362 + $0x50] sm:$0xfe]
        %v3410 = vld [vmem:[%s3362 + $0x58] sm:$0xfe]
        %v3411 = vld [vmem:[%s3362] sm:$0xfc]
        %v3412 = vld [vmem:[%s3362 + $0x8] sm:$0xfc]
        %v3413 = vld [vmem:[%s3362 + $0x10] sm:$0xfc]
        %v3414 = vld [vmem:[%s3362 + $0x18] sm:$0xfc]
        %v3415 = vld [vmem:[%s3362 + $0x20] sm:$0xfc]
        %v3416 = vld [vmem:[%s3362 + $0x28] sm:$0xfc]
        %v3417 = vld [vmem:[%s3362 + $0x30] sm:$0xfc]
        %v3418 = vld [vmem:[%s3362 + $0x38] sm:$0xfc]
        %v3419 = vld [vmem:[%s3362 + $0x40] sm:$0xfc]
        %v3420 = vld [vmem:[%s3362 + $0x48] sm:$0xfc]
        %v3421 = vld [vmem:[%s3362 + $0x50] sm:$0xfc]
        %v3422 = vld [vmem:[%s3362 + $0x58] sm:$0xfc]
        %v3424 = vshrl.u32 %v3375, 16
        %v3426 = vshll.u32 %v3375, 16
        %v3428 = vrot.slane %v3426, 1
        %v3429 = vor.u32 %v3424, %v3428
        %v3431 = vshrl.u32 %v3376, 16
        %v3433 = vshll.u32 %v3376, 16
        %v3435 = vrot.slane %v3433, 1
        %v3436 = vor.u32 %v3431, %v3435
        %v3438 = vshrl.u32 %v3377, 16
        %v3440 = vshll.u32 %v3377, 16
        %v3442 = vrot.slane %v3440, 1
        %v3443 = vor.u32 %v3438, %v3442
        %v3445 = vshrl.u32 %v3378, 16
        %v3447 = vshll.u32 %v3378, 16
        %v3449 = vrot.slane %v3447, 1
        %v3450 = vor.u32 %v3445, %v3449
        %v3452 = vshrl.u32 %v3379, 16
        %v3454 = vshll.u32 %v3379, 16
        %v3456 = vrot.slane %v3454, 1
        %v3457 = vor.u32 %v3452, %v3456
        %v3459 = vshrl.u32 %v3380, 16
        %v3461 = vshll.u32 %v3380, 16
        %v3463 = vrot.slane %v3461, 1
        %v3464 = vor.u32 %v3459, %v3463
        %v3466 = vshrl.u32 %v3381, 16
        %v3468 = vshll.u32 %v3381, 16
        %v3470 = vrot.slane %v3468, 1
        %v3471 = vor.u32 %v3466, %v3470
        %v3473 = vshrl.u32 %v3382, 16
        %v3475 = vshll.u32 %v3382, 16
        %v3477 = vrot.slane %v3475, 1
        %v3478 = vor.u32 %v3473, %v3477
        %v3480 = vshrl.u32 %v3383, 16
        %v3482 = vshll.u32 %v3383, 16
        %v3484 = vrot.slane %v3482, 1
        %v3485 = vor.u32 %v3480, %v3484
        %v3487 = vshrl.u32 %v3384, 16
        %v3489 = vshll.u32 %v3384, 16
        %v3491 = vrot.slane %v3489, 1
        %v3492 = vor.u32 %v3487, %v3491
        %v3494 = vshrl.u32 %v3385, 16
        %v3496 = vshll.u32 %v3385, 16
        %v3498 = vrot.slane %v3496, 1
        %v3499 = vor.u32 %v3494, %v3498
        %v3501 = vshrl.u32 %v3386, 16
        %v3503 = vshll.u32 %v3386, 16
        %v3505 = vrot.slane %v3503, 1
        %v3506 = vor.u32 %v3501, %v3505
        %3507 = vrot.lane.b32.xlu0 %v3429, 16
        %v3508 = vpop.permute.xlu0 %3507
        %3509 = vrot.lane.b32.xlu0 %v3436, 16
        %v3510 = vpop.permute.xlu0 %3509
        %3511 = vrot.lane.b32.xlu0 %v3443, 16
        %v3512 = vpop.permute.xlu0 %3511
        %3513 = vrot.lane.b32.xlu0 %v3450, 16
        %v3514 = vpop.permute.xlu0 %3513
        %3515 = vrot.lane.b32.xlu0 %v3457, 16
        %v3516 = vpop.permute.xlu0 %3515
        %3517 = vrot.lane.b32.xlu0 %v3464, 16
        %v3518 = vpop.permute.xlu0 %3517
        %3519 = vrot.lane.b32.xlu0 %v3471, 16
        %v3520 = vpop.permute.xlu0 %3519
        %3521 = vrot.lane.b32.xlu0 %v3478, 16
        %v3522 = vpop.permute.xlu0 %3521
        %3523 = vrot.lane.b32.xlu0 %v3485, 16
        %v3524 = vpop.permute.xlu0 %3523
        %3525 = vrot.lane.b32.xlu0 %v3492, 16
        %v3526 = vpop.permute.xlu0 %3525
        %3527 = vrot.lane.b32.xlu0 %v3499, 16
        %v3528 = vpop.permute.xlu0 %3527
        %3529 = vrot.lane.b32.xlu0 %v3506, 16
        %v3530 = vpop.permute.xlu0 %3529
        %v3543 = vrot.slane %v3387, 1
        %v3544 = vrot.slane %v3388, 1
        %v3545 = vrot.slane %v3389, 1
        %v3546 = vrot.slane %v3390, 1
        %v3547 = vrot.slane %v3391, 1
        %v3548 = vrot.slane %v3392, 1
        %v3549 = vrot.slane %v3393, 1
        %v3550 = vrot.slane %v3394, 1
        %v3551 = vrot.slane %v3395, 1
        %v3552 = vrot.slane %v3396, 1
        %v3553 = vrot.slane %v3397, 1
        %v3554 = vrot.slane %v3398, 1
        %3555 = vrot.lane.b32.xlu0 %v3543, 32
        %v3556 = vpop.permute.xlu0 %3555
        %3557 = vrot.lane.b32.xlu0 %v3544, 32
        %v3558 = vpop.permute.xlu0 %3557
        %3559 = vrot.lane.b32.xlu0 %v3545, 32
        %v3560 = vpop.permute.xlu0 %3559
        %3561 = vrot.lane.b32.xlu0 %v3546, 32
        %v3562 = vpop.permute.xlu0 %3561
        %3563 = vrot.lane.b32.xlu0 %v3547, 32
        %v3564 = vpop.permute.xlu0 %3563
        %3565 = vrot.lane.b32.xlu0 %v3548, 32
        %v3566 = vpop.permute.xlu0 %3565
        %3567 = vrot.lane.b32.xlu0 %v3549, 32
        %v3568 = vpop.permute.xlu0 %3567
        %3569 = vrot.lane.b32.xlu0 %v3550, 32
        %v3570 = vpop.permute.xlu0 %3569
        %3571 = vrot.lane.b32.xlu0 %v3551, 32
        %v3572 = vpop.permute.xlu0 %3571
        %3573 = vrot.lane.b32.xlu0 %v3552, 32
        %v3574 = vpop.permute.xlu0 %3573
        %3575 = vrot.lane.b32.xlu0 %v3553, 32
        %v3576 = vpop.permute.xlu0 %3575
        %3577 = vrot.lane.b32.xlu0 %v3554, 32
        %v3578 = vpop.permute.xlu0 %3577
        %v3580 = vshrl.u32 %v3399, 16
        %v3582 = vrot.slane %v3580, 1
        %v3583 = vshll.u32 %v3399, 16
        %v3585 = vrot.slane %v3583, 2
        %v3586 = vor.u32 %v3582, %v3585
        %v3588 = vshrl.u32 %v3400, 16
        %v3590 = vrot.slane %v3588, 1
        %v3591 = vshll.u32 %v3400, 16
        %v3593 = vrot.slane %v3591, 2
        %v3594 = vor.u32 %v3590, %v3593
        %v3596 = vshrl.u32 %v3401, 16
        %v3598 = vrot.slane %v3596, 1
        %v3599 = vshll.u32 %v3401, 16
        %v3601 = vrot.slane %v3599, 2
        %v3602 = vor.u32 %v3598, %v3601
        %v3604 = vshrl.u32 %v3402, 16
        %v3606 = vrot.slane %v3604, 1
        %v3607 = vshll.u32 %v3402, 16
        %v3609 = vrot.slane %v3607, 2
        %v3610 = vor.u32 %v3606, %v3609
        %v3612 = vshrl.u32 %v3403, 16
        %v3614 = vrot.slane %v3612, 1
        %v3615 = vshll.u32 %v3403, 16
        %v3617 = vrot.slane %v3615, 2
        %v3618 = vor.u32 %v3614, %v3617
        %v3620 = vshrl.u32 %v3404, 16
        %v3622 = vrot.slane %v3620, 1
        %v3623 = vshll.u32 %v3404, 16
        %v3625 = vrot.slane %v3623, 2
        %v3626 = vor.u32 %v3622, %v3625
        %v3628 = vshrl.u32 %v3405, 16
        %v3630 = vrot.slane %v3628, 1
        %v3631 = vshll.u32 %v3405, 16
        %v3633 = vrot.slane %v3631, 2
        %v3634 = vor.u32 %v3630, %v3633
        %v3636 = vshrl.u32 %v3406, 16
        %v3638 = vrot.slane %v3636, 1
        %v3639 = vshll.u32 %v3406, 16
        %v3641 = vrot.slane %v3639, 2
        %v3642 = vor.u32 %v3638, %v3641
        %v3644 = vshrl.u32 %v3407, 16
        %v3646 = vrot.slane %v3644, 1
        %v3647 = vshll.u32 %v3407, 16
        %v3649 = vrot.slane %v3647, 2
        %v3650 = vor.u32 %v3646, %v3649
        %v3652 = vshrl.u32 %v3408, 16
        %v3654 = vrot.slane %v3652, 1
        %v3655 = vshll.u32 %v3408, 16
        %v3657 = vrot.slane %v3655, 2
        %v3658 = vor.u32 %v3654, %v3657
        %v3660 = vshrl.u32 %v3409, 16
        %v3662 = vrot.slane %v3660, 1
        %v3663 = vshll.u32 %v3409, 16
        %v3665 = vrot.slane %v3663, 2
        %v3666 = vor.u32 %v3662, %v3665
        %v3668 = vshrl.u32 %v3410, 16
        %v3670 = vrot.slane %v3668, 1
        %v3671 = vshll.u32 %v3410, 16
        %v3673 = vrot.slane %v3671, 2
        %v3674 = vor.u32 %v3670, %v3673
        %3675 = vrot.lane.b32.xlu0 %v3586, 48
        %v3676 = vpop.permute.xlu0 %3675
        %3677 = vrot.lane.b32.xlu0 %v3594, 48
        %v3678 = vpop.permute.xlu0 %3677
        %3679 = vrot.lane.b32.xlu0 %v3602, 48
        %v3680 = vpop.permute.xlu0 %3679
        %3681 = vrot.lane.b32.xlu0 %v3610, 48
        %v3682 = vpop.permute.xlu0 %3681
        %3683 = vrot.lane.b32.xlu0 %v3618, 48
        %v3684 = vpop.permute.xlu0 %3683
        %3685 = vrot.lane.b32.xlu0 %v3626, 48
        %v3686 = vpop.permute.xlu0 %3685
        %3687 = vrot.lane.b32.xlu0 %v3634, 48
        %v3688 = vpop.permute.xlu0 %3687
        %3689 = vrot.lane.b32.xlu0 %v3642, 48
        %v3690 = vpop.permute.xlu0 %3689
        %3691 = vrot.lane.b32.xlu0 %v3650, 48
        %v3692 = vpop.permute.xlu0 %3691
        %3693 = vrot.lane.b32.xlu0 %v3658, 48
        %v3694 = vpop.permute.xlu0 %3693
        %3695 = vrot.lane.b32.xlu0 %v3666, 48
        %v3696 = vpop.permute.xlu0 %3695
        %3697 = vrot.lane.b32.xlu0 %v3674, 48
        %v3698 = vpop.permute.xlu0 %3697
        %v3711 = vrot.slane %v3411, 2
        %v3712 = vrot.slane %v3412, 2
        %v3713 = vrot.slane %v3413, 2
        %v3714 = vrot.slane %v3414, 2
        %v3715 = vrot.slane %v3415, 2
        %v3716 = vrot.slane %v3416, 2
        %v3717 = vrot.slane %v3417, 2
        %v3718 = vrot.slane %v3418, 2
        %v3719 = vrot.slane %v3419, 2
        %v3720 = vrot.slane %v3420, 2
        %v3721 = vrot.slane %v3421, 2
        %v3722 = vrot.slane %v3422, 2
        %3723 = vrot.lane.b32.xlu0 %v3711, 64
        %v3724 = vpop.permute.xlu0 %3723
        %3725 = vrot.lane.b32.xlu0 %v3712, 64
        %v3726 = vpop.permute.xlu0 %3725
        %3727 = vrot.lane.b32.xlu0 %v3713, 64
        %v3728 = vpop.permute.xlu0 %3727
        %3729 = vrot.lane.b32.xlu0 %v3714, 64
        %v3730 = vpop.permute.xlu0 %3729
        %3731 = vrot.lane.b32.xlu0 %v3715, 64
        %v3732 = vpop.permute.xlu0 %3731
        %3733 = vrot.lane.b32.xlu0 %v3716, 64
        %v3734 = vpop.permute.xlu0 %3733
        %3735 = vrot.lane.b32.xlu0 %v3717, 64
        %v3736 = vpop.permute.xlu0 %3735
        %3737 = vrot.lane.b32.xlu0 %v3718, 64
        %v3738 = vpop.permute.xlu0 %3737
        %3739 = vrot.lane.b32.xlu0 %v3719, 64
        %v3740 = vpop.permute.xlu0 %3739
        %3741 = vrot.lane.b32.xlu0 %v3720, 64
        %v3742 = vpop.permute.xlu0 %3741
        %3743 = vrot.lane.b32.xlu0 %v3721, 64
        %v3744 = vpop.permute.xlu0 %3743
        %3745 = vrot.lane.b32.xlu0 %v3722, 64
        %v3746 = vpop.permute.xlu0 %3745
        %v3749 = vsel %vm198, %v3363, %v3508
        %v3752 = vsel %vm198, %v3364, %v3510
        %v3755 = vsel %vm198, %v3365, %v3512
        %v3758 = vsel %vm198, %v3366, %v3514
        %v3761 = vsel %vm198, %v3367, %v3516
        %v3764 = vsel %vm198, %v3368, %v3518
        %v3767 = vsel %vm198, %v3369, %v3520
        %v3770 = vsel %vm198, %v3370, %v3522
        %v3773 = vsel %vm198, %v3371, %v3524
        %v3776 = vsel %vm198, %v3372, %v3526
        %v3779 = vsel %vm198, %v3373, %v3528
        %v3782 = vsel %vm198, %v3374, %v3530
        %v3784 = vsel %vm693, %v3749, %v3556
        %v3786 = vsel %vm693, %v3752, %v3558
        %v3788 = vsel %vm693, %v3755, %v3560
        %v3790 = vsel %vm693, %v3758, %v3562
        %v3792 = vsel %vm693, %v3761, %v3564
        %v3794 = vsel %vm693, %v3764, %v3566
        %v3796 = vsel %vm693, %v3767, %v3568
        %v3798 = vsel %vm693, %v3770, %v3570
        %v3800 = vsel %vm693, %v3773, %v3572
        %v3802 = vsel %vm693, %v3776, %v3574
        %v3804 = vsel %vm693, %v3779, %v3576
        %v3806 = vsel %vm693, %v3782, %v3578
        %v3808 = vsel %vm718, %v3784, %v3676
        %v3810 = vsel %vm718, %v3786, %v3678
        %v3812 = vsel %vm718, %v3788, %v3680
        %v3814 = vsel %vm718, %v3790, %v3682
        %v3816 = vsel %vm718, %v3792, %v3684
        %v3818 = vsel %vm718, %v3794, %v3686
        %v3820 = vsel %vm718, %v3796, %v3688
        %v3822 = vsel %vm718, %v3798, %v3690
        %v3824 = vsel %vm718, %v3800, %v3692
        %v3826 = vsel %vm718, %v3802, %v3694
        %v3828 = vsel %vm718, %v3804, %v3696
        %v3830 = vsel %vm718, %v3806, %v3698
        %v3832 = vsel %vm743, %v3808, %v3724
        %v3834 = vsel %vm743, %v3810, %v3726
        %v3836 = vsel %vm743, %v3812, %v3728
        %v3838 = vsel %vm743, %v3814, %v3730
        %v3840 = vsel %vm743, %v3816, %v3732
        %v3842 = vsel %vm743, %v3818, %v3734
        %v3844 = vsel %vm743, %v3820, %v3736
        %v3846 = vsel %vm743, %v3822, %v3738
        %v3848 = vsel %vm743, %v3824, %v3740
        %v3850 = vsel %vm743, %v3826, %v3742
        %v3852 = vsel %vm743, %v3828, %v3744
        %v3854 = vsel %vm743, %v3830, %v3746
        %v3867 = vcombine.high %v3832, %v3832
        %v3869 = vunpack.c.l.s4 1983009808
        %v3870 = vunpack.c.0.s8 %v3869
        %v3871 = vlaneseq
        %v3872 = vshrl.u32 %v3871, 7
        %v3873 = vsub.s32 %v3870, %v3872
        %v3874 = vrot.slane %v3832, %v3873
        %v3876 = vunpack.c.l.s4 1983009808
        %v3877 = vunpack.c.0.s8 %v3876
        %v3878 = vlaneseq
        %v3879 = vshrl.u32 %v3878, 7
        %v3880 = vsub.s32 %v3877, %v3879
        %v3881 = vrot.slane %v3867, %v3880
        %v3882 = vcombine.high %v3874, %v3874
        %v3883 = vcombine.high %v3834, %v3834
        %v3885 = vunpack.c.l.s4 1983009808
        %v3886 = vunpack.c.0.s8 %v3885
        %v3887 = vlaneseq
        %v3888 = vshrl.u32 %v3887, 7
        %v3889 = vsub.s32 %v3886, %v3888
        %v3890 = vrot.slane %v3834, %v3889
        %v3892 = vunpack.c.l.s4 1983009808
        %v3893 = vunpack.c.0.s8 %v3892
        %v3894 = vlaneseq
        %v3895 = vshrl.u32 %v3894, 7
        %v3896 = vsub.s32 %v3893, %v3895
        %v3897 = vrot.slane %v3883, %v3896
        %v3898 = vcombine.high %v3890, %v3890
        %v3899 = vcombine.high %v3836, %v3836
        %v3901 = vunpack.c.l.s4 1983009808
        %v3902 = vunpack.c.0.s8 %v3901
        %v3903 = vlaneseq
        %v3904 = vshrl.u32 %v3903, 7
        %v3905 = vsub.s32 %v3902, %v3904
        %v3906 = vrot.slane %v3836, %v3905
        %v3908 = vunpack.c.l.s4 1983009808
        %v3909 = vunpack.c.0.s8 %v3908
        %v3910 = vlaneseq
        %v3911 = vshrl.u32 %v3910, 7
        %v3912 = vsub.s32 %v3909, %v3911
        %v3913 = vrot.slane %v3899, %v3912
        %v3914 = vcombine.high %v3906, %v3906
        %v3915 = vcombine.high %v3838, %v3838
        %v3917 = vunpack.c.l.s4 1983009808
        %v3918 = vunpack.c.0.s8 %v3917
        %v3919 = vlaneseq
        %v3920 = vshrl.u32 %v3919, 7
        %v3921 = vsub.s32 %v3918, %v3920
        %v3922 = vrot.slane %v3838, %v3921
        %v3924 = vunpack.c.l.s4 1983009808
        %v3925 = vunpack.c.0.s8 %v3924
        %v3926 = vlaneseq
        %v3927 = vshrl.u32 %v3926, 7
        %v3928 = vsub.s32 %v3925, %v3927
        %v3929 = vrot.slane %v3915, %v3928
        %v3930 = vcombine.high %v3922, %v3922
        %v3931 = vcombine.high %v3840, %v3840
        %v3933 = vunpack.c.l.s4 1983009808
        %v3934 = vunpack.c.0.s8 %v3933
        %v3935 = vlaneseq
        %v3936 = vshrl.u32 %v3935, 7
        %v3937 = vsub.s32 %v3934, %v3936
        %v3938 = vrot.slane %v3840, %v3937
        %v3940 = vunpack.c.l.s4 1983009808
        %v3941 = vunpack.c.0.s8 %v3940
        %v3942 = vlaneseq
        %v3943 = vshrl.u32 %v3942, 7
        %v3944 = vsub.s32 %v3941, %v3943
        %v3945 = vrot.slane %v3931, %v3944
        %v3946 = vcombine.high %v3938, %v3938
        %v3947 = vcombine.high %v3842, %v3842
        %v3949 = vunpack.c.l.s4 1983009808
        %v3950 = vunpack.c.0.s8 %v3949
        %v3951 = vlaneseq
        %v3952 = vshrl.u32 %v3951, 7
        %v3953 = vsub.s32 %v3950, %v3952
        %v3954 = vrot.slane %v3842, %v3953
        %v3956 = vunpack.c.l.s4 1983009808
        %v3957 = vunpack.c.0.s8 %v3956
        %v3958 = vlaneseq
        %v3959 = vshrl.u32 %v3958, 7
        %v3960 = vsub.s32 %v3957, %v3959
        %v3961 = vrot.slane %v3947, %v3960
        %v3962 = vcombine.high %v3954, %v3954
        %v3963 = vcombine.high %v3844, %v3844
        %v3965 = vunpack.c.l.s4 1983009808
        %v3966 = vunpack.c.0.s8 %v3965
        %v3967 = vlaneseq
        %v3968 = vshrl.u32 %v3967, 7
        %v3969 = vsub.s32 %v3966, %v3968
        %v3970 = vrot.slane %v3844, %v3969
        %v3972 = vunpack.c.l.s4 1983009808
        %v3973 = vunpack.c.0.s8 %v3972
        %v3974 = vlaneseq
        %v3975 = vshrl.u32 %v3974, 7
        %v3976 = vsub.s32 %v3973, %v3975
        %v3977 = vrot.slane %v3963, %v3976
        %v3978 = vcombine.high %v3970, %v3970
        %v3979 = vcombine.high %v3846, %v3846
        %v3981 = vunpack.c.l.s4 1983009808
        %v3982 = vunpack.c.0.s8 %v3981
        %v3983 = vlaneseq
        %v3984 = vshrl.u32 %v3983, 7
        %v3985 = vsub.s32 %v3982, %v3984
        %v3986 = vrot.slane %v3846, %v3985
        %v3988 = vunpack.c.l.s4 1983009808
        %v3989 = vunpack.c.0.s8 %v3988
        %v3990 = vlaneseq
        %v3991 = vshrl.u32 %v3990, 7
        %v3992 = vsub.s32 %v3989, %v3991
        %v3993 = vrot.slane %v3979, %v3992
        %v3994 = vcombine.high %v3986, %v3986
        %v3995 = vcombine.high %v3848, %v3848
        %v3997 = vunpack.c.l.s4 1983009808
        %v3998 = vunpack.c.0.s8 %v3997
        %v3999 = vlaneseq
        %v4000 = vshrl.u32 %v3999, 7
        %v4001 = vsub.s32 %v3998, %v4000
        %v4002 = vrot.slane %v3848, %v4001
        %v4004 = vunpack.c.l.s4 1983009808
        %v4005 = vunpack.c.0.s8 %v4004
        %v4006 = vlaneseq
        %v4007 = vshrl.u32 %v4006, 7
        %v4008 = vsub.s32 %v4005, %v4007
        %v4009 = vrot.slane %v3995, %v4008
        %v4010 = vcombine.high %v4002, %v4002
        %v4011 = vcombine.high %v3850, %v3850
        %v4013 = vunpack.c.l.s4 1983009808
        %v4014 = vunpack.c.0.s8 %v4013
        %v4015 = vlaneseq
        %v4016 = vshrl.u32 %v4015, 7
        %v4017 = vsub.s32 %v4014, %v4016
        %v4018 = vrot.slane %v3850, %v4017
        %v4020 = vunpack.c.l.s4 1983009808
        %v4021 = vunpack.c.0.s8 %v4020
        %v4022 = vlaneseq
        %v4023 = vshrl.u32 %v4022, 7
        %v4024 = vsub.s32 %v4021, %v4023
        %v4025 = vrot.slane %v4011, %v4024
        %v4026 = vcombine.high %v4018, %v4018
        %v4027 = vcombine.high %v3852, %v3852
        %v4029 = vunpack.c.l.s4 1983009808
        %v4030 = vunpack.c.0.s8 %v4029
        %v4031 = vlaneseq
        %v4032 = vshrl.u32 %v4031, 7
        %v4033 = vsub.s32 %v4030, %v4032
        %v4034 = vrot.slane %v3852, %v4033
        %v4036 = vunpack.c.l.s4 1983009808
        %v4037 = vunpack.c.0.s8 %v4036
        %v4038 = vlaneseq
        %v4039 = vshrl.u32 %v4038, 7
        %v4040 = vsub.s32 %v4037, %v4039
        %v4041 = vrot.slane %v4027, %v4040
        %v4042 = vcombine.high %v4034, %v4034
        %v4043 = vcombine.high %v3854, %v3854
        %v4045 = vunpack.c.l.s4 1983009808
        %v4046 = vunpack.c.0.s8 %v4045
        %v4047 = vlaneseq
        %v4048 = vshrl.u32 %v4047, 7
        %v4049 = vsub.s32 %v4046, %v4048
        %v4050 = vrot.slane %v3854, %v4049
        %v4052 = vunpack.c.l.s4 1983009808
        %v4053 = vunpack.c.0.s8 %v4052
        %v4054 = vlaneseq
        %v4055 = vshrl.u32 %v4054, 7
        %v4056 = vsub.s32 %v4053, %v4055
        %v4057 = vrot.slane %v4043, %v4056
        %v4058 = vcombine.high %v4050, %v4050
        %s4059 = scalar_lea.vmem [#allocation3], 120
        %v4060 = vld [vmem:[%s4059] sm:$0xf]
        %v4061 = vld [vmem:[%s4059 + $0x4] sm:$0xf]
        %v4062 = vld [vmem:[%s4059 + $0x8] sm:$0xf]
        %v4063 = vld [vmem:[%s4059 + $0xc] sm:$0xf]
        %v4064 = vld [vmem:[%s4059 + $0x10] sm:$0xf]
        %v4065 = vld [vmem:[%s4059 + $0x14] sm:$0xf]
        %v4066 = vld [vmem:[%s4059 + $0x18] sm:$0xf]
        %v4067 = vld [vmem:[%s4059 + $0x1c] sm:$0xf]
        %v4068 = vld [vmem:[%s4059 + $0x20] sm:$0xf]
        %v4069 = vld [vmem:[%s4059 + $0x24] sm:$0xf]
        %v4070 = vcombine.low %v3874, %v3882
        %v4071 = vcombine.low %v3881, %v3890
        %v4073 = vunpack.c.l.s4 1983009808
        %v4074 = vunpack.c.0.s8 %v4073
        %v4075 = vlaneseq
        %v4076 = vshrl.u32 %v4075, 7
        %v4077 = vsub.s32 %v4074, %v4076
        %v4078 = vrot.slane %v4070, %v4077
        %v4080 = vunpack.c.l.s4 1983009808
        %v4081 = vunpack.c.0.s8 %v4080
        %v4082 = vlaneseq
        %v4083 = vshrl.u32 %v4082, 7
        %v4084 = vsub.s32 %v4081, %v4083
        %v4085 = vrot.slane %v4071, %v4084
        %v4086 = vcombine.low %v4078, %v4085
        %v4087 = vcombine.low %v3898, %v3897
        %v4088 = vcombine.low %v3906, %v3914
        %v4090 = vunpack.c.l.s4 1983009808
        %v4091 = vunpack.c.0.s8 %v4090
        %v4092 = vlaneseq
        %v4093 = vshrl.u32 %v4092, 7
        %v4094 = vsub.s32 %v4091, %v4093
        %v4095 = vrot.slane %v4087, %v4094
        %v4097 = vunpack.c.l.s4 1983009808
        %v4098 = vunpack.c.0.s8 %v4097
        %v4099 = vlaneseq
        %v4100 = vshrl.u32 %v4099, 7
        %v4101 = vsub.s32 %v4098, %v4100
        %v4102 = vrot.slane %v4088, %v4101
        %v4103 = vcombine.low %v4095, %v4102
        %v4104 = vcombine.low %v3913, %v3922
        %v4105 = vcombine.low %v3930, %v3929
        %v4107 = vunpack.c.l.s4 1983009808
        %v4108 = vunpack.c.0.s8 %v4107
        %v4109 = vlaneseq
        %v4110 = vshrl.u32 %v4109, 7
        %v4111 = vsub.s32 %v4108, %v4110
        %v4112 = vrot.slane %v4104, %v4111
        %v4114 = vunpack.c.l.s4 1983009808
        %v4115 = vunpack.c.0.s8 %v4114
        %v4116 = vlaneseq
        %v4117 = vshrl.u32 %v4116, 7
        %v4118 = vsub.s32 %v4115, %v4117
        %v4119 = vrot.slane %v4105, %v4118
        %v4120 = vcombine.low %v4112, %v4119
        %v4121 = vcombine.low %v3938, %v3946
        %v4122 = vcombine.low %v3945, %v3954
        %v4124 = vunpack.c.l.s4 1983009808
        %v4125 = vunpack.c.0.s8 %v4124
        %v4126 = vlaneseq
        %v4127 = vshrl.u32 %v4126, 7
        %v4128 = vsub.s32 %v4125, %v4127
        %v4129 = vrot.slane %v4121, %v4128
        %v4131 = vunpack.c.l.s4 1983009808
        %v4132 = vunpack.c.0.s8 %v4131
        %v4133 = vlaneseq
        %v4134 = vshrl.u32 %v4133, 7
        %v4135 = vsub.s32 %v4132, %v4134
        %v4136 = vrot.slane %v4122, %v4135
        %v4137 = vcombine.low %v4129, %v4136
        %v4138 = vcombine.low %v3962, %v3961
        %v4139 = vcombine.low %v3970, %v3978
        %v4141 = vunpack.c.l.s4 1983009808
        %v4142 = vunpack.c.0.s8 %v4141
        %v4143 = vlaneseq
        %v4144 = vshrl.u32 %v4143, 7
        %v4145 = vsub.s32 %v4142, %v4144
        %v4146 = vrot.slane %v4138, %v4145
        %v4148 = vunpack.c.l.s4 1983009808
        %v4149 = vunpack.c.0.s8 %v4148
        %v4150 = vlaneseq
        %v4151 = vshrl.u32 %v4150, 7
        %v4152 = vsub.s32 %v4149, %v4151
        %v4153 = vrot.slane %v4139, %v4152
        %v4154 = vcombine.low %v4146, %v4153
        %v4155 = vcombine.low %v3977, %v3986
        %v4156 = vcombine.low %v3994, %v3993
        %v4158 = vunpack.c.l.s4 1983009808
        %v4159 = vunpack.c.0.s8 %v4158
        %v4160 = vlaneseq
        %v4161 = vshrl.u32 %v4160, 7
        %v4162 = vsub.s32 %v4159, %v4161
        %v4163 = vrot.slane %v4155, %v4162
        %v4165 = vunpack.c.l.s4 1983009808
        %v4166 = vunpack.c.0.s8 %v4165
        %v4167 = vlaneseq
        %v4168 = vshrl.u32 %v4167, 7
        %v4169 = vsub.s32 %v4166, %v4168
        %v4170 = vrot.slane %v4156, %v4169
        %v4171 = vcombine.low %v4163, %v4170
        %v4172 = vcombine.low %v4002, %v4010
        %v4173 = vcombine.low %v4009, %v4018
        %v4175 = vunpack.c.l.s4 1983009808
        %v4176 = vunpack.c.0.s8 %v4175
        %v4177 = vlaneseq
        %v4178 = vshrl.u32 %v4177, 7
        %v4179 = vsub.s32 %v4176, %v4178
        %v4180 = vrot.slane %v4172, %v4179
        %v4182 = vunpack.c.l.s4 1983009808
        %v4183 = vunpack.c.0.s8 %v4182
        %v4184 = vlaneseq
        %v4185 = vshrl.u32 %v4184, 7
        %v4186 = vsub.s32 %v4183, %v4185
        %v4187 = vrot.slane %v4173, %v4186
        %v4188 = vcombine.low %v4180, %v4187
        %v4189 = vcombine.low %v4026, %v4025
        %v4190 = vcombine.low %v4034, %v4042
        %v4192 = vunpack.c.l.s4 1983009808
        %v4193 = vunpack.c.0.s8 %v4192
        %v4194 = vlaneseq
        %v4195 = vshrl.u32 %v4194, 7
        %v4196 = vsub.s32 %v4193, %v4195
        %v4197 = vrot.slane %v4189, %v4196
        %v4199 = vunpack.c.l.s4 1983009808
        %v4200 = vunpack.c.0.s8 %v4199
        %v4201 = vlaneseq
        %v4202 = vshrl.u32 %v4201, 7
        %v4203 = vsub.s32 %v4200, %v4202
        %v4204 = vrot.slane %v4190, %v4203
        %v4205 = vcombine.low %v4197, %v4204
        %v4206 = vcombine.low %v4041, %v4050
        %v4207 = vcombine.low %v4058, %v4057
        %v4209 = vunpack.c.l.s4 1983009808
        %v4210 = vunpack.c.0.s8 %v4209
        %v4211 = vlaneseq
        %v4212 = vshrl.u32 %v4211, 7
        %v4213 = vsub.s32 %v4210, %v4212
        %v4214 = vrot.slane %v4206, %v4213
        %v4216 = vunpack.c.l.s4 1983009808
        %v4217 = vunpack.c.0.s8 %v4216
        %v4218 = vlaneseq
        %v4219 = vshrl.u32 %v4218, 7
        %v4220 = vsub.s32 %v4217, %v4219
        %v4221 = vrot.slane %v4207, %v4220
        %v4222 = vcombine.low %v4214, %v4221
        %v4233 = vunpack.c.l.b16 %v4060
        %v4234 = vunpack.c.l.b16 %v4061
        %v4235 = vunpack.c.l.b16 %v4062
        %v4236 = vunpack.c.l.b16 %v4063
        %v4237 = vunpack.c.l.b16 %v4064
        %v4238 = vunpack.c.l.b16 %v4065
        %v4239 = vunpack.c.l.b16 %v4066
        %v4240 = vunpack.c.l.b16 %v4067
        %v4241 = vunpack.c.l.b16 %v4068
        %v4242 = vunpack.c.l.b16 %v4069
        %v4243 = vpack.c.b16 %v4234, %v4233
        %v4244 = vpack.c.b16 %v4236, %v4235
        %v4245 = vpack.c.b16 %v4238, %v4237
        %v4246 = vpack.c.b16 %v4240, %v4239
        %v4247 = vpack.c.b16 %v4242, %v4241
        %v4254 = vsel %vm1873, %v4086, 0
        %v4257 = vsel %vm1873, %v4103, 0
        %v4260 = vsel %vm1873, %v4120, 0
        %v4263 = vsel %vm1873, %v4137, 0
        %v4266 = vsel %vm1873, %v4154, 0
        %v4269 = vsel %vm1873, %v4171, 0
        %v4272 = vsel %vm1873, %v4188, 0
        %v4275 = vsel %vm1873, %v4205, 0
        %v4278 = vsel %vm1873, %v4222, 0
        %4280 = vmatprep.subr.bf16.mxu0 0
        %4281 = vmatpush1.bf16.msra.mxu0 %v4243
        %4282 = vmatprep.subr.bf16.mxu0 0
        %4283 = vmatpush1.bf16.msra.mxu0 %v4244
        %4284 = vmatprep.subr.bf16.mxu0 0
        %4285 = vmatpush1.bf16.msra.mxu0 %v4245
        %4286 = vmatprep.subr.bf16.mxu0 0
        %4287 = vmatpush1.bf16.msra.mxu0 %v4246
        %4288 = vmatprep.subr.bf16.mxu0 0
        %4289 = vmatpush1.bf16.msra.mxu0 %v4247
        %4290 = vmatprep.subr.bf16.mxu0 0
        %4291 = vmatpush1.bf16.msra.mxu0 0
        %4292 = vmatprep.subr.bf16.mxu0 0
        %4293 = vmatpush1.bf16.msra.mxu0 0
        %4294 = vmatprep.subr.bf16.mxu0 0
        %4295 = vmatpush1.bf16.msra.mxu0 0
        %4296 = vmatprep.subr.bf16.mxu0 0
        %4297 = vmatpush1.bf16.msra.mxu0 0
        %4298 = vmatprep.subr.bf16.mxu0 0
        %4299 = vmatpush1.bf16.msra.mxu0 0
        %4300 = vmatprep.subr.bf16.mxu0 0
        %4301 = vmatpush1.bf16.msra.mxu0 0
        %4302 = vmatprep.subr.bf16.mxu0 0
        %4303 = vmatpush1.bf16.msra.mxu0 0
        %4304 = vmatprep.subr.bf16.mxu0 0
        %4305 = vmatpush1.bf16.msra.mxu0 0
        %4306 = vmatprep.subr.bf16.mxu0 0
        %4307 = vmatpush1.bf16.msra.mxu0 0
        %4308 = vmatprep.subr.bf16.mxu0 0
        %4309 = vmatpush1.bf16.msra.mxu0 0
        %4310 = vmatprep.subr.bf16.mxu0 0
        %4311 = vmatpush1.bf16.msra.mxu0 0
        %4312 = vmatprep.mubr.bf16.mxu0 0
        %4313 = vmatmul.mubr.bf16.gmra.mrb[0].mxu0 %v4254
        %v4314 = vpop.f32.mrb[0].mxu0
        %v4315 = vadd.f32 0.0, %v4314
        %v4316 = vpop.f32.mrb[0].mxu0
        %v4317 = vpop.f32.mrb[0].mxu0
        %v4318 = vadd.f32 0.0, %v4317
        %v4319 = vpop.f32.mrb[0].mxu0
        %4320 = vmatprep.mubr.bf16.mxu0 0
        %4321 = vmatmul.mubr.bf16.gmra.mrb[0].mxu0 %v4257
        %v4322 = vpop.f32.mrb[0].mxu0
        %v4323 = vadd.f32 0.0, %v4322
        %v4324 = vpop.f32.mrb[0].mxu0
        %v4325 = vpop.f32.mrb[0].mxu0
        %v4326 = vadd.f32 0.0, %v4325
        %v4327 = vpop.f32.mrb[0].mxu0
        %4328 = vmatprep.mubr.bf16.mxu0 0
        %4329 = vmatmul.mubr.bf16.gmra.mrb[0].mxu0 %v4260
        %v4330 = vpop.f32.mrb[0].mxu0
        %v4331 = vadd.f32 0.0, %v4330
        %v4332 = vpop.f32.mrb[0].mxu0
        %v4333 = vpop.f32.mrb[0].mxu0
        %v4334 = vadd.f32 0.0, %v4333
        %v4335 = vpop.f32.mrb[0].mxu0
        %4336 = vmatprep.mubr.bf16.mxu0 0
        %4337 = vmatmul.mubr.bf16.gmra.mrb[0].mxu0 %v4263
        %v4338 = vpop.f32.mrb[0].mxu0
        %v4339 = vadd.f32 0.0, %v4338
        %v4340 = vpop.f32.mrb[0].mxu0
        %v4341 = vpop.f32.mrb[0].mxu0
        %v4342 = vadd.f32 0.0, %v4341
        %v4343 = vpop.f32.mrb[0].mxu0
        %4344 = vmatprep.mubr.bf16.mxu0 0
        %4345 = vmatmul.mubr.bf16.gmra.mrb[0].mxu0 %v4266
        %v4346 = vpop.f32.mrb[0].mxu0
        %v4347 = vadd.f32 0.0, %v4346
        %v4348 = vpop.f32.mrb[0].mxu0
        %v4349 = vpop.f32.mrb[0].mxu0
        %v4350 = vadd.f32 0.0, %v4349
        %v4351 = vpop.f32.mrb[0].mxu0
        %4352 = vmatprep.mubr.bf16.mxu0 0
        %4353 = vmatmul.mubr.bf16.gmra.mrb[0].mxu0 %v4269
        %v4354 = vpop.f32.mrb[0].mxu0
        %v4355 = vadd.f32 0.0, %v4354
        %v4356 = vpop.f32.mrb[0].mxu0
        %v4357 = vpop.f32.mrb[0].mxu0
        %v4358 = vadd.f32 0.0, %v4357
        %v4359 = vpop.f32.mrb[0].mxu0
        %4360 = vmatprep.mubr.bf16.mxu0 0
        %4361 = vmatmul.mubr.bf16.gmra.mrb[0].mxu0 %v4272
        %v4362 = vpop.f32.mrb[0].mxu0
        %v4363 = vadd.f32 0.0, %v4362
        %v4364 = vpop.f32.mrb[0].mxu0
        %v4365 = vpop.f32.mrb[0].mxu0
        %v4366 = vadd.f32 0.0, %v4365
        %v4367 = vpop.f32.mrb[0].mxu0
        %4368 = vmatprep.mubr.bf16.mxu0 0
        %4369 = vmatmul.mubr.bf16.gmra.mrb[0].mxu0 %v4275
        %v4370 = vpop.f32.mrb[0].mxu0
        %v4371 = vadd.f32 0.0, %v4370
        %v4372 = vpop.f32.mrb[0].mxu0
        %v4373 = vpop.f32.mrb[0].mxu0
        %v4374 = vadd.f32 0.0, %v4373
        %v4375 = vpop.f32.mrb[0].mxu0
        %4376 = vmatprep.mubr.bf16.mxu0 0
        %4377 = vmatmul.mubr.bf16.gmra.mrb[0].mxu0 %v4278
        %v4378 = vpop.f32.mrb[0].mxu0
        %v4379 = vadd.f32 0.0, %v4378
        %v4380 = vpop.f32.mrb[0].mxu0
        %v4381 = vpop.f32.mrb[0].mxu0
        %v4382 = vadd.f32 0.0, %v4381
        %v4383 = vpop.f32.mrb[0].mxu0
        %4384 = vdwg.mxu0
        %v4385 = vadd.f32 %v3344, %v4315
        %v4386 = vadd.f32 %v3345, %v4318
        %v4387 = vadd.f32 %v3346, %v4323
        %v4388 = vadd.f32 %v3347, %v4326
        %v4389 = vadd.f32 %v3348, %v4331
        %v4390 = vadd.f32 %v3349, %v4334
        %v4391 = vadd.f32 %v3350, %v4339
        %v4392 = vadd.f32 %v3351, %v4342
        %v4393 = vadd.f32 %v3352, %v4347
        %v4394 = vadd.f32 %v3353, %v4350
        %v4395 = vadd.f32 %v3354, %v4355
        %v4396 = vadd.f32 %v3355, %v4358
        %v4397 = vadd.f32 %v3356, %v4363
        %v4398 = vadd.f32 %v3357, %v4366
        %v4399 = vadd.f32 %v3358, %v4371
        %v4400 = vadd.f32 %v3359, %v4374
        %v4401 = vadd.f32 %v3360, %v4379
        %v4402 = vadd.f32 %v3361, %v4382
        %v4403 = vld [vmem:[%s263] sm:$0x3f]
        %v4404 = vld [vmem:[%s263 + $0x8] sm:$0x3f]
        %v4405 = vld [vmem:[%s263 + $0x10] sm:$0x3f]
        %v4406 = vld [vmem:[%s263 + $0x18] sm:$0x3f]
        %v4407 = vld [vmem:[%s263 + $0x20] sm:$0x3f]
        %v4408 = vld [vmem:[%s263 + $0x28] sm:$0x3f]
        %v4409 = vld [vmem:[%s263 + $0x30] sm:$0x3f]
        %v4410 = vld [vmem:[%s263 + $0x38] sm:$0x3f]
        %v4411 = vld [vmem:[%s263 + $0x40] sm:$0x3f]
        %v4412 = vld [vmem:[%s263 + $0x48] sm:$0x3f]
        %v4413 = vld [vmem:[%s263 + $0x50] sm:$0x3f]
        %v4414 = vld [vmem:[%s263 + $0x58] sm:$0x3f]
        %v4415 = vld [vmem:[%s263] sm:$0x7f]
        %v4416 = vld [vmem:[%s263 + $0x8] sm:$0x7f]
        %v4417 = vld [vmem:[%s263 + $0x10] sm:$0x7f]
        %v4418 = vld [vmem:[%s263 + $0x18] sm:$0x7f]
        %v4419 = vld [vmem:[%s263 + $0x20] sm:$0x7f]
        %v4420 = vld [vmem:[%s263 + $0x28] sm:$0x7f]
        %v4421 = vld [vmem:[%s263 + $0x30] sm:$0x7f]
        %v4422 = vld [vmem:[%s263 + $0x38] sm:$0x7f]
        %v4423 = vld [vmem:[%s263 + $0x40] sm:$0x7f]
        %v4424 = vld [vmem:[%s263 + $0x48] sm:$0x7f]
        %v4425 = vld [vmem:[%s263 + $0x50] sm:$0x7f]
        %v4426 = vld [vmem:[%s263 + $0x58] sm:$0x7f]
        %v4427 = vld [vmem:[%s263] sm:$0x7e]
        %v4428 = vld [vmem:[%s263 + $0x8] sm:$0x7e]
        %v4429 = vld [vmem:[%s263 + $0x10] sm:$0x7e]
        %v4430 = vld [vmem:[%s263 + $0x18] sm:$0x7e]
        %v4431 = vld [vmem:[%s263 + $0x20] sm:$0x7e]
        %v4432 = vld [vmem:[%s263 + $0x28] sm:$0x7e]
        %v4433 = vld [vmem:[%s263 + $0x30] sm:$0x7e]
        %v4434 = vld [vmem:[%s263 + $0x38] sm:$0x7e]
        %v4435 = vld [vmem:[%s263 + $0x40] sm:$0x7e]
        %v4436 = vld [vmem:[%s263 + $0x48] sm:$0x7e]
        %v4437 = vld [vmem:[%s263 + $0x50] sm:$0x7e]
        %v4438 = vld [vmem:[%s263 + $0x58] sm:$0x7e]
        %v4439 = vld [vmem:[%s263] sm:$0xfe]
        %v4440 = vld [vmem:[%s263 + $0x8] sm:$0xfe]
        %v4441 = vld [vmem:[%s263 + $0x10] sm:$0xfe]
        %v4442 = vld [vmem:[%s263 + $0x18] sm:$0xfe]
        %v4443 = vld [vmem:[%s263 + $0x20] sm:$0xfe]
        %v4444 = vld [vmem:[%s263 + $0x28] sm:$0xfe]
        %v4445 = vld [vmem:[%s263 + $0x30] sm:$0xfe]
        %v4446 = vld [vmem:[%s263 + $0x38] sm:$0xfe]
        %v4447 = vld [vmem:[%s263 + $0x40] sm:$0xfe]
        %v4448 = vld [vmem:[%s263 + $0x48] sm:$0xfe]
        %v4449 = vld [vmem:[%s263 + $0x50] sm:$0xfe]
        %v4450 = vld [vmem:[%s263 + $0x58] sm:$0xfe]
        %v4451 = vld [vmem:[%s263] sm:$0xfc]
        %v4452 = vld [vmem:[%s263 + $0x8] sm:$0xfc]
        %v4453 = vld [vmem:[%s263 + $0x10] sm:$0xfc]
        %v4454 = vld [vmem:[%s263 + $0x18] sm:$0xfc]
        %v4455 = vld [vmem:[%s263 + $0x20] sm:$0xfc]
        %v4456 = vld [vmem:[%s263 + $0x28] sm:$0xfc]
        %v4457 = vld [vmem:[%s263 + $0x30] sm:$0xfc]
        %v4458 = vld [vmem:[%s263 + $0x38] sm:$0xfc]
        %v4459 = vld [vmem:[%s263 + $0x40] sm:$0xfc]
        %v4460 = vld [vmem:[%s263 + $0x48] sm:$0xfc]
        %v4461 = vld [vmem:[%s263 + $0x50] sm:$0xfc]
        %v4462 = vld [vmem:[%s263 + $0x58] sm:$0xfc]
        %v4464 = vshrl.u32 %v4415, 16
        %v4466 = vshll.u32 %v4415, 16
        %v4468 = vrot.slane %v4466, 1
        %v4469 = vor.u32 %v4464, %v4468
        %v4471 = vshrl.u32 %v4416, 16
        %v4473 = vshll.u32 %v4416, 16
        %v4475 = vrot.slane %v4473, 1
        %v4476 = vor.u32 %v4471, %v4475
        %v4478 = vshrl.u32 %v4417, 16
        %v4480 = vshll.u32 %v4417, 16
        %v4482 = vrot.slane %v4480, 1
        %v4483 = vor.u32 %v4478, %v4482
        %v4485 = vshrl.u32 %v4418, 16
        %v4487 = vshll.u32 %v4418, 16
        %v4489 = vrot.slane %v4487, 1
        %v4490 = vor.u32 %v4485, %v4489
        %v4492 = vshrl.u32 %v4419, 16
        %v4494 = vshll.u32 %v4419, 16
        %v4496 = vrot.slane %v4494, 1
        %v4497 = vor.u32 %v4492, %v4496
        %v4499 = vshrl.u32 %v4420, 16
        %v4501 = vshll.u32 %v4420, 16
        %v4503 = vrot.slane %v4501, 1
        %v4504 = vor.u32 %v4499, %v4503
        %v4506 = vshrl.u32 %v4421, 16
        %v4508 = vshll.u32 %v4421, 16
        %v4510 = vrot.slane %v4508, 1
        %v4511 = vor.u32 %v4506, %v4510
        %v4513 = vshrl.u32 %v4422, 16
        %v4515 = vshll.u32 %v4422, 16
        %v4517 = vrot.slane %v4515, 1
        %v4518 = vor.u32 %v4513, %v4517
        %v4520 = vshrl.u32 %v4423, 16
        %v4522 = vshll.u32 %v4423, 16
        %v4524 = vrot.slane %v4522, 1
        %v4525 = vor.u32 %v4520, %v4524
        %v4527 = vshrl.u32 %v4424, 16
        %v4529 = vshll.u32 %v4424, 16
        %v4531 = vrot.slane %v4529, 1
        %v4532 = vor.u32 %v4527, %v4531
        %v4534 = vshrl.u32 %v4425, 16
        %v4536 = vshll.u32 %v4425, 16
        %v4538 = vrot.slane %v4536, 1
        %v4539 = vor.u32 %v4534, %v4538
        %v4541 = vshrl.u32 %v4426, 16
        %v4543 = vshll.u32 %v4426, 16
        %v4545 = vrot.slane %v4543, 1
        %v4546 = vor.u32 %v4541, %v4545
        %4547 = vrot.lane.b32.xlu0 %v4469, 16
        %v4548 = vpop.permute.xlu0 %4547
        %4549 = vrot.lane.b32.xlu0 %v4476, 16
        %v4550 = vpop.permute.xlu0 %4549
        %4551 = vrot.lane.b32.xlu0 %v4483, 16
        %v4552 = vpop.permute.xlu0 %4551
        %4553 = vrot.lane.b32.xlu0 %v4490, 16
        %v4554 = vpop.permute.xlu0 %4553
        %4555 = vrot.lane.b32.xlu0 %v4497, 16
        %v4556 = vpop.permute.xlu0 %4555
        %4557 = vrot.lane.b32.xlu0 %v4504, 16
        %v4558 = vpop.permute.xlu0 %4557
        %4559 = vrot.lane.b32.xlu0 %v4511, 16
        %v4560 = vpop.permute.xlu0 %4559
        %4561 = vrot.lane.b32.xlu0 %v4518, 16
        %v4562 = vpop.permute.xlu0 %4561
        %4563 = vrot.lane.b32.xlu0 %v4525, 16
        %v4564 = vpop.permute.xlu0 %4563
        %4565 = vrot.lane.b32.xlu0 %v4532, 16
        %v4566 = vpop.permute.xlu0 %4565
        %4567 = vrot.lane.b32.xlu0 %v4539, 16
        %v4568 = vpop.permute.xlu0 %4567
        %4569 = vrot.lane.b32.xlu0 %v4546, 16
        %v4570 = vpop.permute.xlu0 %4569
        %v4583 = vrot.slane %v4427, 1
        %v4584 = vrot.slane %v4428, 1
        %v4585 = vrot.slane %v4429, 1
        %v4586 = vrot.slane %v4430, 1
        %v4587 = vrot.slane %v4431, 1
        %v4588 = vrot.slane %v4432, 1
        %v4589 = vrot.slane %v4433, 1
        %v4590 = vrot.slane %v4434, 1
        %v4591 = vrot.slane %v4435, 1
        %v4592 = vrot.slane %v4436, 1
        %v4593 = vrot.slane %v4437, 1
        %v4594 = vrot.slane %v4438, 1
        %4595 = vrot.lane.b32.xlu0 %v4583, 32
        %v4596 = vpop.permute.xlu0 %4595
        %4597 = vrot.lane.b32.xlu0 %v4584, 32
        %v4598 = vpop.permute.xlu0 %4597
        %4599 = vrot.lane.b32.xlu0 %v4585, 32
        %v4600 = vpop.permute.xlu0 %4599
        %4601 = vrot.lane.b32.xlu0 %v4586, 32
        %v4602 = vpop.permute.xlu0 %4601
        %4603 = vrot.lane.b32.xlu0 %v4587, 32
        %v4604 = vpop.permute.xlu0 %4603
        %4605 = vrot.lane.b32.xlu0 %v4588, 32
        %v4606 = vpop.permute.xlu0 %4605
        %4607 = vrot.lane.b32.xlu0 %v4589, 32
        %v4608 = vpop.permute.xlu0 %4607
        %4609 = vrot.lane.b32.xlu0 %v4590, 32
        %v4610 = vpop.permute.xlu0 %4609
        %4611 = vrot.lane.b32.xlu0 %v4591, 32
        %v4612 = vpop.permute.xlu0 %4611
        %4613 = vrot.lane.b32.xlu0 %v4592, 32
        %v4614 = vpop.permute.xlu0 %4613
        %4615 = vrot.lane.b32.xlu0 %v4593, 32
        %v4616 = vpop.permute.xlu0 %4615
        %4617 = vrot.lane.b32.xlu0 %v4594, 32
        %v4618 = vpop.permute.xlu0 %4617
        %v4620 = vshrl.u32 %v4439, 16
        %v4622 = vrot.slane %v4620, 1
        %v4623 = vshll.u32 %v4439, 16
        %v4625 = vrot.slane %v4623, 2
        %v4626 = vor.u32 %v4622, %v4625
        %v4628 = vshrl.u32 %v4440, 16
        %v4630 = vrot.slane %v4628, 1
        %v4631 = vshll.u32 %v4440, 16
        %v4633 = vrot.slane %v4631, 2
        %v4634 = vor.u32 %v4630, %v4633
        %v4636 = vshrl.u32 %v4441, 16
        %v4638 = vrot.slane %v4636, 1
        %v4639 = vshll.u32 %v4441, 16
        %v4641 = vrot.slane %v4639, 2
        %v4642 = vor.u32 %v4638, %v4641
        %v4644 = vshrl.u32 %v4442, 16
        %v4646 = vrot.slane %v4644, 1
        %v4647 = vshll.u32 %v4442, 16
        %v4649 = vrot.slane %v4647, 2
        %v4650 = vor.u32 %v4646, %v4649
        %v4652 = vshrl.u32 %v4443, 16
        %v4654 = vrot.slane %v4652, 1
        %v4655 = vshll.u32 %v4443, 16
        %v4657 = vrot.slane %v4655, 2
        %v4658 = vor.u32 %v4654, %v4657
        %v4660 = vshrl.u32 %v4444, 16
        %v4662 = vrot.slane %v4660, 1
        %v4663 = vshll.u32 %v4444, 16
        %v4665 = vrot.slane %v4663, 2
        %v4666 = vor.u32 %v4662, %v4665
        %v4668 = vshrl.u32 %v4445, 16
        %v4670 = vrot.slane %v4668, 1
        %v4671 = vshll.u32 %v4445, 16
        %v4673 = vrot.slane %v4671, 2
        %v4674 = vor.u32 %v4670, %v4673
        %v4676 = vshrl.u32 %v4446, 16
        %v4678 = vrot.slane %v4676, 1
        %v4679 = vshll.u32 %v4446, 16
        %v4681 = vrot.slane %v4679, 2
        %v4682 = vor.u32 %v4678, %v4681
        %v4684 = vshrl.u32 %v4447, 16
        %v4686 = vrot.slane %v4684, 1
        %v4687 = vshll.u32 %v4447, 16
        %v4689 = vrot.slane %v4687, 2
        %v4690 = vor.u32 %v4686, %v4689
        %v4692 = vshrl.u32 %v4448, 16
        %v4694 = vrot.slane %v4692, 1
        %v4695 = vshll.u32 %v4448, 16
        %v4697 = vrot.slane %v4695, 2
        %v4698 = vor.u32 %v4694, %v4697
        %v4700 = vshrl.u32 %v4449, 16
        %v4702 = vrot.slane %v4700, 1
        %v4703 = vshll.u32 %v4449, 16
        %v4705 = vrot.slane %v4703, 2
        %v4706 = vor.u32 %v4702, %v4705
        %v4708 = vshrl.u32 %v4450, 16
        %v4710 = vrot.slane %v4708, 1
        %v4711 = vshll.u32 %v4450, 16
        %v4713 = vrot.slane %v4711, 2
        %v4714 = vor.u32 %v4710, %v4713
        %4715 = vrot.lane.b32.xlu0 %v4626, 48
        %v4716 = vpop.permute.xlu0 %4715
        %4717 = vrot.lane.b32.xlu0 %v4634, 48
        %v4718 = vpop.permute.xlu0 %4717
        %4719 = vrot.lane.b32.xlu0 %v4642, 48
        %v4720 = vpop.permute.xlu0 %4719
        %4721 = vrot.lane.b32.xlu0 %v4650, 48
        %v4722 = vpop.permute.xlu0 %4721
        %4723 = vrot.lane.b32.xlu0 %v4658, 48
        %v4724 = vpop.permute.xlu0 %4723
        %4725 = vrot.lane.b32.xlu0 %v4666, 48
        %v4726 = vpop.permute.xlu0 %4725
        %4727 = vrot.lane.b32.xlu0 %v4674, 48
        %v4728 = vpop.permute.xlu0 %4727
        %4729 = vrot.lane.b32.xlu0 %v4682, 48
        %v4730 = vpop.permute.xlu0 %4729
        %4731 = vrot.lane.b32.xlu0 %v4690, 48
        %v4732 = vpop.permute.xlu0 %4731
        %4733 = vrot.lane.b32.xlu0 %v4698, 48
        %v4734 = vpop.permute.xlu0 %4733
        %4735 = vrot.lane.b32.xlu0 %v4706, 48
        %v4736 = vpop.permute.xlu0 %4735
        %4737 = vrot.lane.b32.xlu0 %v4714, 48
        %v4738 = vpop.permute.xlu0 %4737
        %v4751 = vrot.slane %v4451, 2
        %v4752 = vrot.slane %v4452, 2
        %v4753 = vrot.slane %v4453, 2
        %v4754 = vrot.slane %v4454, 2
        %v4755 = vrot.slane %v4455, 2
        %v4756 = vrot.slane %v4456, 2
        %v4757 = vrot.slane %v4457, 2
        %v4758 = vrot.slane %v4458, 2
        %v4759 = vrot.slane %v4459, 2
        %v4760 = vrot.slane %v4460, 2
        %v4761 = vrot.slane %v4461, 2
        %v4762 = vrot.slane %v4462, 2
        %4763 = vrot.lane.b32.xlu0 %v4751, 64
        %v4764 = vpop.permute.xlu0 %4763
        %4765 = vrot.lane.b32.xlu0 %v4752, 64
        %v4766 = vpop.permute.xlu0 %4765
        %4767 = vrot.lane.b32.xlu0 %v4753, 64
        %v4768 = vpop.permute.xlu0 %4767
        %4769 = vrot.lane.b32.xlu0 %v4754, 64
        %v4770 = vpop.permute.xlu0 %4769
        %4771 = vrot.lane.b32.xlu0 %v4755, 64
        %v4772 = vpop.permute.xlu0 %4771
        %4773 = vrot.lane.b32.xlu0 %v4756, 64
        %v4774 = vpop.permute.xlu0 %4773
        %4775 = vrot.lane.b32.xlu0 %v4757, 64
        %v4776 = vpop.permute.xlu0 %4775
        %4777 = vrot.lane.b32.xlu0 %v4758, 64
        %v4778 = vpop.permute.xlu0 %4777
        %4779 = vrot.lane.b32.xlu0 %v4759, 64
        %v4780 = vpop.permute.xlu0 %4779
        %4781 = vrot.lane.b32.xlu0 %v4760, 64
        %v4782 = vpop.permute.xlu0 %4781
        %4783 = vrot.lane.b32.xlu0 %v4761, 64
        %v4784 = vpop.permute.xlu0 %4783
        %4785 = vrot.lane.b32.xlu0 %v4762, 64
        %v4786 = vpop.permute.xlu0 %4785
        %v4789 = vsel %vm198, %v4403, %v4548
        %v4792 = vsel %vm198, %v4404, %v4550
        %v4795 = vsel %vm198, %v4405, %v4552
        %v4798 = vsel %vm198, %v4406, %v4554
        %v4801 = vsel %vm198, %v4407, %v4556
        %v4804 = vsel %vm198, %v4408, %v4558
        %v4807 = vsel %vm198, %v4409, %v4560
        %v4810 = vsel %vm198, %v4410, %v4562
        %v4813 = vsel %vm198, %v4411, %v4564
        %v4816 = vsel %vm198, %v4412, %v4566
        %v4819 = vsel %vm198, %v4413, %v4568
        %v4822 = vsel %vm198, %v4414, %v4570
        %v4824 = vsel %vm693, %v4789, %v4596
        %v4826 = vsel %vm693, %v4792, %v4598
        %v4828 = vsel %vm693, %v4795, %v4600
        %v4830 = vsel %vm693, %v4798, %v4602
        %v4832 = vsel %vm693, %v4801, %v4604
        %v4834 = vsel %vm693, %v4804, %v4606
        %v4836 = vsel %vm693, %v4807, %v4608
        %v4838 = vsel %vm693, %v4810, %v4610
        %v4840 = vsel %vm693, %v4813, %v4612
        %v4842 = vsel %vm693, %v4816, %v4614
        %v4844 = vsel %vm693, %v4819, %v4616
        %v4846 = vsel %vm693, %v4822, %v4618
        %v4848 = vsel %vm718, %v4824, %v4716
        %v4850 = vsel %vm718, %v4826, %v4718
        %v4852 = vsel %vm718, %v4828, %v4720
        %v4854 = vsel %vm718, %v4830, %v4722
        %v4856 = vsel %vm718, %v4832, %v4724
        %v4858 = vsel %vm718, %v4834, %v4726
        %v4860 = vsel %vm718, %v4836, %v4728
        %v4862 = vsel %vm718, %v4838, %v4730
        %v4864 = vsel %vm718, %v4840, %v4732
        %v4866 = vsel %vm718, %v4842, %v4734
        %v4868 = vsel %vm718, %v4844, %v4736
        %v4870 = vsel %vm718, %v4846, %v4738
        %v4872 = vsel %vm743, %v4848, %v4764
        %v4874 = vsel %vm743, %v4850, %v4766
        %v4876 = vsel %vm743, %v4852, %v4768
        %v4878 = vsel %vm743, %v4854, %v4770
        %v4880 = vsel %vm743, %v4856, %v4772
        %v4882 = vsel %vm743, %v4858, %v4774
        %v4884 = vsel %vm743, %v4860, %v4776
        %v4886 = vsel %vm743, %v4862, %v4778
        %v4888 = vsel %vm743, %v4864, %v4780
        %v4890 = vsel %vm743, %v4866, %v4782
        %v4892 = vsel %vm743, %v4868, %v4784
        %v4894 = vsel %vm743, %v4870, %v4786
        %v4907 = vcombine.high %v4872, %v4872
        %v4909 = vunpack.c.l.s4 1983009808
        %v4910 = vunpack.c.0.s8 %v4909
        %v4911 = vlaneseq
        %v4912 = vshrl.u32 %v4911, 7
        %v4913 = vsub.s32 %v4910, %v4912
        %v4914 = vrot.slane %v4872, %v4913
        %v4916 = vunpack.c.l.s4 1983009808
        %v4917 = vunpack.c.0.s8 %v4916
        %v4918 = vlaneseq
        %v4919 = vshrl.u32 %v4918, 7
        %v4920 = vsub.s32 %v4917, %v4919
        %v4921 = vrot.slane %v4907, %v4920
        %v4922 = vcombine.high %v4914, %v4914
        %v4923 = vcombine.high %v4874, %v4874
        %v4925 = vunpack.c.l.s4 1983009808
        %v4926 = vunpack.c.0.s8 %v4925
        %v4927 = vlaneseq
        %v4928 = vshrl.u32 %v4927, 7
        %v4929 = vsub.s32 %v4926, %v4928
        %v4930 = vrot.slane %v4874, %v4929
        %v4932 = vunpack.c.l.s4 1983009808
        %v4933 = vunpack.c.0.s8 %v4932
        %v4934 = vlaneseq
        %v4935 = vshrl.u32 %v4934, 7
        %v4936 = vsub.s32 %v4933, %v4935
        %v4937 = vrot.slane %v4923, %v4936
        %v4938 = vcombine.high %v4930, %v4930
        %v4939 = vcombine.high %v4876, %v4876
        %v4941 = vunpack.c.l.s4 1983009808
        %v4942 = vunpack.c.0.s8 %v4941
        %v4943 = vlaneseq
        %v4944 = vshrl.u32 %v4943, 7
        %v4945 = vsub.s32 %v4942, %v4944
        %v4946 = vrot.slane %v4876, %v4945
        %v4948 = vunpack.c.l.s4 1983009808
        %v4949 = vunpack.c.0.s8 %v4948
        %v4950 = vlaneseq
        %v4951 = vshrl.u32 %v4950, 7
        %v4952 = vsub.s32 %v4949, %v4951
        %v4953 = vrot.slane %v4939, %v4952
        %v4954 = vcombine.high %v4946, %v4946
        %v4955 = vcombine.high %v4878, %v4878
        %v4957 = vunpack.c.l.s4 1983009808
        %v4958 = vunpack.c.0.s8 %v4957
        %v4959 = vlaneseq
        %v4960 = vshrl.u32 %v4959, 7
        %v4961 = vsub.s32 %v4958, %v4960
        %v4962 = vrot.slane %v4878, %v4961
        %v4964 = vunpack.c.l.s4 1983009808
        %v4965 = vunpack.c.0.s8 %v4964
        %v4966 = vlaneseq
        %v4967 = vshrl.u32 %v4966, 7
        %v4968 = vsub.s32 %v4965, %v4967
        %v4969 = vrot.slane %v4955, %v4968
        %v4970 = vcombine.high %v4962, %v4962
        %v4971 = vcombine.high %v4880, %v4880
        %v4973 = vunpack.c.l.s4 1983009808
        %v4974 = vunpack.c.0.s8 %v4973
        %v4975 = vlaneseq
        %v4976 = vshrl.u32 %v4975, 7
        %v4977 = vsub.s32 %v4974, %v4976
        %v4978 = vrot.slane %v4880, %v4977
        %v4980 = vunpack.c.l.s4 1983009808
        %v4981 = vunpack.c.0.s8 %v4980
        %v4982 = vlaneseq
        %v4983 = vshrl.u32 %v4982, 7
        %v4984 = vsub.s32 %v4981, %v4983
        %v4985 = vrot.slane %v4971, %v4984
        %v4986 = vcombine.high %v4978, %v4978
        %v4987 = vcombine.high %v4882, %v4882
        %v4989 = vunpack.c.l.s4 1983009808
        %v4990 = vunpack.c.0.s8 %v4989
        %v4991 = vlaneseq
        %v4992 = vshrl.u32 %v4991, 7
        %v4993 = vsub.s32 %v4990, %v4992
        %v4994 = vrot.slane %v4882, %v4993
        %v4996 = vunpack.c.l.s4 1983009808
        %v4997 = vunpack.c.0.s8 %v4996
        %v4998 = vlaneseq
        %v4999 = vshrl.u32 %v4998, 7
        %v5000 = vsub.s32 %v4997, %v4999
        %v5001 = vrot.slane %v4987, %v5000
        %v5002 = vcombine.high %v4994, %v4994
        %v5003 = vcombine.high %v4884, %v4884
        %v5005 = vunpack.c.l.s4 1983009808
        %v5006 = vunpack.c.0.s8 %v5005
        %v5007 = vlaneseq
        %v5008 = vshrl.u32 %v5007, 7
        %v5009 = vsub.s32 %v5006, %v5008
        %v5010 = vrot.slane %v4884, %v5009
        %v5012 = vunpack.c.l.s4 1983009808
        %v5013 = vunpack.c.0.s8 %v5012
        %v5014 = vlaneseq
        %v5015 = vshrl.u32 %v5014, 7
        %v5016 = vsub.s32 %v5013, %v5015
        %v5017 = vrot.slane %v5003, %v5016
        %v5018 = vcombine.high %v5010, %v5010
        %v5019 = vcombine.high %v4886, %v4886
        %v5021 = vunpack.c.l.s4 1983009808
        %v5022 = vunpack.c.0.s8 %v5021
        %v5023 = vlaneseq
        %v5024 = vshrl.u32 %v5023, 7
        %v5025 = vsub.s32 %v5022, %v5024
        %v5026 = vrot.slane %v4886, %v5025
        %v5028 = vunpack.c.l.s4 1983009808
        %v5029 = vunpack.c.0.s8 %v5028
        %v5030 = vlaneseq
        %v5031 = vshrl.u32 %v5030, 7
        %v5032 = vsub.s32 %v5029, %v5031
        %v5033 = vrot.slane %v5019, %v5032
        %v5034 = vcombine.high %v5026, %v5026
        %v5035 = vcombine.high %v4888, %v4888
        %v5037 = vunpack.c.l.s4 1983009808
        %v5038 = vunpack.c.0.s8 %v5037
        %v5039 = vlaneseq
        %v5040 = vshrl.u32 %v5039, 7
        %v5041 = vsub.s32 %v5038, %v5040
        %v5042 = vrot.slane %v4888, %v5041
        %v5044 = vunpack.c.l.s4 1983009808
        %v5045 = vunpack.c.0.s8 %v5044
        %v5046 = vlaneseq
        %v5047 = vshrl.u32 %v5046, 7
        %v5048 = vsub.s32 %v5045, %v5047
        %v5049 = vrot.slane %v5035, %v5048
        %v5050 = vcombine.high %v5042, %v5042
        %v5051 = vcombine.high %v4890, %v4890
        %v5053 = vunpack.c.l.s4 1983009808
        %v5054 = vunpack.c.0.s8 %v5053
        %v5055 = vlaneseq
        %v5056 = vshrl.u32 %v5055, 7
        %v5057 = vsub.s32 %v5054, %v5056
        %v5058 = vrot.slane %v4890, %v5057
        %v5060 = vunpack.c.l.s4 1983009808
        %v5061 = vunpack.c.0.s8 %v5060
        %v5062 = vlaneseq
        %v5063 = vshrl.u32 %v5062, 7
        %v5064 = vsub.s32 %v5061, %v5063
        %v5065 = vrot.slane %v5051, %v5064
        %v5066 = vcombine.high %v5058, %v5058
        %v5067 = vcombine.high %v4892, %v4892
        %v5069 = vunpack.c.l.s4 1983009808
        %v5070 = vunpack.c.0.s8 %v5069
        %v5071 = vlaneseq
        %v5072 = vshrl.u32 %v5071, 7
        %v5073 = vsub.s32 %v5070, %v5072
        %v5074 = vrot.slane %v4892, %v5073
        %v5076 = vunpack.c.l.s4 1983009808
        %v5077 = vunpack.c.0.s8 %v5076
        %v5078 = vlaneseq
        %v5079 = vshrl.u32 %v5078, 7
        %v5080 = vsub.s32 %v5077, %v5079
        %v5081 = vrot.slane %v5067, %v5080
        %v5082 = vcombine.high %v5074, %v5074
        %v5083 = vcombine.high %v4894, %v4894
        %v5085 = vunpack.c.l.s4 1983009808
        %v5086 = vunpack.c.0.s8 %v5085
        %v5087 = vlaneseq
        %v5088 = vshrl.u32 %v5087, 7
        %v5089 = vsub.s32 %v5086, %v5088
        %v5090 = vrot.slane %v4894, %v5089
        %v5092 = vunpack.c.l.s4 1983009808
        %v5093 = vunpack.c.0.s8 %v5092
        %v5094 = vlaneseq
        %v5095 = vshrl.u32 %v5094, 7
        %v5096 = vsub.s32 %v5093, %v5095
        %v5097 = vrot.slane %v5083, %v5096
        %v5098 = vcombine.high %v5090, %v5090
        %s5099 = scalar_lea.vmem [#allocation3], 160
        %v5100 = vld [vmem:[%s5099] sm:$0xf]
        %v5101 = vld [vmem:[%s5099 + $0x4] sm:$0xf]
        %v5102 = vld [vmem:[%s5099 + $0x8] sm:$0xf]
        %v5103 = vld [vmem:[%s5099 + $0xc] sm:$0xf]
        %v5104 = vld [vmem:[%s5099 + $0x10] sm:$0xf]
        %v5105 = vld [vmem:[%s5099 + $0x14] sm:$0xf]
        %v5106 = vld [vmem:[%s5099 + $0x18] sm:$0xf]
        %v5107 = vld [vmem:[%s5099 + $0x1c] sm:$0xf]
        %v5108 = vld [vmem:[%s5099 + $0x20] sm:$0xf]
        %v5109 = vld [vmem:[%s5099 + $0x24] sm:$0xf]
        %v5110 = vcombine.low %v4914, %v4922
        %v5111 = vcombine.low %v4921, %v4930
        %v5113 = vunpack.c.l.s4 1983009808
        %v5114 = vunpack.c.0.s8 %v5113
        %v5115 = vlaneseq
        %v5116 = vshrl.u32 %v5115, 7
        %v5117 = vsub.s32 %v5114, %v5116
        %v5118 = vrot.slane %v5110, %v5117
        %v5120 = vunpack.c.l.s4 1983009808
        %v5121 = vunpack.c.0.s8 %v5120
        %v5122 = vlaneseq
        %v5123 = vshrl.u32 %v5122, 7
        %v5124 = vsub.s32 %v5121, %v5123
        %v5125 = vrot.slane %v5111, %v5124
        %v5126 = vcombine.low %v5118, %v5125
        %v5127 = vcombine.low %v4938, %v4937
        %v5128 = vcombine.low %v4946, %v4954
        %v5130 = vunpack.c.l.s4 1983009808
        %v5131 = vunpack.c.0.s8 %v5130
        %v5132 = vlaneseq
        %v5133 = vshrl.u32 %v5132, 7
        %v5134 = vsub.s32 %v5131, %v5133
        %v5135 = vrot.slane %v5127, %v5134
        %v5137 = vunpack.c.l.s4 1983009808
        %v5138 = vunpack.c.0.s8 %v5137
        %v5139 = vlaneseq
        %v5140 = vshrl.u32 %v5139, 7
        %v5141 = vsub.s32 %v5138, %v5140
        %v5142 = vrot.slane %v5128, %v5141
        %v5143 = vcombine.low %v5135, %v5142
        %v5144 = vcombine.low %v4953, %v4962
        %v5145 = vcombine.low %v4970, %v4969
        %v5147 = vunpack.c.l.s4 1983009808
        %v5148 = vunpack.c.0.s8 %v5147
        %v5149 = vlaneseq
        %v5150 = vshrl.u32 %v5149, 7
        %v5151 = vsub.s32 %v5148, %v5150
        %v5152 = vrot.slane %v5144, %v5151
        %v5154 = vunpack.c.l.s4 1983009808
        %v5155 = vunpack.c.0.s8 %v5154
        %v5156 = vlaneseq
        %v5157 = vshrl.u32 %v5156, 7
        %v5158 = vsub.s32 %v5155, %v5157
        %v5159 = vrot.slane %v5145, %v5158
        %v5160 = vcombine.low %v5152, %v5159
        %v5161 = vcombine.low %v4978, %v4986
        %v5162 = vcombine.low %v4985, %v4994
        %v5164 = vunpack.c.l.s4 1983009808
        %v5165 = vunpack.c.0.s8 %v5164
        %v5166 = vlaneseq
        %v5167 = vshrl.u32 %v5166, 7
        %v5168 = vsub.s32 %v5165, %v5167
        %v5169 = vrot.slane %v5161, %v5168
        %v5171 = vunpack.c.l.s4 1983009808
        %v5172 = vunpack.c.0.s8 %v5171
        %v5173 = vlaneseq
        %v5174 = vshrl.u32 %v5173, 7
        %v5175 = vsub.s32 %v5172, %v5174
        %v5176 = vrot.slane %v5162, %v5175
        %v5177 = vcombine.low %v5169, %v5176
        %v5178 = vcombine.low %v5002, %v5001
        %v5179 = vcombine.low %v5010, %v5018
        %v5181 = vunpack.c.l.s4 1983009808
        %v5182 = vunpack.c.0.s8 %v5181
        %v5183 = vlaneseq
        %v5184 = vshrl.u32 %v5183, 7
        %v5185 = vsub.s32 %v5182, %v5184
        %v5186 = vrot.slane %v5178, %v5185
        %v5188 = vunpack.c.l.s4 1983009808
        %v5189 = vunpack.c.0.s8 %v5188
        %v5190 = vlaneseq
        %v5191 = vshrl.u32 %v5190, 7
        %v5192 = vsub.s32 %v5189, %v5191
        %v5193 = vrot.slane %v5179, %v5192
        %v5194 = vcombine.low %v5186, %v5193
        %v5195 = vcombine.low %v5017, %v5026
        %v5196 = vcombine.low %v5034, %v5033
        %v5198 = vunpack.c.l.s4 1983009808
        %v5199 = vunpack.c.0.s8 %v5198
        %v5200 = vlaneseq
        %v5201 = vshrl.u32 %v5200, 7
        %v5202 = vsub.s32 %v5199, %v5201
        %v5203 = vrot.slane %v5195, %v5202
        %v5205 = vunpack.c.l.s4 1983009808
        %v5206 = vunpack.c.0.s8 %v5205
        %v5207 = vlaneseq
        %v5208 = vshrl.u32 %v5207, 7
        %v5209 = vsub.s32 %v5206, %v5208
        %v5210 = vrot.slane %v5196, %v5209
        %v5211 = vcombine.low %v5203, %v5210
        %v5212 = vcombine.low %v5042, %v5050
        %v5213 = vcombine.low %v5049, %v5058
        %v5215 = vunpack.c.l.s4 1983009808
        %v5216 = vunpack.c.0.s8 %v5215
        %v5217 = vlaneseq
        %v5218 = vshrl.u32 %v5217, 7
        %v5219 = vsub.s32 %v5216, %v5218
        %v5220 = vrot.slane %v5212, %v5219
        %v5222 = vunpack.c.l.s4 1983009808
        %v5223 = vunpack.c.0.s8 %v5222
        %v5224 = vlaneseq
        %v5225 = vshrl.u32 %v5224, 7
        %v5226 = vsub.s32 %v5223, %v5225
        %v5227 = vrot.slane %v5213, %v5226
        %v5228 = vcombine.low %v5220, %v5227
        %v5229 = vcombine.low %v5066, %v5065
        %v5230 = vcombine.low %v5074, %v5082
        %v5232 = vunpack.c.l.s4 1983009808
        %v5233 = vunpack.c.0.s8 %v5232
        %v5234 = vlaneseq
        %v5235 = vshrl.u32 %v5234, 7
        %v5236 = vsub.s32 %v5233, %v5235
        %v5237 = vrot.slane %v5229, %v5236
        %v5239 = vunpack.c.l.s4 1983009808
        %v5240 = vunpack.c.0.s8 %v5239
        %v5241 = vlaneseq
        %v5242 = vshrl.u32 %v5241, 7
        %v5243 = vsub.s32 %v5240, %v5242
        %v5244 = vrot.slane %v5230, %v5243
        %v5245 = vcombine.low %v5237, %v5244
        %v5246 = vcombine.low %v5081, %v5090
        %v5247 = vcombine.low %v5098, %v5097
        %v5249 = vunpack.c.l.s4 1983009808
        %v5250 = vunpack.c.0.s8 %v5249
        %v5251 = vlaneseq
        %v5252 = vshrl.u32 %v5251, 7
        %v5253 = vsub.s32 %v5250, %v5252
        %v5254 = vrot.slane %v5246, %v5253
        %v5256 = vunpack.c.l.s4 1983009808
        %v5257 = vunpack.c.0.s8 %v5256
        %v5258 = vlaneseq
        %v5259 = vshrl.u32 %v5258, 7
        %v5260 = vsub.s32 %v5257, %v5259
        %v5261 = vrot.slane %v5247, %v5260
        %v5262 = vcombine.low %v5254, %v5261
        %v5273 = vunpack.c.l.b16 %v5100
        %v5274 = vunpack.c.l.b16 %v5101
        %v5275 = vunpack.c.l.b16 %v5102
        %v5276 = vunpack.c.l.b16 %v5103
        %v5277 = vunpack.c.l.b16 %v5104
        %v5278 = vunpack.c.l.b16 %v5105
        %v5279 = vunpack.c.l.b16 %v5106
        %v5280 = vunpack.c.l.b16 %v5107
        %v5281 = vunpack.c.l.b16 %v5108
        %v5282 = vunpack.c.l.b16 %v5109
        %v5283 = vpack.c.b16 %v5274, %v5273
        %v5284 = vpack.c.b16 %v5276, %v5275
        %v5285 = vpack.c.b16 %v5278, %v5277
        %v5286 = vpack.c.b16 %v5280, %v5279
        %v5287 = vpack.c.b16 %v5282, %v5281
        %v5294 = vsel %vm1873, %v5126, 0
        %v5297 = vsel %vm1873, %v5143, 0
        %v5300 = vsel %vm1873, %v5160, 0
        %v5303 = vsel %vm1873, %v5177, 0
        %v5306 = vsel %vm1873, %v5194, 0
        %v5309 = vsel %vm1873, %v5211, 0
        %v5312 = vsel %vm1873, %v5228, 0
        %v5315 = vsel %vm1873, %v5245, 0
        %v5318 = vsel %vm1873, %v5262, 0
        %5320 = vmatprep.subr.bf16.mxu0 0
        %5321 = vmatpush1.bf16.msra.mxu0 %v5283
        %5322 = vmatprep.subr.bf16.mxu0 0
        %5323 = vmatpush1.bf16.msra.mxu0 %v5284
        %5324 = vmatprep.subr.bf16.mxu0 0
        %5325 = vmatpush1.bf16.msra.mxu0 %v5285
        %5326 = vmatprep.subr.bf16.mxu0 0
        %5327 = vmatpush1.bf16.msra.mxu0 %v5286
        %5328 = vmatprep.subr.bf16.mxu0 0
        %5329 = vmatpush1.bf16.msra.mxu0 %v5287
        %5330 = vmatprep.subr.bf16.mxu0 0
        %5331 = vmatpush1.bf16.msra.mxu0 0
        %5332 = vmatprep.subr.bf16.mxu0 0
        %5333 = vmatpush1.bf16.msra.mxu0 0
        %5334 = vmatprep.subr.bf16.mxu0 0
        %5335 = vmatpush1.bf16.msra.mxu0 0
        %5336 = vmatprep.subr.bf16.mxu0 0
        %5337 = vmatpush1.bf16.msra.mxu0 0
        %5338 = vmatprep.subr.bf16.mxu0 0
        %5339 = vmatpush1.bf16.msra.mxu0 0
        %5340 = vmatprep.subr.bf16.mxu0 0
        %5341 = vmatpush1.bf16.msra.mxu0 0
        %5342 = vmatprep.subr.bf16.mxu0 0
        %5343 = vmatpush1.bf16.msra.mxu0 0
        %5344 = vmatprep.subr.bf16.mxu0 0
        %5345 = vmatpush1.bf16.msra.mxu0 0
        %5346 = vmatprep.subr.bf16.mxu0 0
        %5347 = vmatpush1.bf16.msra.mxu0 0
        %5348 = vmatprep.subr.bf16.mxu0 0
        %5349 = vmatpush1.bf16.msra.mxu0 0
        %5350 = vmatprep.subr.bf16.mxu0 0
        %5351 = vmatpush1.bf16.msra.mxu0 0
        %5352 = vmatprep.mubr.bf16.mxu0 0
        %5353 = vmatmul.mubr.bf16.gmra.mrb[0].mxu0 %v5294
        %v5354 = vpop.f32.mrb[0].mxu0
        %v5355 = vadd.f32 0.0, %v5354
        %v5356 = vpop.f32.mrb[0].mxu0
        %v5357 = vpop.f32.mrb[0].mxu0
        %v5358 = vadd.f32 0.0, %v5357
        %v5359 = vpop.f32.mrb[0].mxu0
        %5360 = vmatprep.mubr.bf16.mxu0 0
        %5361 = vmatmul.mubr.bf16.gmra.mrb[0].mxu0 %v5297
        %v5362 = vpop.f32.mrb[0].mxu0
        %v5363 = vadd.f32 0.0, %v5362
        %v5364 = vpop.f32.mrb[0].mxu0
        %v5365 = vpop.f32.mrb[0].mxu0
        %v5366 = vadd.f32 0.0, %v5365
        %v5367 = vpop.f32.mrb[0].mxu0
        %5368 = vmatprep.mubr.bf16.mxu0 0
        %5369 = vmatmul.mubr.bf16.gmra.mrb[0].mxu0 %v5300
        %v5370 = vpop.f32.mrb[0].mxu0
        %v5371 = vadd.f32 0.0, %v5370
        %v5372 = vpop.f32.mrb[0].mxu0
        %v5373 = vpop.f32.mrb[0].mxu0
        %v5374 = vadd.f32 0.0, %v5373
        %v5375 = vpop.f32.mrb[0].mxu0
        %5376 = vmatprep.mubr.bf16.mxu0 0
        %5377 = vmatmul.mubr.bf16.gmra.mrb[0].mxu0 %v5303
        %v5378 = vpop.f32.mrb[0].mxu0
        %v5379 = vadd.f32 0.0, %v5378
        %v5380 = vpop.f32.mrb[0].mxu0
        %v5381 = vpop.f32.mrb[0].mxu0
        %v5382 = vadd.f32 0.0, %v5381
        %v5383 = vpop.f32.mrb[0].mxu0
        %5384 = vmatprep.mubr.bf16.mxu0 0
        %5385 = vmatmul.mubr.bf16.gmra.mrb[0].mxu0 %v5306
        %v5386 = vpop.f32.mrb[0].mxu0
        %v5387 = vadd.f32 0.0, %v5386
        %v5388 = vpop.f32.mrb[0].mxu0
        %v5389 = vpop.f32.mrb[0].mxu0
        %v5390 = vadd.f32 0.0, %v5389
        %v5391 = vpop.f32.mrb[0].mxu0
        %5392 = vmatprep.mubr.bf16.mxu0 0
        %5393 = vmatmul.mubr.bf16.gmra.mrb[0].mxu0 %v5309
        %v5394 = vpop.f32.mrb[0].mxu0
        %v5395 = vadd.f32 0.0, %v5394
        %v5396 = vpop.f32.mrb[0].mxu0
        %v5397 = vpop.f32.mrb[0].mxu0
        %v5398 = vadd.f32 0.0, %v5397
        %v5399 = vpop.f32.mrb[0].mxu0
        %5400 = vmatprep.mubr.bf16.mxu0 0
        %5401 = vmatmul.mubr.bf16.gmra.mrb[0].mxu0 %v5312
        %v5402 = vpop.f32.mrb[0].mxu0
        %v5403 = vadd.f32 0.0, %v5402
        %v5404 = vpop.f32.mrb[0].mxu0
        %v5405 = vpop.f32.mrb[0].mxu0
        %v5406 = vadd.f32 0.0, %v5405
        %v5407 = vpop.f32.mrb[0].mxu0
        %5408 = vmatprep.mubr.bf16.mxu0 0
        %5409 = vmatmul.mubr.bf16.gmra.mrb[0].mxu0 %v5315
        %v5410 = vpop.f32.mrb[0].mxu0
        %v5411 = vadd.f32 0.0, %v5410
        %v5412 = vpop.f32.mrb[0].mxu0
        %v5413 = vpop.f32.mrb[0].mxu0
        %v5414 = vadd.f32 0.0, %v5413
        %v5415 = vpop.f32.mrb[0].mxu0
        %5416 = vmatprep.mubr.bf16.mxu0 0
        %5417 = vmatmul.mubr.bf16.gmra.mrb[0].mxu0 %v5318
        %v5418 = vpop.f32.mrb[0].mxu0
        %v5419 = vadd.f32 0.0, %v5418
        %v5420 = vpop.f32.mrb[0].mxu0
        %v5421 = vpop.f32.mrb[0].mxu0
        %v5422 = vadd.f32 0.0, %v5421
        %v5423 = vpop.f32.mrb[0].mxu0
        %5424 = vdwg.mxu0
        %v5425 = vadd.f32 %v4385, %v5355
        %v5426 = vadd.f32 %v4386, %v5358
        %v5427 = vadd.f32 %v4387, %v5363
        %v5428 = vadd.f32 %v4388, %v5366
        %v5429 = vadd.f32 %v4389, %v5371
        %v5430 = vadd.f32 %v4390, %v5374
        %v5431 = vadd.f32 %v4391, %v5379
        %v5432 = vadd.f32 %v4392, %v5382
        %v5433 = vadd.f32 %v4393, %v5387
        %v5434 = vadd.f32 %v4394, %v5390
        %v5435 = vadd.f32 %v4395, %v5395
        %v5436 = vadd.f32 %v4396, %v5398
        %v5437 = vadd.f32 %v4397, %v5403
        %v5438 = vadd.f32 %v4398, %v5406
        %v5439 = vadd.f32 %v4399, %v5411
        %v5440 = vadd.f32 %v4400, %v5414
        %v5441 = vadd.f32 %v4401, %v5419
        %v5442 = vadd.f32 %v4402, %v5422
        %5443 = vst [vmem:[%s192] sm:$0xff] %v5425
        %5444 = vst [vmem:[%s192 + $0x8] sm:$0xff] %v5426
        %5445 = vst [vmem:[%s192 + $0x10] sm:$0xff] %v5427
        %5446 = vst [vmem:[%s192 + $0x18] sm:$0xff] %v5428
        %5447 = vst [vmem:[%s192 + $0x20] sm:$0xff] %v5429
        %5448 = vst [vmem:[%s192 + $0x28] sm:$0xff] %v5430
        %5449 = vst [vmem:[%s192 + $0x30] sm:$0xff] %v5431
        %5450 = vst [vmem:[%s192 + $0x38] sm:$0xff] %v5432
        %5451 = vst [vmem:[%s192 + $0x40] sm:$0xff] %v5433
        %5452 = vst [vmem:[%s192 + $0x48] sm:$0xff] %v5434
        %5453 = vst [vmem:[%s192 + $0x50] sm:$0xff] %v5435
        %5454 = vst [vmem:[%s192 + $0x58] sm:$0xff] %v5436
        %5455 = vst [vmem:[%s192 + $0x60] sm:$0xff] %v5437
        %5456 = vst [vmem:[%s192 + $0x68] sm:$0xff] %v5438
        %5457 = vst [vmem:[%s192 + $0x70] sm:$0xff] %v5439
        %5458 = vst [vmem:[%s192 + $0x78] sm:$0xff] %v5440
        %5459 = vst [vmem:[%s192 + $0x80] sm:$0xff] %v5441
        %5460 = vst [vmem:[%s192 + $0x88] sm:$0xff] %v5442
        %v5461 = vadd.f32 %v5425, %v5426
        %v5462 = vadd.f32 %v5461, %v5427
        %v5463 = vadd.f32 %v5462, %v5428
        %v5464 = vadd.f32 %v5463, %v5429
        %v5465 = vadd.f32 %v5464, %v5430
        %v5466 = vadd.f32 %v5465, %v5431
        %v5467 = vadd.f32 %v5466, %v5432
        %v5468 = vadd.f32 %v5467, %v5433
        %v5469 = vadd.f32 %v5468, %v5434
        %v5470 = vadd.f32 %v5469, %v5435
        %v5471 = vadd.f32 %v5470, %v5436
        %v5472 = vadd.f32 %v5471, %v5437
        %v5473 = vadd.f32 %v5472, %v5438
        %v5474 = vadd.f32 %v5473, %v5439
        %v5475 = vadd.f32 %v5474, %v5440
        %v5476 = vadd.f32 %v5475, %v5441
        %v5477 = vadd.f32 %v5476, %v5442
        %v5478 = vrot.slane %v5477, 4
        %v5479 = vadd.f32 %v5477, %v5478
        %v5480 = vrot.slane %v5479, 2
        %v5481 = vadd.f32 %v5479, %v5480
        %v5482 = vrot.slane %v5481, 1
        %v5483 = vadd.f32 %v5481, %v5482
        %v5484 = vmul.f32 %v5425, %v5425
        %v5485 = vmul.f32 %v5426, %v5426
        %v5486 = vmul.f32 %v5427, %v5427
        %v5487 = vmul.f32 %v5428, %v5428
        %v5488 = vmul.f32 %v5429, %v5429
        %v5489 = vmul.f32 %v5430, %v5430
        %v5490 = vmul.f32 %v5431, %v5431
        %v5491 = vmul.f32 %v5432, %v5432
        %v5492 = vmul.f32 %v5433, %v5433
        %v5493 = vmul.f32 %v5434, %v5434
        %v5494 = vmul.f32 %v5435, %v5435
        %v5495 = vmul.f32 %v5436, %v5436
        %v5496 = vmul.f32 %v5437, %v5437
        %v5497 = vmul.f32 %v5438, %v5438
        %v5498 = vmul.f32 %v5439, %v5439
        %v5499 = vmul.f32 %v5440, %v5440
        %v5500 = vmul.f32 %v5441, %v5441
        %v5501 = vmul.f32 %v5442, %v5442
        %v5502 = vadd.f32 %v5484, %v5485
        %v5503 = vadd.f32 %v5502, %v5486
        %v5504 = vadd.f32 %v5503, %v5487
        %v5505 = vadd.f32 %v5504, %v5488
        %v5506 = vadd.f32 %v5505, %v5489
        %v5507 = vadd.f32 %v5506, %v5490
        %v5508 = vadd.f32 %v5507, %v5491
        %v5509 = vadd.f32 %v5508, %v5492
        %v5510 = vadd.f32 %v5509, %v5493
        %v5511 = vadd.f32 %v5510, %v5494
        %v5512 = vadd.f32 %v5511, %v5495
        %v5513 = vadd.f32 %v5512, %v5496
        %v5514 = vadd.f32 %v5513, %v5497
        %v5515 = vadd.f32 %v5514, %v5498
        %v5516 = vadd.f32 %v5515, %v5499
        %v5517 = vadd.f32 %v5516, %v5500
        %v5518 = vadd.f32 %v5517, %v5501
        %v5519 = vrot.slane %v5518, 4
        %v5520 = vadd.f32 %v5518, %v5519
        %v5521 = vrot.slane %v5520, 2
        %v5522 = vadd.f32 %v5520, %v5521
        %v5523 = vrot.slane %v5522, 1
        %v5524 = vadd.f32 %v5522, %v5523
        %vm5525 = vcmask 1040384
        %v5526 = vsel %vm5525, %v5483, %v5524
        %5527 = vst [vmem:[%s196] sm:$0x3] %v5526
        %p5528 = scmp.lt.s32.totalorder %s16, 1
        %s5529 = scalar_select %p5528, %s16, 1
        %s5530 = smul.addr %s5529, 18
        %s5531 = smul.addr %s5530, 8
        %s5532 = scalar_lea.vmem %s2, %s5531
        %p5533 = scmp.lt.s32.totalorder %s16, 1
        %s5534 = scalar_select %p5533, %s16, 1
        %s5535 = smul.addr %s5534, 2
        %s5536 = scalar_lea.vmem %s3, %s5535
        // Predicated region
        $region33: #{_conv_bn_fused.1} parent=27 // pred_check
          %p5537 = pneg %p81
        $region34: #{_conv_bn_fused.1} parent=27 // pred_check_branch
          %5539 = sbr.rel (%p5537) target = $region36
        $region35: #{_conv_bn_fused.1} parent=27 // pred_region
          _
        $region36: #{_conv_bn_fused.1} parent=27 // pred_fallthru
          _
        // Predicated region
        $region37: #{_conv_bn_fused.1} parent=27 // pred_check
          %p5540 = pneg %p107
        $region38: #{_conv_bn_fused.1} parent=27 // pred_check_branch
          %5542 = sbr.rel (%p5540) target = $region40
        $region39: #{_conv_bn_fused.1} parent=27 // pred_region
          _
        $region40: #{_conv_bn_fused.1} parent=27 // pred_fallthru
          _
      $region28: #{_conv_bn_fused.1} parent=5 // pred_fallthru
        _
      %p5543 = scmp.le.s32.totalorder 2, %s11
      // Predicated region
      $region41: #{_conv_bn_fused.1} parent=5 // pred_check
        %p5544 = pneg %p5543
      $region42: #{_conv_bn_fused.1} parent=5 // pred_check_branch
        %5546 = sbr.rel (%p5544) target = $region44
      $region43: #{_conv_bn_fused.1} parent=5 // pred_region
        %s5547 = ssub.s32 %s11, 2
        // Predicated region
        $region45: #{_conv_bn_fused.1} parent=43 // pred_check
          %p5548 = pneg %p87
        $region46: #{_conv_bn_fused.1} parent=43 // pred_check_branch
          %5550 = sbr.rel (%p5548) target = $region48
        $region47: #{_conv_bn_fused.1} parent=43 // pred_region
          %p5551 = scmp.lt.s32.totalorder %s17, 1
          %s5552 = scalar_select %p5551, %s17, 1
          %s5553 = smul.addr %s5552, 18
          %s5554 = smul.addr %s5553, 8
          %s5555 = scalar_lea.vmem %s2, %s5554
        $region48: #{_conv_bn_fused.1} parent=43 // pred_fallthru
          _
        // Predicated region
        $region49: #{_conv_bn_fused.1} parent=43 // pred_check
          %p5556 = pneg %p113
        $region50: #{_conv_bn_fused.1} parent=43 // pred_check_branch
          %5558 = sbr.rel (%p5556) target = $region52
        $region51: #{_conv_bn_fused.1} parent=43 // pred_region
          %p5559 = scmp.lt.s32.totalorder %s17, 1
          %s5560 = scalar_select %p5559, %s17, 1
          %s5561 = smul.addr %s5560, 2
          %s5562 = scalar_lea.vmem %s3, %s5561
        $region52: #{_conv_bn_fused.1} parent=43 // pred_fallthru
          _
      $region44: #{_conv_bn_fused.1} parent=5 // pred_fallthru
        _
    $region6: #{_conv_bn_fused.1} parent=1 // loop_footer
      %s15 = sadd.s32 1, %s11
    $region7: #{_conv_bn_fused.1} parent=1 // loop_footer_branch
      %10 = sbr.rel target = $region3
    $region8: #{_conv_bn_fused.1} parent=1 // loop_exit
      _
    %5563 = vsyncpa [#allocation4], 1
    %s5564 = scalar_lea.sflag [#allocation4], 1
    %5565 = vsyncpa %s5564, 1

</llo_original>
